<compile_context>
chip_gen: v6e
topology: v6e:2x2x1
jax: 0.10.0
libtpu: 0.0.40
codegen_flags: <defaults>
</compile_context>

<pallas_src>
import jax
import jax.numpy as jnp
from jax.experimental import pallas as pl
from jax.experimental.pallas import tpu as pltpu

# ---------------- model hyper-params (small, consistent with the module) ----------------
B = 2                  # batch
S = 8                  # sequence length
H = 128                # cfg.text_embedding_dim == nlp_model.config.hidden_size
VOCAB = 64
SCENARIOS = [0, 1, 2]
NUM_SCENARIOS = len(SCENARIOS)
P = NUM_SCENARIOS + 1                 # per-scenario experts + general expert
H1, H2, H3 = 1024, 512, 256           # Expert(hidden_size=[1024, 512, 256]) -> out dim 1
LANE = 128                            # lane-dense output width
HEADS_PER_STEP = 2                    # grid=(P//2,): 2 heads per step, one step per v7x TC
SLAB_ROWS = 8                         # packed small-operand slab: (P, 8, 1024) f32
assert P % HEADS_PER_STEP == 0

# Slab layout per head (f32, lane-dense, all offsets 128-aligned in lanes):
#   row 0, lanes    0:1024  -> b1  (1024)
#   row 1, lanes    0: 512  -> b2  ( 512)
#   row 1, lanes  512: 768  -> b3  ( 256)
#   row 1, lanes  768:1024  -> w4  ( 256)   final 256->1 weight (VPU lane-reduce)
#   row 2, lanes    0: 128  -> wp  ( 128)   pooling weight
#   row 2, lane        128  -> bp            pooling bias
#   row 2, lane        256  -> b4            final bias
#   rows 3..7               -> zero padding (sublane alignment)


# ---------------------------------- Pallas kernel ---------------------------------------
def ladder_kernel(x_ref, slab_ref, w1_ref, w2_ref, w3_ref, out_ref):
    """One grid step = HEADS_PER_STEP (AttentionPooling, Expert) heads.

    x_ref   : (B, S, H) f32   last_hidden_state (shared; same block index every step)
    slab_ref: (2, 8, 1024) f32 packed small operands (wp,bp,b1,b2,b3,w4,b4) for 2 heads
    w1..w3  : (2, H, 1024) / (2, 1024, 512) / (2, 512, 256) bf16 expert weights
    out_ref : (2, B, LANE) f32 sigmoid(expert(pooled)) broadcast across lanes
    """
    x = x_ref[...]                              # (B, S, H) f32
    slab = slab_ref[...]                        # (2, 8, 1024) f32

    for hd in range(HEADS_PER_STEP):            # static unroll: 2 heads per step
        # ---- unpack packed small operands (all slices lane/sublane aligned) ----
        wp = slab[hd, 2, 0:H]                   # (H,)
        bp = slab[hd, 2:3, 128:129]             # (1, 1)
        b1 = slab[hd, 0:1, :]                   # (1, 1024)
        b2 = slab[hd, 1:2, 0:H2]                # (1, 512)
        b3 = slab[hd, 1:2, H2:H2 + H3]          # (1, 256)
        w4 = slab[hd, 1, H2 + H3:H2 + 2 * H3]   # (256,)
        b4 = slab[hd, 2:3, 256:257]             # (1, 1)

        # ---- AttentionPooling: scores = x @ wp + bp ; softmax over S ; weighted sum ----
        # NOTE: matches the reference (attn_pooling only receives last_hidden_state,
        # so padded positions are not masked in the softmax).
        scores = jnp.sum(x * wp[None, None, :], axis=-1) + bp        # (B, S)
        m = jnp.max(scores, axis=-1, keepdims=True)
        e = jnp.exp(scores - m)
        attn = e / jnp.sum(e, axis=-1, keepdims=True)                # (B, S)
        pooled = jnp.sum(attn[:, :, None] * x, axis=1)               # (B, H) f32

        # ---- Expert MLP: H -> 1024 -> 512 -> 256 -> 1 (ReLU), then sigmoid ----
        # bf16 weights x bf16 activations on the MXU, f32 accumulate.
        h = jnp.dot(pooled.astype(jnp.bfloat16), w1_ref[hd],
                    preferred_element_type=jnp.float32) + b1
        h = jnp.maximum(h, 0.0)
        h = jnp.dot(h.astype(jnp.bfloat16), w2_ref[hd],
                    preferred_element_type=jnp.float32) + b2
        h = jnp.maximum(h, 0.0)
        h = jnp.dot(h.astype(jnp.bfloat16), w3_ref[hd],
                    preferred_element_type=jnp.float32) + b3
        h = jnp.maximum(h, 0.0)                                      # (B, 256) f32

        # Final 256 -> 1: cross-lane reduce on VPU/XLU instead of an N=1 MXU matmul.
        logit = jnp.sum(h * w4[None, :], axis=-1, keepdims=True) + b4    # (B, 1)
        sig = 1.0 / (1.0 + jnp.exp(-logit))                              # (B, 1)

        # Lane-dense store: broadcast the per-row scalar across all 128 lanes.
        out_ref[hd] = jnp.broadcast_to(sig, (out_ref.shape[1], out_ref.shape[2]))


def run_heads(last_hidden_state, slab, w1, w2, w3):
    """Run all P pooling+expert heads over last_hidden_state. Returns (P, B, 1) f32."""
    b, s, h = last_hidden_state.shape
    n_steps = P // HEADS_PER_STEP
    heads_lane = pl.pallas_call(
        ladder_kernel,
        out_shape=jax.ShapeDtypeStruct((P, b, LANE), jnp.float32),
        grid=(n_steps,),
        in_specs=[
            pl.BlockSpec((b, s, h), lambda g: (0, 0, 0)),                 # x (shared, f32)
            pl.BlockSpec((HEADS_PER_STEP, SLAB_ROWS, 1024), lambda g: (g, 0, 0)),  # slab
            pl.BlockSpec((HEADS_PER_STEP, h, H1), lambda g: (g, 0, 0)),   # w1 (bf16)
            pl.BlockSpec((HEADS_PER_STEP, H1, H2), lambda g: (g, 0, 0)),  # w2 (bf16)
            pl.BlockSpec((HEADS_PER_STEP, H2, H3), lambda g: (g, 0, 0)),  # w3 (bf16)
        ],
        out_specs=pl.BlockSpec((HEADS_PER_STEP, b, LANE), lambda g: (g, 0, 0)),
        compiler_params=pltpu.CompilerParams(
            dimension_semantics=("parallel",),      # v7x: 2 TCs each take one 2-head step
            vmem_limit_bytes=16 * 1024 * 1024,      # ~6.2 MiB double-buffered working set
        ),
    )(last_hidden_state, slab, w1, w2, w3)
    return heads_lane[:, :, 0:1]                    # (P, B, 1)


# ---------------------------------- plain-JAX glue --------------------------------------
def fake_text_encoder(input_ids, attention_mask, params):
    """Deterministic stand-in for the frozen pretrained backbone (returns last_hidden_state)."""
    emb = params["embed"][input_ids] + params["pos"][None, : input_ids.shape[1], :]
    hid = jnp.tanh(emb @ params["mix"])
    return hid * attention_mask[..., None].astype(hid.dtype)        # (B, S, H)


def nlp_model_forward(params, input_ids, attention_mask, scenario_id):
    last_hidden_state = fake_text_encoder(input_ids, attention_mask, params)
    heads = run_heads(last_hidden_state, params["slab"],
                      params["w1"], params["w2"], params["w3"])      # (P, B, 1)

    out_multi_head = [heads[i] for i in range(NUM_SCENARIOS)]        # list of (B, 1)
    general_output = heads[NUM_SCENARIOS]                            # (B, 1)

    # scenario_mask = [scenario_id == i ...]; out = where(mask, out_i, out)
    out = jnp.zeros_like(out_multi_head[0])
    for i in SCENARIOS:
        out = jnp.where(scenario_id == i, out_multi_head[i], out)
    return out, out_multi_head, general_output


# ---------------------------------- parameter init --------------------------------------
def init_params(key):
    ks = jax.random.split(key, 13)
    n = lambda k, shape, scale=0.02: (scale * jax.random.normal(k, shape)).astype(jnp.float32)

    # attn_pooling (Linear(H,1)) + expert biases + final 256->1 weight, per head
    wp = n(ks[3], (P, H))
    bp = n(ks[4], (P,), 0.01)
    b1 = n(ks[5], (P, H1), 0.01)
    b2 = n(ks[6], (P, H2), 0.01)
    b3 = n(ks[7], (P, H3), 0.01)
    w4 = n(ks[8], (P, H3))
    b4 = n(ks[9], (P,), 0.01)

    # Pack the small operands into one lane-dense f32 slab (one DMA per 2-head step).
    slab = jnp.zeros((P, SLAB_ROWS, 1024), jnp.float32)
    slab = slab.at[:, 0, :].set(b1)
    slab = slab.at[:, 1, 0:H2].set(b2)
    slab = slab.at[:, 1, H2:H2 + H3].set(b3)
    slab = slab.at[:, 1, H2 + H3:H2 + 2 * H3].set(w4)
    slab = slab.at[:, 2, 0:H].set(wp)
    slab = slab.at[:, 2, 128].set(bp)
    slab = slab.at[:, 2, 256].set(b4)

    return {
        # synthetic backbone (f32)
        "embed": n(ks[0], (VOCAB, H), 1.0),
        "pos":   n(ks[1], (S, H), 0.1),
        "mix":   n(ks[2], (H, H), 0.1),
        # packed small operands
        "slab": slab,
        # expert matmul weights, streamed as bf16 (halves the HBM weight-stream bytes)
        "w1": n(ks[10], (P, H, H1)).astype(jnp.bfloat16),
        "w2": n(ks[11], (P, H1, H2)).astype(jnp.bfloat16),
        "w3": n(ks[12], (P, H2, H3)).astype(jnp.bfloat16),
    }


# ------------------------------ pure-JAX reference (check) ------------------------------
def heads_reference(last_hidden_state, params):
    """f32 reference of all P heads (bf16 weights cast back to f32)."""
    slab = params["slab"]
    outs = []
    for p in range(P):
        wp = slab[p, 2, 0:H]
        bp = slab[p, 2, 128]
        b1 = slab[p, 0, :]
        b2 = slab[p, 1, 0:H2]
        b3 = slab[p, 1, H2:H2 + H3]
        w4 = slab[p, 1, H2 + H3:H2 + 2 * H3]
        b4 = slab[p, 2, 256]
        scores = jnp.einsum("bsh,h->bs", last_hidden_state, wp) + bp
        attn = jax.nn.softmax(scores, axis=-1)
        pooled = jnp.einsum("bs,bsh->bh", attn, last_hidden_state)
        h = jax.nn.relu(pooled @ params["w1"][p].astype(jnp.float32) + b1)
        h = jax.nn.relu(h @ params["w2"][p].astype(jnp.float32) + b2)
        h = jax.nn.relu(h @ params["w3"][p].astype(jnp.float32) + b3)
        logit = h @ w4 + b4
        outs.append(jax.nn.sigmoid(logit)[:, None])
    return jnp.stack(outs, axis=0)                       # (P, B, 1)


if __name__ == "__main__":
    key = jax.random.PRNGKey(0)
    pkey, ikey = jax.random.split(key)
    params = init_params(pkey)

    input_ids = jax.random.randint(ikey, (B, S), 0, VOCAB, dtype=jnp.int32)
    attention_mask = jnp.ones((B, S), dtype=jnp.int32)
    scenario_id = jnp.array([[0], [2]], dtype=jnp.int32)          # (B, 1)

    fwd = jax.jit(nlp_model_forward)
    out, out_multi_head, general_output = fwd(params, input_ids, attention_mask, scenario_id)
    jax.block_until_ready(out)
    jax.block_until_ready(general_output)

    # tolerance-check the fused kernel against a pure-JAX reference
    lhs = fake_text_encoder(input_ids, attention_mask, params)
    ref = heads_reference(lhs, params)                            # (P, B, 1)
    got = jnp.stack(list(out_multi_head) + [general_output], axis=0)
    assert jnp.allclose(got, ref, atol=2e-2, rtol=2e-2), "kernel mismatch vs reference"

    assert out.shape == (B, 1)
    assert len(out_multi_head) == NUM_SCENARIOS
    assert all(o.shape == (B, 1) for o in out_multi_head)
    assert general_output.shape == (B, 1)
    assert bool(jnp.all(jnp.isfinite(out)))
    assert bool(jnp.all((out >= 0.0) & (out <= 1.0)))             # sigmoid range (non-brittle)
    assert bool(jnp.all(jnp.isfinite(general_output)))
    print("KERNEL_OK")
</pallas_src>

<mosaic_0001>
module attributes {stable_mosaic.version = 11 : i64} {
  func.func @ladder_kernel(%arg0: i32, %arg1: memref<2x8x128xf32, #tpu.memory_space<vmem>>, %arg2: memref<2x8x1024xf32, #tpu.memory_space<vmem>>, %arg3: memref<2x128x1024xbf16, #tpu.memory_space<vmem>>, %arg4: memref<2x1024x512xbf16, #tpu.memory_space<vmem>>, %arg5: memref<2x512x256xbf16, #tpu.memory_space<vmem>>, %arg6: memref<2x2x128xf32, #tpu.memory_space<vmem>>) attributes {dimension_semantics = [#tpu.dimension_semantics<parallel>], iteration_bounds = array<i64: 2>, scalar_prefetch = 0 : i64, scratch_operands = 0 : i64, tpu.core_type = #tpu.core_type<tc>, window_params = [{pipeline_mode = #tpu.pipeline_mode<synchronous>, transform_indices = @transform_0, window_bounds = array<i64: 2, 8, 128>}, {transform_indices = @transform_1, window_bounds = array<i64: 2, 8, 1024>}, {transform_indices = @transform_2, window_bounds = array<i64: 2, 128, 1024>}, {transform_indices = @transform_3, window_bounds = array<i64: 2, 1024, 512>}, {transform_indices = @transform_4, window_bounds = array<i64: 2, 512, 256>}, {transform_indices = @transform_5, window_bounds = array<i64: 2, 2, 128>}]} {
    %c0 = arith.constant 0 : index
    %c0_0 = arith.constant 0 : index
    %c0_1 = arith.constant 0 : index
    %0 = vector.load %arg1[%c0, %c0_0, %c0_1] : memref<2x8x128xf32, #tpu.memory_space<vmem>>, vector<2x8x128xf32>
    %c0_2 = arith.constant 0 : index
    %c0_3 = arith.constant 0 : index
    %c0_4 = arith.constant 0 : index
    %1 = vector.load %arg2[%c0_2, %c0_3, %c0_4] : memref<2x8x1024xf32, #tpu.memory_space<vmem>>, vector<2x8x1024xf32>
    %2 = vector.extract_strided_slice %1 {offsets = [0, 2, 0], sizes = [1, 1, 128], strides = [1, 1, 1]} : vector<2x8x1024xf32> to vector<1x1x128xf32>
    %3 = vector.shape_cast %2 : vector<1x1x128xf32> to vector<128xf32>
    %4 = vector.extract_strided_slice %1 {offsets = [0, 2, 128], sizes = [1, 1, 1], strides = [1, 1, 1]} : vector<2x8x1024xf32> to vector<1x1x1xf32>
    %5 = vector.shape_cast %4 : vector<1x1x1xf32> to vector<1x1xf32>
    %6 = vector.extract_strided_slice %1 {offsets = [0, 0, 0], sizes = [1, 1, 1024], strides = [1, 1, 1]} : vector<2x8x1024xf32> to vector<1x1x1024xf32>
    %7 = vector.shape_cast %6 : vector<1x1x1024xf32> to vector<1x1024xf32>
    %8 = vector.extract_strided_slice %1 {offsets = [0, 1, 0], sizes = [1, 1, 512], strides = [1, 1, 1]} : vector<2x8x1024xf32> to vector<1x1x512xf32>
    %9 = vector.shape_cast %8 : vector<1x1x512xf32> to vector<1x512xf32>
    %10 = vector.extract_strided_slice %1 {offsets = [0, 1, 512], sizes = [1, 1, 256], strides = [1, 1, 1]} : vector<2x8x1024xf32> to vector<1x1x256xf32>
    %11 = vector.shape_cast %10 : vector<1x1x256xf32> to vector<1x256xf32>
    %12 = vector.extract_strided_slice %1 {offsets = [0, 1, 768], sizes = [1, 1, 256], strides = [1, 1, 1]} : vector<2x8x1024xf32> to vector<1x1x256xf32>
    %13 = vector.shape_cast %12 : vector<1x1x256xf32> to vector<256xf32>
    %14 = vector.extract_strided_slice %1 {offsets = [0, 2, 256], sizes = [1, 1, 1], strides = [1, 1, 1]} : vector<2x8x1024xf32> to vector<1x1x1xf32>
    %15 = vector.shape_cast %14 : vector<1x1x1xf32> to vector<1x1xf32>
    %16 = vector.shape_cast %3 : vector<128xf32> to vector<1x1x128xf32>
    %17 = vector.broadcast %16 : vector<1x1x128xf32> to vector<2x8x128xf32>
    %18 = arith.mulf %0, %17 : vector<2x8x128xf32>
    %cst = arith.constant dense<0.000000e+00> : vector<2x8xf32>
    %19 = vector.multi_reduction <add>, %18, %cst [2] : vector<2x8x128xf32> to vector<2x8xf32>
    %20 = vector.broadcast %5 : vector<1x1xf32> to vector<2x8xf32>
    %21 = arith.addf %19, %20 : vector<2x8xf32>
    %cst_5 = arith.constant dense<0xFF800000> : vector<2xf32>
    %22 = vector.multi_reduction <maximumf>, %21, %cst_5 [1] : vector<2x8xf32> to vector<2xf32>
    %23 = vector.shape_cast %22 : vector<2xf32> to vector<2x1xf32>
    %24 = vector.broadcast %23 : vector<2x1xf32> to vector<2x8xf32>
    %25 = arith.subf %21, %24 : vector<2x8xf32>
    %26 = math.exp %25 : vector<2x8xf32>
    %cst_6 = arith.constant dense<0.000000e+00> : vector<2xf32>
    %27 = vector.multi_reduction <add>, %26, %cst_6 [1] : vector<2x8xf32> to vector<2xf32>
    %28 = vector.shape_cast %27 : vector<2xf32> to vector<2x1xf32>
    %29 = vector.broadcast %28 : vector<2x1xf32> to vector<2x8xf32>
    %30 = arith.divf %26, %29 : vector<2x8xf32>
    %31 = vector.shape_cast %30 : vector<2x8xf32> to vector<2x8x1xf32>
    %32 = vector.broadcast %31 : vector<2x8x1xf32> to vector<2x8x128xf32>
    %33 = arith.mulf %32, %0 : vector<2x8x128xf32>
    %cst_7 = arith.constant dense<0.000000e+00> : vector<2x128xf32>
    %34 = vector.multi_reduction <add>, %33, %cst_7 [1] : vector<2x8x128xf32> to vector<2x128xf32>
    %35 = arith.truncf %34 : vector<2x128xf32> to vector<2x128xbf16>
    %c0_8 = arith.constant 0 : index
    %c0_9 = arith.constant 0 : index
    %c0_10 = arith.constant 0 : index
    %36 = vector.load %arg3[%c0_8, %c0_9, %c0_10] : memref<2x128x1024xbf16, #tpu.memory_space<vmem>>, vector<1x128x1024xbf16>
    %37 = vector.shape_cast %36 : vector<1x128x1024xbf16> to vector<128x1024xbf16>
    %cst_11 = arith.constant dense<0.000000e+00> : vector<2x1024xf32>
    %38 = tpu.matmul %35, %37, %cst_11 {dimension_numbers = #tpu.dot_dimension_numbers<[1], [0], [0], [1], [0, 0, 1, 1], [], []>} : vector<2x128xbf16>, vector<128x1024xbf16>, vector<2x1024xf32> -> vector<2x1024xf32>
    %39 = vector.broadcast %7 : vector<1x1024xf32> to vector<2x1024xf32>
    %40 = arith.addf %38, %39 : vector<2x1024xf32>
    %cst_12 = arith.constant 0.000000e+00 : f32
    %41 = vector.broadcast %cst_12 : f32 to vector<2x1024xf32>
    %42 = arith.maximumf %40, %41 : vector<2x1024xf32>
    %43 = arith.truncf %42 : vector<2x1024xf32> to vector<2x1024xbf16>
    %c0_13 = arith.constant 0 : index
    %c0_14 = arith.constant 0 : index
    %c0_15 = arith.constant 0 : index
    %44 = vector.load %arg4[%c0_13, %c0_14, %c0_15] : memref<2x1024x512xbf16, #tpu.memory_space<vmem>>, vector<1x1024x512xbf16>
    %45 = vector.shape_cast %44 : vector<1x1024x512xbf16> to vector<1024x512xbf16>
    %cst_16 = arith.constant dense<0.000000e+00> : vector<2x512xf32>
    %46 = tpu.matmul %43, %45, %cst_16 {dimension_numbers = #tpu.dot_dimension_numbers<[1], [0], [0], [1], [0, 0, 1, 1], [], []>} : vector<2x1024xbf16>, vector<1024x512xbf16>, vector<2x512xf32> -> vector<2x512xf32>
    %47 = vector.broadcast %9 : vector<1x512xf32> to vector<2x512xf32>
    %48 = arith.addf %46, %47 : vector<2x512xf32>
    %cst_17 = arith.constant 0.000000e+00 : f32
    %49 = vector.broadcast %cst_17 : f32 to vector<2x512xf32>
    %50 = arith.maximumf %48, %49 : vector<2x512xf32>
    %51 = arith.truncf %50 : vector<2x512xf32> to vector<2x512xbf16>
    %c0_18 = arith.constant 0 : index
    %c0_19 = arith.constant 0 : index
    %c0_20 = arith.constant 0 : index
    %52 = vector.load %arg5[%c0_18, %c0_19, %c0_20] : memref<2x512x256xbf16, #tpu.memory_space<vmem>>, vector<1x512x256xbf16>
    %53 = vector.shape_cast %52 : vector<1x512x256xbf16> to vector<512x256xbf16>
    %cst_21 = arith.constant dense<0.000000e+00> : vector<2x256xf32>
    %54 = tpu.matmul %51, %53, %cst_21 {dimension_numbers = #tpu.dot_dimension_numbers<[1], [0], [0], [1], [0, 0, 1, 1], [], []>} : vector<2x512xbf16>, vector<512x256xbf16>, vector<2x256xf32> -> vector<2x256xf32>
    %55 = vector.broadcast %11 : vector<1x256xf32> to vector<2x256xf32>
    %56 = arith.addf %54, %55 : vector<2x256xf32>
    %cst_22 = arith.constant 0.000000e+00 : f32
    %57 = vector.broadcast %cst_22 : f32 to vector<2x256xf32>
    %58 = arith.maximumf %56, %57 : vector<2x256xf32>
    %59 = vector.shape_cast %13 : vector<256xf32> to vector<1x256xf32>
    %60 = vector.broadcast %59 : vector<1x256xf32> to vector<2x256xf32>
    %61 = arith.mulf %58, %60 : vector<2x256xf32>
    %cst_23 = arith.constant dense<0.000000e+00> : vector<2xf32>
    %62 = vector.multi_reduction <add>, %61, %cst_23 [1] : vector<2x256xf32> to vector<2xf32>
    %63 = vector.shape_cast %62 : vector<2xf32> to vector<2x1xf32>
    %64 = vector.broadcast %15 : vector<1x1xf32> to vector<2x1xf32>
    %65 = arith.addf %63, %64 : vector<2x1xf32>
    %cst_24 = arith.constant 0.000000e+00 : f32
    %66 = vector.broadcast %cst_24 : f32 to vector<2x1xf32>
    %67 = arith.subf %66, %65 : vector<2x1xf32>
    %68 = math.exp %67 : vector<2x1xf32>
    %cst_25 = arith.constant 1.000000e+00 : f32
    %69 = vector.broadcast %cst_25 : f32 to vector<2x1xf32>
    %70 = arith.addf %69, %68 : vector<2x1xf32>
    %cst_26 = arith.constant 1.000000e+00 : f32
    %71 = vector.broadcast %cst_26 : f32 to vector<2x1xf32>
    %72 = arith.divf %71, %70 : vector<2x1xf32>
    %73 = vector.shape_cast %72 : vector<2x1xf32> to vector<2x1xf32>
    %74 = vector.broadcast %73 : vector<2x1xf32> to vector<2x128xf32>
    %c0_27 = arith.constant 0 : index
    %c0_28 = arith.constant 0 : index
    %c0_29 = arith.constant 0 : index
    %75 = vector.load %arg6[%c0_27, %c0_28, %c0_29] : memref<2x2x128xf32, #tpu.memory_space<vmem>>, vector<1x2x128xf32>
    %76 = vector.shape_cast %75 : vector<1x2x128xf32> to vector<2x128xf32>
    %77 = vector.shape_cast %74 : vector<2x128xf32> to vector<1x2x128xf32>
    tpu.vector_store %arg6[%c0_27, %c0_28, %c0_29], %77 {strides = array<i32>} : memref<2x2x128xf32, #tpu.memory_space<vmem>>, vector<1x2x128xf32>,
    %78 = vector.extract_strided_slice %1 {offsets = [1, 2, 0], sizes = [1, 1, 128], strides = [1, 1, 1]} : vector<2x8x1024xf32> to vector<1x1x128xf32>
    %79 = vector.shape_cast %78 : vector<1x1x128xf32> to vector<128xf32>
    %80 = vector.extract_strided_slice %1 {offsets = [1, 2, 128], sizes = [1, 1, 1], strides = [1, 1, 1]} : vector<2x8x1024xf32> to vector<1x1x1xf32>
    %81 = vector.shape_cast %80 : vector<1x1x1xf32> to vector<1x1xf32>
    %82 = vector.extract_strided_slice %1 {offsets = [1, 0, 0], sizes = [1, 1, 1024], strides = [1, 1, 1]} : vector<2x8x1024xf32> to vector<1x1x1024xf32>
    %83 = vector.shape_cast %82 : vector<1x1x1024xf32> to vector<1x1024xf32>
    %84 = vector.extract_strided_slice %1 {offsets = [1, 1, 0], sizes = [1, 1, 512], strides = [1, 1, 1]} : vector<2x8x1024xf32> to vector<1x1x512xf32>
    %85 = vector.shape_cast %84 : vector<1x1x512xf32> to vector<1x512xf32>
    %86 = vector.extract_strided_slice %1 {offsets = [1, 1, 512], sizes = [1, 1, 256], strides = [1, 1, 1]} : vector<2x8x1024xf32> to vector<1x1x256xf32>
    %87 = vector.shape_cast %86 : vector<1x1x256xf32> to vector<1x256xf32>
    %88 = vector.extract_strided_slice %1 {offsets = [1, 1, 768], sizes = [1, 1, 256], strides = [1, 1, 1]} : vector<2x8x1024xf32> to vector<1x1x256xf32>
    %89 = vector.shape_cast %88 : vector<1x1x256xf32> to vector<256xf32>
    %90 = vector.extract_strided_slice %1 {offsets = [1, 2, 256], sizes = [1, 1, 1], strides = [1, 1, 1]} : vector<2x8x1024xf32> to vector<1x1x1xf32>
    %91 = vector.shape_cast %90 : vector<1x1x1xf32> to vector<1x1xf32>
    %92 = vector.shape_cast %79 : vector<128xf32> to vector<1x1x128xf32>
    %93 = vector.broadcast %92 : vector<1x1x128xf32> to vector<2x8x128xf32>
    %94 = arith.mulf %0, %93 : vector<2x8x128xf32>
    %cst_30 = arith.constant dense<0.000000e+00> : vector<2x8xf32>
    %95 = vector.multi_reduction <add>, %94, %cst_30 [2] : vector<2x8x128xf32> to vector<2x8xf32>
    %96 = vector.broadcast %81 : vector<1x1xf32> to vector<2x8xf32>
    %97 = arith.addf %95, %96 : vector<2x8xf32>
    %cst_31 = arith.constant dense<0xFF800000> : vector<2xf32>
    %98 = vector.multi_reduction <maximumf>, %97, %cst_31 [1] : vector<2x8xf32> to vector<2xf32>
    %99 = vector.shape_cast %98 : vector<2xf32> to vector<2x1xf32>
    %100 = vector.broadcast %99 : vector<2x1xf32> to vector<2x8xf32>
    %101 = arith.subf %97, %100 : vector<2x8xf32>
    %102 = math.exp %101 : vector<2x8xf32>
    %cst_32 = arith.constant dense<0.000000e+00> : vector<2xf32>
    %103 = vector.multi_reduction <add>, %102, %cst_32 [1] : vector<2x8xf32> to vector<2xf32>
    %104 = vector.shape_cast %103 : vector<2xf32> to vector<2x1xf32>
    %105 = vector.broadcast %104 : vector<2x1xf32> to vector<2x8xf32>
    %106 = arith.divf %102, %105 : vector<2x8xf32>
    %107 = vector.shape_cast %106 : vector<2x8xf32> to vector<2x8x1xf32>
    %108 = vector.broadcast %107 : vector<2x8x1xf32> to vector<2x8x128xf32>
    %109 = arith.mulf %108, %0 : vector<2x8x128xf32>
    %cst_33 = arith.constant dense<0.000000e+00> : vector<2x128xf32>
    %110 = vector.multi_reduction <add>, %109, %cst_33 [1] : vector<2x8x128xf32> to vector<2x128xf32>
    %111 = arith.truncf %110 : vector<2x128xf32> to vector<2x128xbf16>
    %c1 = arith.constant 1 : index
    %c0_34 = arith.constant 0 : index
    %c0_35 = arith.constant 0 : index
    %112 = vector.load %arg3[%c1, %c0_34, %c0_35] : memref<2x128x1024xbf16, #tpu.memory_space<vmem>>, vector<1x128x1024xbf16>
    %113 = vector.shape_cast %112 : vector<1x128x1024xbf16> to vector<128x1024xbf16>
    %cst_36 = arith.constant dense<0.000000e+00> : vector<2x1024xf32>
    %114 = tpu.matmul %111, %113, %cst_36 {dimension_numbers = #tpu.dot_dimension_numbers<[1], [0], [0], [1], [0, 0, 1, 1], [], []>} : vector<2x128xbf16>, vector<128x1024xbf16>, vector<2x1024xf32> -> vector<2x1024xf32>
    %115 = vector.broadcast %83 : vector<1x1024xf32> to vector<2x1024xf32>
    %116 = arith.addf %114, %115 : vector<2x1024xf32>
    %cst_37 = arith.constant 0.000000e+00 : f32
    %117 = vector.broadcast %cst_37 : f32 to vector<2x1024xf32>
    %118 = arith.maximumf %116, %117 : vector<2x1024xf32>
    %119 = arith.truncf %118 : vector<2x1024xf32> to vector<2x1024xbf16>
    %c1_38 = arith.constant 1 : index
    %c0_39 = arith.constant 0 : index
    %c0_40 = arith.constant 0 : index
    %120 = vector.load %arg4[%c1_38, %c0_39, %c0_40] : memref<2x1024x512xbf16, #tpu.memory_space<vmem>>, vector<1x1024x512xbf16>
    %121 = vector.shape_cast %120 : vector<1x1024x512xbf16> to vector<1024x512xbf16>
    %cst_41 = arith.constant dense<0.000000e+00> : vector<2x512xf32>
    %122 = tpu.matmul %119, %121, %cst_41 {dimension_numbers = #tpu.dot_dimension_numbers<[1], [0], [0], [1], [0, 0, 1, 1], [], []>} : vector<2x1024xbf16>, vector<1024x512xbf16>, vector<2x512xf32> -> vector<2x512xf32>
    %123 = vector.broadcast %85 : vector<1x512xf32> to vector<2x512xf32>
    %124 = arith.addf %122, %123 : vector<2x512xf32>
    %cst_42 = arith.constant 0.000000e+00 : f32
    %125 = vector.broadcast %cst_42 : f32 to vector<2x512xf32>
    %126 = arith.maximumf %124, %125 : vector<2x512xf32>
    %127 = arith.truncf %126 : vector<2x512xf32> to vector<2x512xbf16>
    %c1_43 = arith.constant 1 : index
    %c0_44 = arith.constant 0 : index
    %c0_45 = arith.constant 0 : index
    %128 = vector.load %arg5[%c1_43, %c0_44, %c0_45] : memref<2x512x256xbf16, #tpu.memory_space<vmem>>, vector<1x512x256xbf16>
    %129 = vector.shape_cast %128 : vector<1x512x256xbf16> to vector<512x256xbf16>
    %cst_46 = arith.constant dense<0.000000e+00> : vector<2x256xf32>
    %130 = tpu.matmul %127, %129, %cst_46 {dimension_numbers = #tpu.dot_dimension_numbers<[1], [0], [0], [1], [0, 0, 1, 1], [], []>} : vector<2x512xbf16>, vector<512x256xbf16>, vector<2x256xf32> -> vector<2x256xf32>
    %131 = vector.broadcast %87 : vector<1x256xf32> to vector<2x256xf32>
    %132 = arith.addf %130, %131 : vector<2x256xf32>
    %cst_47 = arith.constant 0.000000e+00 : f32
    %133 = vector.broadcast %cst_47 : f32 to vector<2x256xf32>
    %134 = arith.maximumf %132, %133 : vector<2x256xf32>
    %135 = vector.shape_cast %89 : vector<256xf32> to vector<1x256xf32>
    %136 = vector.broadcast %135 : vector<1x256xf32> to vector<2x256xf32>
    %137 = arith.mulf %134, %136 : vector<2x256xf32>
    %cst_48 = arith.constant dense<0.000000e+00> : vector<2xf32>
    %138 = vector.multi_reduction <add>, %137, %cst_48 [1] : vector<2x256xf32> to vector<2xf32>
    %139 = vector.shape_cast %138 : vector<2xf32> to vector<2x1xf32>
    %140 = vector.broadcast %91 : vector<1x1xf32> to vector<2x1xf32>
    %141 = arith.addf %139, %140 : vector<2x1xf32>
    %cst_49 = arith.constant 0.000000e+00 : f32
    %142 = vector.broadcast %cst_49 : f32 to vector<2x1xf32>
    %143 = arith.subf %142, %141 : vector<2x1xf32>
    %144 = math.exp %143 : vector<2x1xf32>
    %cst_50 = arith.constant 1.000000e+00 : f32
    %145 = vector.broadcast %cst_50 : f32 to vector<2x1xf32>
    %146 = arith.addf %145, %144 : vector<2x1xf32>
    %cst_51 = arith.constant 1.000000e+00 : f32
    %147 = vector.broadcast %cst_51 : f32 to vector<2x1xf32>
    %148 = arith.divf %147, %146 : vector<2x1xf32>
    %149 = vector.shape_cast %148 : vector<2x1xf32> to vector<2x1xf32>
    %150 = vector.broadcast %149 : vector<2x1xf32> to vector<2x128xf32>
    %c1_52 = arith.constant 1 : index
    %c0_53 = arith.constant 0 : index
    %c0_54 = arith.constant 0 : index
    %151 = vector.load %arg6[%c1_52, %c0_53, %c0_54] : memref<2x2x128xf32, #tpu.memory_space<vmem>>, vector<1x2x128xf32>
    %152 = vector.shape_cast %151 : vector<1x2x128xf32> to vector<2x128xf32>
    %153 = vector.shape_cast %150 : vector<2x128xf32> to vector<1x2x128xf32>
    tpu.vector_store %arg6[%c1_52, %c0_53, %c0_54], %153 {strides = array<i32>} : memref<2x2x128xf32, #tpu.memory_space<vmem>>, vector<1x2x128xf32>,
    return
  }
  func.func @transform_0(%arg0: i32) -> (i32, i32, i32) {
    %c0_i32 = arith.constant 0 : i32
    %c0_i32_0 = arith.constant 0 : i32
    %c0_i32_1 = arith.constant 0 : i32
    %c0_i32_2 = arith.constant 0 : i32
    return %c0_i32, %c0_i32_0, %c0_i32_1 : i32, i32, i32
  }
  func.func @transform_1(%arg0: i32) -> (i32, i32, i32) {
    %c0_i32 = arith.constant 0 : i32
    %c0_i32_0 = arith.constant 0 : i32
    %c0_i32_1 = arith.constant 0 : i32
    return %arg0, %c0_i32, %c0_i32_0 : i32, i32, i32
  }
  func.func @transform_2(%arg0: i32) -> (i32, i32, i32) {
    %c0_i32 = arith.constant 0 : i32
    %c0_i32_0 = arith.constant 0 : i32
    %c0_i32_1 = arith.constant 0 : i32
    return %arg0, %c0_i32, %c0_i32_0 : i32, i32, i32
  }
  func.func @transform_3(%arg0: i32) -> (i32, i32, i32) {
    %c0_i32 = arith.constant 0 : i32
    %c0_i32_0 = arith.constant 0 : i32
    %c0_i32_1 = arith.constant 0 : i32
    return %arg0, %c0_i32, %c0_i32_0 : i32, i32, i32
  }
  func.func @transform_4(%arg0: i32) -> (i32, i32, i32) {
    %c0_i32 = arith.constant 0 : i32
    %c0_i32_0 = arith.constant 0 : i32
    %c0_i32_1 = arith.constant 0 : i32
    return %arg0, %c0_i32, %c0_i32_0 : i32, i32, i32
  }
  func.func @transform_5(%arg0: i32) -> (i32, i32, i32) {
    %c0_i32 = arith.constant 0 : i32
    %c0_i32_0 = arith.constant 0 : i32
    %c0_i32_1 = arith.constant 0 : i32
    return %arg0, %c0_i32, %c0_i32_0 : i32, i32, i32
  }
}

</mosaic_0001>

<llo_original>
// kernel: nlp_model_forward.1
$region0: #{nlp_model_forward.1}
  #allocation0 [shape = 'u32[]', space=smem, size = 0x4, offset = 0x4, fixed_abs, tag = 'smem constant byte address 0x4 - core index']
  #allocation1 [shape = 'u32[144,128]{1,0:T(1,128)}', space=vmem, size = 0x12000, scoped, tag = 'internal scratch']
  %s0 = inlined_call_operand.vmem [shape: f32[2,8,128], index: 0, kind: input, shape index: {}]
  %s1 = inlined_call_operand.hbm [shape: f32[4,8,1024], index: 1, kind: input, shape index: {}]
  %s2 = inlined_call_operand.hbm [shape: bf16[4,128,1024], index: 2, kind: input, shape index: {}]
  %s3 = inlined_call_operand.hbm [shape: bf16[4,1024,512], index: 3, kind: input, shape index: {}]
  %s4 = inlined_call_operand.hbm [shape: bf16[4,512,256], index: 4, kind: input, shape index: {}]
  %s5 = inlined_call_operand.vmem [shape: f32[4,2,128], index: 5, kind: output, shape index: {}]
  %s6 = sld [smem:[#allocation0]]
  $region69: #{nlp_model_forward.1} parent=0
    _
  %s8 = ssub.s32 1, %s6
  %s9 = scalar_select 0, %s8, %s6
  $region1: #{nlp_model_forward.1} parent=0
    #allocation2 [shape = 'u8[131072]{0}', space=vmem, size = 0x20000, scoped, tag = 'input window, operand 1']
    #allocation3 [shape = 's32[2]{0}', space=sflag, size = 0x8, scoped, tag = 'scoped memory for nlp_model_forward.1']
    #allocation4 [shape = 'u8[1048576]{0}', space=vmem, size = 0x100000, scoped, tag = 'input window, operand 2']
    #allocation5 [shape = 's32[2]{0}', space=sflag, size = 0x8, scoped, tag = 'scoped memory for nlp_model_forward.1']
    #allocation6 [shape = 'u8[4194304]{0}', space=vmem, size = 0x400000, scoped, tag = 'input window, operand 3']
    #allocation7 [shape = 'u8[1048576]{0}', space=vmem, size = 0x100000, scoped, tag = 'input window, operand 4']
    #allocation8 [shape = 's32[2]{0}', space=sflag, size = 0x8, scoped, tag = 'scoped memory for nlp_model_forward.1']
    %10 = vsyncpa [#allocation3], 0
    %s11 = scalar_lea.sflag [#allocation3], 1
    %12 = vsyncpa %s11, 0
    %13 = vsyncpa [#allocation5], 0
    %s14 = scalar_lea.sflag [#allocation5], 1
    %15 = vsyncpa %s14, 0
    %16 = vsyncpa [#allocation8], 0
    %s17 = scalar_lea.sflag [#allocation8], 1
    %18 = vsyncpa %s17, 0
    loop: start=0, step=1, limit=4
    $region2: #{nlp_model_forward.1} parent=1 // loop_pre_header
      _
    $region3: #{nlp_model_forward.1} parent=1 // loop_header
      %s20 = sphi 0, %s24
      %p21 = scmp.ge.s32.totalorder %s20, 4
      %s28 = sphi 0, %s28
      %s30 = sphi 0, %s28
      %s31 = sphi 0, %s30
      %s45 = sphi 0, %s31
      %s51 = sphi 0, %s53
      %s54 = sphi 0, %s51
      %s55 = sphi 0, %s54
      %s71 = sphi 0, %s55
      %s77 = sphi 0, %s79
      %s80 = sphi 0, %s77
      %s81 = sphi 0, %s80
      %s97 = sphi 0, %s81
      %s103 = sphi 0, %s105
      %s106 = sphi 0, %s103
      %s107 = sphi 0, %s106
      %s123 = sphi 0, %s107
      %s129 = sphi 0, %s131
      %s132 = sphi 0, %s129
      %s133 = sphi 0, %s132
      %s149 = sphi 0, %s133
      %s155 = sphi 0, %s157
      %s158 = sphi 0, %s155
      %s159 = sphi 0, %s158
      %s175 = sphi 0, %s159
    $region4: #{nlp_model_forward.1} parent=1 // loop_header_branch
      %23 = sbr.rel (%p21) target = $region8
    $region5: #{nlp_model_forward.1} parent=1 // loop_body
      %s25 = ssub.s32 %s20, 1
      %s26 = ssub.s32 %s20, 2
      %s27 = sadd.s32 %s20, 1
      %s29 = sadd.s32 %s28, 1
      %p32 = scmp.eq.s32.totalorder %s20, 1
      %p33 = scmp.ne.s32.totalorder %s28, %s30
      %p34 = scmp.eq.s32.totalorder %s20, 0
      %p35 = por %p33, %p34
      %p36 = scmp.ne.s32.totalorder %s28, %s30
      %p37 = scmp.eq.s32.totalorder %s25, 1
      %p38 = por %p36, %p37
      %p39 = scmp.ne.s32.totalorder %s30, %s31
      %p40 = scmp.eq.s32.totalorder %s25, 0
      %p41 = por %p39, %p40
      %p42 = scmp.ne.s32.totalorder %s30, %s31
      %p43 = scmp.eq.s32.totalorder %s26, 1
      %p44 = por %p42, %p43
      %p46 = scmp.ne.s32.totalorder %s31, %s45
      %p47 = scmp.eq.s32.totalorder %s26, 0
      %p48 = por %p46, %p47
      %s49 = ssub.s32 %s20, %s27
      %p50 = scmp.eq.s32.totalorder %s49, 0
      %s52 = sadd.s32 %s51, 1
      %s53 = scalar_select %p50, %s51, %s52
      %p56 = pneg %p50
      %p57 = scmp.eq.s32.totalorder %s20, 1
      %p58 = por %p56, %p57
      %p59 = scmp.ne.s32.totalorder %s51, %s54
      %p60 = scmp.eq.s32.totalorder %s20, 0
      %p61 = por %p59, %p60
      %p62 = scmp.ne.s32.totalorder %s51, %s54
      %p63 = scmp.eq.s32.totalorder %s25, 1
      %p64 = por %p62, %p63
      %p65 = scmp.ne.s32.totalorder %s54, %s55
      %p66 = scmp.eq.s32.totalorder %s25, 0
      %p67 = por %p65, %p66
      %p68 = scmp.ne.s32.totalorder %s54, %s55
      %p69 = scmp.eq.s32.totalorder %s26, 1
      %p70 = por %p68, %p69
      %p72 = scmp.ne.s32.totalorder %s55, %s71
      %p73 = scmp.eq.s32.totalorder %s26, 0
      %p74 = por %p72, %p73
      %s75 = ssub.s32 %s20, %s27
      %p76 = scmp.eq.s32.totalorder %s75, 0
      %s78 = sadd.s32 %s77, 1
      %s79 = scalar_select %p76, %s77, %s78
      %p82 = pneg %p76
      %p83 = scmp.eq.s32.totalorder %s20, 1
      %p84 = por %p82, %p83
      %p85 = scmp.ne.s32.totalorder %s77, %s80
      %p86 = scmp.eq.s32.totalorder %s20, 0
      %p87 = por %p85, %p86
      %p88 = scmp.ne.s32.totalorder %s77, %s80
      %p89 = scmp.eq.s32.totalorder %s25, 1
      %p90 = por %p88, %p89
      %p91 = scmp.ne.s32.totalorder %s80, %s81
      %p92 = scmp.eq.s32.totalorder %s25, 0
      %p93 = por %p91, %p92
      %p94 = scmp.ne.s32.totalorder %s80, %s81
      %p95 = scmp.eq.s32.totalorder %s26, 1
      %p96 = por %p94, %p95
      %p98 = scmp.ne.s32.totalorder %s81, %s97
      %p99 = scmp.eq.s32.totalorder %s26, 0
      %p100 = por %p98, %p99
      %s101 = ssub.s32 %s20, %s27
      %p102 = scmp.eq.s32.totalorder %s101, 0
      %s104 = sadd.s32 %s103, 1
      %s105 = scalar_select %p102, %s103, %s104
      %p108 = pneg %p102
      %p109 = scmp.eq.s32.totalorder %s20, 1
      %p110 = por %p108, %p109
      %p111 = scmp.ne.s32.totalorder %s103, %s106
      %p112 = scmp.eq.s32.totalorder %s20, 0
      %p113 = por %p111, %p112
      %p114 = scmp.ne.s32.totalorder %s103, %s106
      %p115 = scmp.eq.s32.totalorder %s25, 1
      %p116 = por %p114, %p115
      %p117 = scmp.ne.s32.totalorder %s106, %s107
      %p118 = scmp.eq.s32.totalorder %s25, 0
      %p119 = por %p117, %p118
      %p120 = scmp.ne.s32.totalorder %s106, %s107
      %p121 = scmp.eq.s32.totalorder %s26, 1
      %p122 = por %p120, %p121
      %p124 = scmp.ne.s32.totalorder %s107, %s123
      %p125 = scmp.eq.s32.totalorder %s26, 0
      %p126 = por %p124, %p125
      %s127 = ssub.s32 %s20, %s27
      %p128 = scmp.eq.s32.totalorder %s127, 0
      %s130 = sadd.s32 %s129, 1
      %s131 = scalar_select %p128, %s129, %s130
      %p134 = pneg %p128
      %p135 = scmp.eq.s32.totalorder %s20, 1
      %p136 = por %p134, %p135
      %p137 = scmp.ne.s32.totalorder %s129, %s132
      %p138 = scmp.eq.s32.totalorder %s20, 0
      %p139 = por %p137, %p138
      %p140 = scmp.ne.s32.totalorder %s129, %s132
      %p141 = scmp.eq.s32.totalorder %s25, 1
      %p142 = por %p140, %p141
      %p143 = scmp.ne.s32.totalorder %s132, %s133
      %p144 = scmp.eq.s32.totalorder %s25, 0
      %p145 = por %p143, %p144
      %p146 = scmp.ne.s32.totalorder %s132, %s133
      %p147 = scmp.eq.s32.totalorder %s26, 1
      %p148 = por %p146, %p147
      %p150 = scmp.ne.s32.totalorder %s133, %s149
      %p151 = scmp.eq.s32.totalorder %s26, 0
      %p152 = por %p150, %p151
      %s153 = ssub.s32 %s20, %s27
      %p154 = scmp.eq.s32.totalorder %s153, 0
      %s156 = sadd.s32 %s155, 1
      %s157 = scalar_select %p154, %s155, %s156
      %p160 = pneg %p154
      %p161 = scmp.eq.s32.totalorder %s20, 1
      %p162 = por %p160, %p161
      %p163 = scmp.ne.s32.totalorder %s155, %s158
      %p164 = scmp.eq.s32.totalorder %s20, 0
      %p165 = por %p163, %p164
      %p166 = scmp.ne.s32.totalorder %s155, %s158
      %p167 = scmp.eq.s32.totalorder %s25, 1
      %p168 = por %p166, %p167
      %p169 = scmp.ne.s32.totalorder %s158, %s159
      %p170 = scmp.eq.s32.totalorder %s25, 0
      %p171 = por %p169, %p170
      %p172 = scmp.ne.s32.totalorder %s158, %s159
      %p173 = scmp.eq.s32.totalorder %s26, 1
      %p174 = por %p172, %p173
      %p176 = scmp.ne.s32.totalorder %s159, %s175
      %p177 = scmp.eq.s32.totalorder %s26, 0
      %p178 = por %p176, %p177
      %p179 = scmp.le.s32.totalorder 1, %s20
      %p180 = scmp.lt.s32.totalorder %s20, 3
      %p181 = pnand %p179, %p180
      %p182 = pneg %p181
      // Predicated region
      $region9: #{nlp_model_forward.1} parent=5 // pred_check
        _
      $region10: #{nlp_model_forward.1} parent=5 // pred_check_branch
        %184 = sbr.rel (%p181) target = $region12
      $region11: #{nlp_model_forward.1} parent=5 // pred_region
        %s185 = ssub.s32 %s20, 1
        // Predicated region
        $region13: #{nlp_model_forward.1} parent=11 // pred_check
          %p186 = pneg %p41
        $region14: #{nlp_model_forward.1} parent=11 // pred_check_branch
          %188 = sbr.rel (%p186) target = $region16
        $region15: #{nlp_model_forward.1} parent=11 // pred_region
          _
        $region16: #{nlp_model_forward.1} parent=11 // pred_fallthru
          _
      $region12: #{nlp_model_forward.1} parent=5 // pred_fallthru
        _
      %p189 = scmp.lt.s32.totalorder %s20, 2
      // Predicated region
      $region17: #{nlp_model_forward.1} parent=5 // pred_check
        %p190 = pneg %p189
      $region18: #{nlp_model_forward.1} parent=5 // pred_check_branch
        %192 = sbr.rel (%p190) target = $region20
      $region19: #{nlp_model_forward.1} parent=5 // pred_region
        // Predicated region
        $region21: #{nlp_model_forward.1} parent=19 // pred_check
          %p193 = pneg %p61
        $region22: #{nlp_model_forward.1} parent=19 // pred_check_branch
          %195 = sbr.rel (%p193) target = $region24
        $region23: #{nlp_model_forward.1} parent=19 // pred_region
          %s196 = sand.u32 %s51, 1
          %s197 = scalar_lea.sflag [#allocation3], %s196
          %s198 = sand.u32 %s51, 1
          %s199 = smul.addr %s198, 128
          %s200 = scalar_lea.vmem [#allocation2], %s199
          %s201 = smul.u32 2, %s20
          %s203 = ssub.s32 2048, 2048
          %204 = vsyncadd %s197, %s203
          %s205 = smul.addr %s201, 8
          %s206 = smul.addr %s205, 128
          %s207 = scalar_lea.hbm %s1, %s206
          %s208 = sshll.u32 %s200, 4
          %s209 = int_to_ptr.vmem [resolvable:$true] %s208
          %214 = dma.hbm_to_vmem [thread:$0]  %s207, 2048, %s209, %s197, 1024, 1024, 64
        $region24: #{nlp_model_forward.1} parent=19 // pred_fallthru
          _
        // Predicated region
        $region25: #{nlp_model_forward.1} parent=19 // pred_check
          %p215 = pneg %p87
        $region26: #{nlp_model_forward.1} parent=19 // pred_check_branch
          %217 = sbr.rel (%p215) target = $region28
        $region27: #{nlp_model_forward.1} parent=19 // pred_region
          %s218 = sand.u32 %s20, 1
          %s219 = scalar_lea.sflag [#allocation5], %s218
          %s220 = sand.u32 %s77, 1
          %s221 = smul.addr %s220, 1024
          %s222 = scalar_lea.vmem [#allocation4], %s221
          %s223 = smul.u32 2, %s20
          %s225 = ssub.s32 16384, 16384
          %226 = vsyncadd %s219, %s225
          %s227 = smul.addr %s223, 128
          %s228 = smul.addr %s227, 64
          %s229 = scalar_lea.hbm %s2, %s228
          %s230 = sshll.u32 %s222, 4
          %s231 = int_to_ptr.vmem [resolvable:$true] %s230
          %236 = dma.hbm_to_vmem [thread:$0]  %s229, 16384, %s231, %s219, 512, 512, 32
        $region28: #{nlp_model_forward.1} parent=19 // pred_fallthru
          _
        // Predicated region
        $region29: #{nlp_model_forward.1} parent=19 // pred_check
          %p237 = pneg %p113
        $region30: #{nlp_model_forward.1} parent=19 // pred_check_branch
          %239 = sbr.rel (%p237) target = $region32
        $region31: #{nlp_model_forward.1} parent=19 // pred_region
          %s240 = sand.u32 %s20, 1
          %s241 = scalar_lea.sflag [#allocation5], %s240
          %s242 = sand.u32 %s103, 1
          %s243 = smul.addr %s242, 4096
          %s244 = scalar_lea.vmem [#allocation6], %s243
          %s245 = smul.u32 2, %s20
          %s247 = ssub.s32 65536, 65536
          %248 = vsyncadd %s241, %s247
          %s249 = smul.addr %s245, 512
          %s250 = smul.addr %s249, 64
          %s251 = scalar_lea.hbm %s3, %s250
          %s252 = sshll.u32 %s244, 4
          %s253 = int_to_ptr.vmem [resolvable:$true] %s252
          %258 = dma.hbm_to_vmem [thread:$0]  %s251, 65536, %s253, %s241, 256, 256, 16
        $region32: #{nlp_model_forward.1} parent=19 // pred_fallthru
          _
        // Predicated region
        $region33: #{nlp_model_forward.1} parent=19 // pred_check
          %p259 = pneg %p139
        $region34: #{nlp_model_forward.1} parent=19 // pred_check_branch
          %261 = sbr.rel (%p259) target = $region36
        $region35: #{nlp_model_forward.1} parent=19 // pred_region
          %s262 = sand.u32 %s129, 1
          %s263 = scalar_lea.sflag [#allocation8], %s262
          %s264 = sand.u32 %s129, 1
          %s265 = smul.addr %s264, 1024
          %s266 = scalar_lea.vmem [#allocation7], %s265
          %s267 = smul.u32 2, %s20
          %s269 = ssub.s32 16384, 16384
          %270 = vsyncadd %s263, %s269
          %s271 = smul.addr %s267, 128
          %s272 = smul.addr %s271, 64
          %s273 = scalar_lea.hbm %s4, %s272
          %s274 = sshll.u32 %s266, 4
          %s275 = int_to_ptr.vmem [resolvable:$true] %s274
          %280 = dma.hbm_to_vmem [thread:$0]  %s273, 16384, %s275, %s263, 128, 128, 8
        $region36: #{nlp_model_forward.1} parent=19 // pred_fallthru
          _
      $region20: #{nlp_model_forward.1} parent=5 // pred_fallthru
        _
      %p281 = scmp.le.s32.totalorder 1, %s20
      %p282 = scmp.lt.s32.totalorder %s20, 3
      %p283 = pnand %p281, %p282
      %p284 = pneg %p283
      // Predicated region
      $region37: #{nlp_model_forward.1} parent=5 // pred_check
        _
      $region38: #{nlp_model_forward.1} parent=5 // pred_check_branch
        %286 = sbr.rel (%p283) target = $region40
      $region39: #{nlp_model_forward.1} parent=5 // pred_region
        %s287 = ssub.s32 %s20, 1
        %s288 = sand.u32 %s54, 1
        %s289 = scalar_lea.sflag [#allocation3], %s288
        %s290 = sand.u32 %s54, 1
        %s291 = smul.addr %s290, 128
        %s292 = scalar_lea.vmem [#allocation2], %s291
        // Predicated region
        $region41: #{nlp_model_forward.1} parent=39 // pred_check
          %p293 = pneg %p67
        $region42: #{nlp_model_forward.1} parent=39 // pred_check_branch
          %295 = sbr.rel (%p293) target = $region44
        $region43: #{nlp_model_forward.1} parent=39 // pred_region
          %296 = dma.done %s289, 2048
        $region44: #{nlp_model_forward.1} parent=39 // pred_fallthru
          _
        %s297 = sand.u32 %s25, 1
        %s298 = scalar_lea.sflag [#allocation5], %s297
        %s299 = sand.u32 %s80, 1
        %s300 = smul.addr %s299, 1024
        %s301 = scalar_lea.vmem [#allocation4], %s300
        // Predicated region
        $region45: #{nlp_model_forward.1} parent=39 // pred_check
          %p302 = pneg %p93
        $region46: #{nlp_model_forward.1} parent=39 // pred_check_branch
          %304 = sbr.rel (%p302) target = $region48
        $region47: #{nlp_model_forward.1} parent=39 // pred_region
          %305 = dma.done %s298, 16384
        $region48: #{nlp_model_forward.1} parent=39 // pred_fallthru
          _
        %s306 = sand.u32 %s25, 1
        %s307 = scalar_lea.sflag [#allocation5], %s306
        %s308 = sand.u32 %s106, 1
        %s309 = smul.addr %s308, 4096
        %s310 = scalar_lea.vmem [#allocation6], %s309
        // Predicated region
        $region49: #{nlp_model_forward.1} parent=39 // pred_check
          %p311 = pneg %p119
        $region50: #{nlp_model_forward.1} parent=39 // pred_check_branch
          %313 = sbr.rel (%p311) target = $region52
        $region51: #{nlp_model_forward.1} parent=39 // pred_region
          %314 = dma.done %s307, 65536
        $region52: #{nlp_model_forward.1} parent=39 // pred_fallthru
          _
        %s315 = sand.u32 %s132, 1
        %s316 = scalar_lea.sflag [#allocation8], %s315
        %s317 = sand.u32 %s132, 1
        %s318 = smul.addr %s317, 1024
        %s319 = scalar_lea.vmem [#allocation7], %s318
        // Predicated region
        $region53: #{nlp_model_forward.1} parent=39 // pred_check
          %p320 = pneg %p145
        $region54: #{nlp_model_forward.1} parent=39 // pred_check_branch
          %322 = sbr.rel (%p320) target = $region56
        $region55: #{nlp_model_forward.1} parent=39 // pred_region
          %323 = dma.done %s316, 16384
        $region56: #{nlp_model_forward.1} parent=39 // pred_fallthru
          _
        %p324 = pneg %p41
        %p325 = pneg %p38
        %s326 = sand.u32 %s54, 1
        %s327 = scalar_lea.sflag [#allocation3], %s326
        %s328 = sand.u32 %s54, 1
        %s329 = smul.addr %s328, 128
        %s330 = scalar_lea.vmem [#allocation2], %s329
        %p331 = pneg %p67
        %p332 = pneg %p64
        %s333 = sand.u32 %s25, 1
        %s334 = scalar_lea.sflag [#allocation5], %s333
        %s335 = sand.u32 %s80, 1
        %s336 = smul.addr %s335, 1024
        %s337 = scalar_lea.vmem [#allocation4], %s336
        %p338 = pneg %p93
        %p339 = pneg %p90
        %s340 = sand.u32 %s25, 1
        %s341 = scalar_lea.sflag [#allocation5], %s340
        %s342 = sand.u32 %s106, 1
        %s343 = smul.addr %s342, 4096
        %s344 = scalar_lea.vmem [#allocation6], %s343
        %p345 = pneg %p119
        %p346 = pneg %p116
        %s347 = sand.u32 %s132, 1
        %s348 = scalar_lea.sflag [#allocation8], %s347
        %s349 = sand.u32 %s132, 1
        %s350 = smul.addr %s349, 1024
        %s351 = scalar_lea.vmem [#allocation7], %s350
        %p352 = pneg %p145
        %p353 = pneg %p142
        %p354 = pneg %p171
        %p355 = pneg %p168
        %s356 = smul.u32 2, %s25
        %p357 = scmp.lt.s32.totalorder %s356, 3
        %s358 = scalar_select %p357, %s356, 3
        %s359 = smul.addr %s358, 2
        %s360 = scalar_lea.vmem %s5, %s359
        %s361 = smul.u32 2, %s25
        %s362 = smul.u32 2, %s25
        %s363 = smul.u32 2, %s25
        %s364 = smul.u32 2, %s25
        %s365 = smul.u32 2, %s25
        %p366 = scmp.lt.s32.totalorder %s365, 3
        %s367 = scalar_select %p366, %s365, 3
        %s368 = smul.addr %s367, 2
        %s369 = scalar_lea.vmem %s5, %s368
        %s370 = smul.u32 2, %s25
        %v372 = vld [vmem:[%s0] sm:$0xff]
        %v373 = vld [vmem:[%s0 + $0x8] sm:$0xff]
        %v374 = vld [vmem:[%s292] sm:$0xff]
        %v375 = vld [vmem:[%s292 + $0x8] sm:$0xff]
        %v376 = vld [vmem:[%s292 + $0x10] sm:$0xff]
        %v377 = vld [vmem:[%s292 + $0x18] sm:$0xff]
        %v378 = vld [vmem:[%s292 + $0x20] sm:$0xff]
        %v379 = vld [vmem:[%s292 + $0x28] sm:$0xff]
        %v380 = vld [vmem:[%s292 + $0x30] sm:$0xff]
        %v381 = vld [vmem:[%s292 + $0x38] sm:$0xff]
        %v382 = vld [vmem:[%s292 + $0x40] sm:$0xff]
        %v383 = vld [vmem:[%s292 + $0x48] sm:$0xff]
        %v384 = vld [vmem:[%s292 + $0x50] sm:$0xff]
        %v385 = vld [vmem:[%s292 + $0x58] sm:$0xff]
        %v386 = vld [vmem:[%s292 + $0x60] sm:$0xff]
        %v387 = vld [vmem:[%s292 + $0x68] sm:$0xff]
        %v388 = vld [vmem:[%s292 + $0x70] sm:$0xff]
        %v389 = vld [vmem:[%s292 + $0x78] sm:$0xff]
        %v390 = vlaneseq
        %v391 = vshrl.u32 %v390, 7
        %v392 = vsub.s32 2, %v391
        %v393 = vrot.slane %v374, %v392
        %v394 = vmul.f32 %v372, %v393
        %v395 = vmul.f32 %v373, %v393
        %396 = vadd.xlane.f32.xlu0 %v394
        %v397 = vpop.xlane.xlu0 %396
        %398 = vadd.xlane.f32.xlu0 %v395
        %v399 = vpop.xlane.xlu0 %398
        %v401 = vrot.slane %v375, 2
        %s402 = vtos %v401
        %v403 = vstv %s402
        %v405 = vadd.f32 %v397, %v403
        %v406 = vadd.f32 %v399, %v403
        %v409 = vlaneseq
        %v410 = vand.u32 %v409, 127
        %v411 = vlaneseq
        %v412 = vshrl.u32 %v411, 7
        %v413 = vsub.s32 %v410, %v412
        %v414 = vrot.slane %v405, %v413
        %v415 = vlaneseq
        %v416 = vshrl.u32 %v415, 7
        %v417 = vsub.s32 %v410, %v416
        %v418 = vrot.slane %v406, %v417
        %vm419 = vcmask 1041409
        %v420 = vsel %vm419, %v418, %v414
        %vm422 = vcmask 58368
        %v423 = vsel %vm422, %v420, -inf
        %424 = vmax.xlane.f32.xlu0 %v423
        %v425 = vpop.xlane.xlu0 %424
        %v427 = vlaneseq
        %v428 = vshrl.u32 %v427, 7
        %v429 = vsub.s32 0, %v428
        %v430 = vrot.slane %v425, %v429
        %v431 = vlaneseq
        %v432 = vshrl.u32 %v431, 7
        %v433 = vsub.s32 1, %v432
        %v434 = vrot.slane %v425, %v433
        %v437 = vsub.f32 %v405, %v430
        %v438 = vsub.f32 %v406, %v434
        %v439 = vmul.f32 %v437, 1.442695
        %v440 = vpow.pop %v439
        %v441 = vmul.f32 %v438, 1.442695
        %v442 = vpow.pop %v441
        %445 = vset.pattern.permute.xlu0 0
        %446 = vperm.xlu0 %445, %v440
        %v447 = vpop.permute.xlu0 %446
        %448 = vset.pattern.permute.xlu0 0
        %449 = vperm.xlu0 %448, %v442
        %v450 = vpop.permute.xlu0 %449
        %v451 = vlaneseq
        %v452 = vshrl.u32 %v451, 7
        %v453 = vsub.s32 %v410, %v452
        %v454 = vrot.slane %v447, %v453
        %v455 = vlaneseq
        %v456 = vshrl.u32 %v455, 7
        %v457 = vsub.s32 %v410, %v456
        %v458 = vrot.slane %v450, %v457
        %v459 = vsel %vm419, %v458, %v454
        %v461 = vsel %vm422, %v459, 0.0
        %462 = vadd.xlane.f32.xlu0 %v461
        %v463 = vpop.xlane.xlu0 %462
        %v465 = vlaneseq
        %v466 = vshrl.u32 %v465, 7
        %v467 = vsub.s32 0, %v466
        %v468 = vrot.slane %v463, %v467
        %v469 = vlaneseq
        %v470 = vshrl.u32 %v469, 7
        %v471 = vsub.s32 1, %v470
        %v472 = vrot.slane %v463, %v471
        %v475 = vrcp.pop %v468
        %v476 = vmul.f32 %v440, %v475
        %v477 = vrcp.pop %v472
        %v478 = vmul.f32 %v442, %v477
        %480 = vset.pattern.permute.xlu0 0
        %481 = vperm.xlu0 %480, %v476
        %v482 = vpop.permute.xlu0 %481
        %485 = vset.pattern.permute.xlu0 0
        %486 = vperm.xlu0 %485, %v478
        %v487 = vpop.permute.xlu0 %486
        %v489 = vmul.f32 %v482, %v372
        %v490 = vmul.f32 %v487, %v373
        %v491 = vrot.slane %v489, 4
        %v492 = vadd.f32 %v489, %v491
        %v493 = vrot.slane %v492, 2
        %v494 = vadd.f32 %v492, %v493
        %v495 = vrot.slane %v494, 1
        %v496 = vadd.f32 %v494, %v495
        %v497 = vrot.slane %v490, 4
        %v498 = vadd.f32 %v490, %v497
        %v499 = vrot.slane %v498, 2
        %v500 = vadd.f32 %v498, %v499
        %v501 = vrot.slane %v500, 1
        %v502 = vadd.f32 %v500, %v501
        %v503 = vpack.c.bf16 %v496, %v496
        %v504 = vpack.c.bf16 %v502, %v502
        %v505 = vld [vmem:[%s301] sm:$0xff]
        %v506 = vld [vmem:[%s301 + $0x8] sm:$0xff]
        %v507 = vld [vmem:[%s301 + $0x10] sm:$0xff]
        %v508 = vld [vmem:[%s301 + $0x18] sm:$0xff]
        %v509 = vld [vmem:[%s301 + $0x20] sm:$0xff]
        %v510 = vld [vmem:[%s301 + $0x28] sm:$0xff]
        %v511 = vld [vmem:[%s301 + $0x30] sm:$0xff]
        %v512 = vld [vmem:[%s301 + $0x38] sm:$0xff]
        %v513 = vld [vmem:[%s301 + $0x40] sm:$0xff]
        %v514 = vld [vmem:[%s301 + $0x48] sm:$0xff]
        %v515 = vld [vmem:[%s301 + $0x50] sm:$0xff]
        %v516 = vld [vmem:[%s301 + $0x58] sm:$0xff]
        %v517 = vld [vmem:[%s301 + $0x60] sm:$0xff]
        %v518 = vld [vmem:[%s301 + $0x68] sm:$0xff]
        %v519 = vld [vmem:[%s301 + $0x70] sm:$0xff]
        %v520 = vld [vmem:[%s301 + $0x78] sm:$0xff]
        %v521 = vld [vmem:[%s301 + $0x80] sm:$0xff]
        %v522 = vld [vmem:[%s301 + $0x88] sm:$0xff]
        %v523 = vld [vmem:[%s301 + $0x90] sm:$0xff]
        %v524 = vld [vmem:[%s301 + $0x98] sm:$0xff]
        %v525 = vld [vmem:[%s301 + $0xa0] sm:$0xff]
        %v526 = vld [vmem:[%s301 + $0xa8] sm:$0xff]
        %v527 = vld [vmem:[%s301 + $0xb0] sm:$0xff]
        %v528 = vld [vmem:[%s301 + $0xb8] sm:$0xff]
        %v529 = vld [vmem:[%s301 + $0xc0] sm:$0xff]
        %v530 = vld [vmem:[%s301 + $0xc8] sm:$0xff]
        %v531 = vld [vmem:[%s301 + $0xd0] sm:$0xff]
        %v532 = vld [vmem:[%s301 + $0xd8] sm:$0xff]
        %v533 = vld [vmem:[%s301 + $0xe0] sm:$0xff]
        %v534 = vld [vmem:[%s301 + $0xe8] sm:$0xff]
        %v535 = vld [vmem:[%s301 + $0xf0] sm:$0xff]
        %v536 = vld [vmem:[%s301 + $0xf8] sm:$0xff]
        %v537 = vld [vmem:[%s301 + $0x100] sm:$0xff]
        %v538 = vld [vmem:[%s301 + $0x108] sm:$0xff]
        %v539 = vld [vmem:[%s301 + $0x110] sm:$0xff]
        %v540 = vld [vmem:[%s301 + $0x118] sm:$0xff]
        %v541 = vld [vmem:[%s301 + $0x120] sm:$0xff]
        %v542 = vld [vmem:[%s301 + $0x128] sm:$0xff]
        %v543 = vld [vmem:[%s301 + $0x130] sm:$0xff]
        %v544 = vld [vmem:[%s301 + $0x138] sm:$0xff]
        %v545 = vld [vmem:[%s301 + $0x140] sm:$0xff]
        %v546 = vld [vmem:[%s301 + $0x148] sm:$0xff]
        %v547 = vld [vmem:[%s301 + $0x150] sm:$0xff]
        %v548 = vld [vmem:[%s301 + $0x158] sm:$0xff]
        %v549 = vld [vmem:[%s301 + $0x160] sm:$0xff]
        %v550 = vld [vmem:[%s301 + $0x168] sm:$0xff]
        %v551 = vld [vmem:[%s301 + $0x170] sm:$0xff]
        %v552 = vld [vmem:[%s301 + $0x178] sm:$0xff]
        %v553 = vld [vmem:[%s301 + $0x180] sm:$0xff]
        %v554 = vld [vmem:[%s301 + $0x188] sm:$0xff]
        %v555 = vld [vmem:[%s301 + $0x190] sm:$0xff]
        %v556 = vld [vmem:[%s301 + $0x198] sm:$0xff]
        %v557 = vld [vmem:[%s301 + $0x1a0] sm:$0xff]
        %v558 = vld [vmem:[%s301 + $0x1a8] sm:$0xff]
        %v559 = vld [vmem:[%s301 + $0x1b0] sm:$0xff]
        %v560 = vld [vmem:[%s301 + $0x1b8] sm:$0xff]
        %v561 = vld [vmem:[%s301 + $0x1c0] sm:$0xff]
        %v562 = vld [vmem:[%s301 + $0x1c8] sm:$0xff]
        %v563 = vld [vmem:[%s301 + $0x1d0] sm:$0xff]
        %v564 = vld [vmem:[%s301 + $0x1d8] sm:$0xff]
        %v565 = vld [vmem:[%s301 + $0x1e0] sm:$0xff]
        %v566 = vld [vmem:[%s301 + $0x1e8] sm:$0xff]
        %v567 = vld [vmem:[%s301 + $0x1f0] sm:$0xff]
        %v568 = vld [vmem:[%s301 + $0x1f8] sm:$0xff]
        %v569 = vlaneseq
        %v570 = vshrl.u32 %v569, 7
        %v571 = vsub.s32 0, %v570
        %v572 = vrot.slane %v374, %v571
        %v573 = vlaneseq
        %v574 = vshrl.u32 %v573, 7
        %v575 = vsub.s32 0, %v574
        %v576 = vrot.slane %v375, %v575
        %v577 = vlaneseq
        %v578 = vshrl.u32 %v577, 7
        %v579 = vsub.s32 0, %v578
        %v580 = vrot.slane %v376, %v579
        %v581 = vlaneseq
        %v582 = vshrl.u32 %v581, 7
        %v583 = vsub.s32 0, %v582
        %v584 = vrot.slane %v377, %v583
        %v585 = vlaneseq
        %v586 = vshrl.u32 %v585, 7
        %v587 = vsub.s32 0, %v586
        %v588 = vrot.slane %v378, %v587
        %v589 = vlaneseq
        %v590 = vshrl.u32 %v589, 7
        %v591 = vsub.s32 0, %v590
        %v592 = vrot.slane %v379, %v591
        %v593 = vlaneseq
        %v594 = vshrl.u32 %v593, 7
        %v595 = vsub.s32 0, %v594
        %v596 = vrot.slane %v380, %v595
        %v597 = vlaneseq
        %v598 = vshrl.u32 %v597, 7
        %v599 = vsub.s32 0, %v598
        %v600 = vrot.slane %v381, %v599
        %v603 = vunpack.c.l.b16 %v503
        %v604 = vunpack.c.l.b16 %v504
        %v605 = vsel %vm419, %v604, %v603
        %v606 = vpack.c.b16 %v605, %v605
        %v672 = vunpack.c.l.b16 %v505
        %v673 = vunpack.c.h.b16 %v505
        %v674 = vunpack.c.l.b16 %v506
        %v675 = vunpack.c.h.b16 %v506
        %v676 = vunpack.c.l.b16 %v507
        %v677 = vunpack.c.h.b16 %v507
        %v678 = vunpack.c.l.b16 %v508
        %v679 = vunpack.c.h.b16 %v508
        %v680 = vunpack.c.l.b16 %v509
        %v681 = vunpack.c.h.b16 %v509
        %v682 = vunpack.c.l.b16 %v510
        %v683 = vunpack.c.h.b16 %v510
        %v684 = vunpack.c.l.b16 %v511
        %v685 = vunpack.c.h.b16 %v511
        %v686 = vunpack.c.l.b16 %v512
        %v687 = vunpack.c.h.b16 %v512
        %v688 = vunpack.c.l.b16 %v513
        %v689 = vunpack.c.h.b16 %v513
        %v690 = vunpack.c.l.b16 %v514
        %v691 = vunpack.c.h.b16 %v514
        %v692 = vunpack.c.l.b16 %v515
        %v693 = vunpack.c.h.b16 %v515
        %v694 = vunpack.c.l.b16 %v516
        %v695 = vunpack.c.h.b16 %v516
        %v696 = vunpack.c.l.b16 %v517
        %v697 = vunpack.c.h.b16 %v517
        %v698 = vunpack.c.l.b16 %v518
        %v699 = vunpack.c.h.b16 %v518
        %v700 = vunpack.c.l.b16 %v519
        %v701 = vunpack.c.h.b16 %v519
        %v702 = vunpack.c.l.b16 %v520
        %v703 = vunpack.c.h.b16 %v520
        %v704 = vunpack.c.l.b16 %v521
        %v705 = vunpack.c.h.b16 %v521
        %v706 = vunpack.c.l.b16 %v522
        %v707 = vunpack.c.h.b16 %v522
        %v708 = vunpack.c.l.b16 %v523
        %v709 = vunpack.c.h.b16 %v523
        %v710 = vunpack.c.l.b16 %v524
        %v711 = vunpack.c.h.b16 %v524
        %v712 = vunpack.c.l.b16 %v525
        %v713 = vunpack.c.h.b16 %v525
        %v714 = vunpack.c.l.b16 %v526
        %v715 = vunpack.c.h.b16 %v526
        %v716 = vunpack.c.l.b16 %v527
        %v717 = vunpack.c.h.b16 %v527
        %v718 = vunpack.c.l.b16 %v528
        %v719 = vunpack.c.h.b16 %v528
        %v720 = vunpack.c.l.b16 %v529
        %v721 = vunpack.c.h.b16 %v529
        %v722 = vunpack.c.l.b16 %v530
        %v723 = vunpack.c.h.b16 %v530
        %v724 = vunpack.c.l.b16 %v531
        %v725 = vunpack.c.h.b16 %v531
        %v726 = vunpack.c.l.b16 %v532
        %v727 = vunpack.c.h.b16 %v532
        %v728 = vunpack.c.l.b16 %v533
        %v729 = vunpack.c.h.b16 %v533
        %v730 = vunpack.c.l.b16 %v534
        %v731 = vunpack.c.h.b16 %v534
        %v732 = vunpack.c.l.b16 %v535
        %v733 = vunpack.c.h.b16 %v535
        %v734 = vunpack.c.l.b16 %v536
        %v735 = vunpack.c.h.b16 %v536
        %v736 = vunpack.c.l.b16 %v537
        %v737 = vunpack.c.h.b16 %v537
        %v738 = vunpack.c.l.b16 %v538
        %v739 = vunpack.c.h.b16 %v538
        %v740 = vunpack.c.l.b16 %v539
        %v741 = vunpack.c.h.b16 %v539
        %v742 = vunpack.c.l.b16 %v540
        %v743 = vunpack.c.h.b16 %v540
        %v744 = vunpack.c.l.b16 %v541
        %v745 = vunpack.c.h.b16 %v541
        %v746 = vunpack.c.l.b16 %v542
        %v747 = vunpack.c.h.b16 %v542
        %v748 = vunpack.c.l.b16 %v543
        %v749 = vunpack.c.h.b16 %v543
        %v750 = vunpack.c.l.b16 %v544
        %v751 = vunpack.c.h.b16 %v544
        %v752 = vunpack.c.l.b16 %v545
        %v753 = vunpack.c.h.b16 %v545
        %v754 = vunpack.c.l.b16 %v546
        %v755 = vunpack.c.h.b16 %v546
        %v756 = vunpack.c.l.b16 %v547
        %v757 = vunpack.c.h.b16 %v547
        %v758 = vunpack.c.l.b16 %v548
        %v759 = vunpack.c.h.b16 %v548
        %v760 = vunpack.c.l.b16 %v549
        %v761 = vunpack.c.h.b16 %v549
        %v762 = vunpack.c.l.b16 %v550
        %v763 = vunpack.c.h.b16 %v550
        %v764 = vunpack.c.l.b16 %v551
        %v765 = vunpack.c.h.b16 %v551
        %v766 = vunpack.c.l.b16 %v552
        %v767 = vunpack.c.h.b16 %v552
        %v768 = vunpack.c.l.b16 %v553
        %v769 = vunpack.c.h.b16 %v553
        %v770 = vunpack.c.l.b16 %v554
        %v771 = vunpack.c.h.b16 %v554
        %v772 = vunpack.c.l.b16 %v555
        %v773 = vunpack.c.h.b16 %v555
        %v774 = vunpack.c.l.b16 %v556
        %v775 = vunpack.c.h.b16 %v556
        %v776 = vunpack.c.l.b16 %v557
        %v777 = vunpack.c.h.b16 %v557
        %v778 = vunpack.c.l.b16 %v558
        %v779 = vunpack.c.h.b16 %v558
        %v780 = vunpack.c.l.b16 %v559
        %v781 = vunpack.c.h.b16 %v559
        %v782 = vunpack.c.l.b16 %v560
        %v783 = vunpack.c.h.b16 %v560
        %v784 = vunpack.c.l.b16 %v561
        %v785 = vunpack.c.h.b16 %v561
        %v786 = vunpack.c.l.b16 %v562
        %v787 = vunpack.c.h.b16 %v562
        %v788 = vunpack.c.l.b16 %v563
        %v789 = vunpack.c.h.b16 %v563
        %v790 = vunpack.c.l.b16 %v564
        %v791 = vunpack.c.h.b16 %v564
        %v792 = vunpack.c.l.b16 %v565
        %v793 = vunpack.c.h.b16 %v565
        %v794 = vunpack.c.l.b16 %v566
        %v795 = vunpack.c.h.b16 %v566
        %v796 = vunpack.c.l.b16 %v567
        %v797 = vunpack.c.h.b16 %v567
        %v798 = vunpack.c.l.b16 %v568
        %v799 = vunpack.c.h.b16 %v568
        %v800 = vpack.c.b16 %v680, %v672
        %v801 = vpack.c.b16 %v681, %v673
        %v802 = vpack.c.b16 %v682, %v674
        %v803 = vpack.c.b16 %v683, %v675
        %v804 = vpack.c.b16 %v684, %v676
        %v805 = vpack.c.b16 %v685, %v677
        %v806 = vpack.c.b16 %v686, %v678
        %v807 = vpack.c.b16 %v687, %v679
        %v808 = vpack.c.b16 %v696, %v688
        %v809 = vpack.c.b16 %v697, %v689
        %v810 = vpack.c.b16 %v698, %v690
        %v811 = vpack.c.b16 %v699, %v691
        %v812 = vpack.c.b16 %v700, %v692
        %v813 = vpack.c.b16 %v701, %v693
        %v814 = vpack.c.b16 %v702, %v694
        %v815 = vpack.c.b16 %v703, %v695
        %v816 = vpack.c.b16 %v712, %v704
        %v817 = vpack.c.b16 %v713, %v705
        %v818 = vpack.c.b16 %v714, %v706
        %v819 = vpack.c.b16 %v715, %v707
        %v820 = vpack.c.b16 %v716, %v708
        %v821 = vpack.c.b16 %v717, %v709
        %v822 = vpack.c.b16 %v718, %v710
        %v823 = vpack.c.b16 %v719, %v711
        %v824 = vpack.c.b16 %v728, %v720
        %v825 = vpack.c.b16 %v729, %v721
        %v826 = vpack.c.b16 %v730, %v722
        %v827 = vpack.c.b16 %v731, %v723
        %v828 = vpack.c.b16 %v732, %v724
        %v829 = vpack.c.b16 %v733, %v725
        %v830 = vpack.c.b16 %v734, %v726
        %v831 = vpack.c.b16 %v735, %v727
        %v832 = vpack.c.b16 %v744, %v736
        %v833 = vpack.c.b16 %v745, %v737
        %v834 = vpack.c.b16 %v746, %v738
        %v835 = vpack.c.b16 %v747, %v739
        %v836 = vpack.c.b16 %v748, %v740
        %v837 = vpack.c.b16 %v749, %v741
        %v838 = vpack.c.b16 %v750, %v742
        %v839 = vpack.c.b16 %v751, %v743
        %v840 = vpack.c.b16 %v760, %v752
        %v841 = vpack.c.b16 %v761, %v753
        %v842 = vpack.c.b16 %v762, %v754
        %v843 = vpack.c.b16 %v763, %v755
        %v844 = vpack.c.b16 %v764, %v756
        %v845 = vpack.c.b16 %v765, %v757
        %v846 = vpack.c.b16 %v766, %v758
        %v847 = vpack.c.b16 %v767, %v759
        %v848 = vpack.c.b16 %v776, %v768
        %v849 = vpack.c.b16 %v777, %v769
        %v850 = vpack.c.b16 %v778, %v770
        %v851 = vpack.c.b16 %v779, %v771
        %v852 = vpack.c.b16 %v780, %v772
        %v853 = vpack.c.b16 %v781, %v773
        %v854 = vpack.c.b16 %v782, %v774
        %v855 = vpack.c.b16 %v783, %v775
        %v856 = vpack.c.b16 %v792, %v784
        %v857 = vpack.c.b16 %v793, %v785
        %v858 = vpack.c.b16 %v794, %v786
        %v859 = vpack.c.b16 %v795, %v787
        %v860 = vpack.c.b16 %v796, %v788
        %v861 = vpack.c.b16 %v797, %v789
        %v862 = vpack.c.b16 %v798, %v790
        %v863 = vpack.c.b16 %v799, %v791
        %928 = vmatprep.subr.bf16.mxu0 %v857
        %929 = vmatpush1.bf16.msra.mxu0 %v856
        %930 = vmatprep.subr.bf16.mxu0 %v849
        %931 = vmatpush1.bf16.msra.mxu0 %v848
        %932 = vmatprep.subr.bf16.mxu0 %v841
        %933 = vmatpush1.bf16.msra.mxu0 %v840
        %934 = vmatprep.subr.bf16.mxu0 %v833
        %935 = vmatpush1.bf16.msra.mxu0 %v832
        %936 = vmatprep.subr.bf16.mxu0 %v825
        %937 = vmatpush1.bf16.msra.mxu0 %v824
        %938 = vmatprep.subr.bf16.mxu0 %v817
        %939 = vmatpush1.bf16.msra.mxu0 %v816
        %940 = vmatprep.subr.bf16.mxu0 %v809
        %941 = vmatpush1.bf16.msra.mxu0 %v808
        %942 = vmatprep.subr.bf16.mxu0 %v801
        %943 = vmatpush1.bf16.msra.mxu0 %v800
        %944 = vmatprep.subr.bf16.mxu0 0
        %945 = vmatpush2.bf16.msra.mxu0 0
        %946 = vmatprep.subr.bf16.mxu0 0
        %947 = vmatpush2.bf16.msra.mxu0 0
        %948 = vmatprep.subr.bf16.mxu0 0
        %949 = vmatpush2.bf16.msra.mxu0 0
        %950 = vmatprep.subr.bf16.mxu0 0
        %951 = vmatpush2.bf16.msra.mxu0 0
        %952 = vmatprep.subr.bf16.mxu0 0
        %953 = vmatpush2.bf16.msra.mxu0 0
        %954 = vmatprep.subr.bf16.mxu0 0
        %955 = vmatpush2.bf16.msra.mxu0 0
        %956 = vmatprep.subr.bf16.mxu0 0
        %957 = vmatpush2.bf16.msra.mxu0 0
        %958 = vmatprep.subr.bf16.mxu0 0
        %959 = vmatpush2.bf16.msra.mxu0 0
        %960 = vmatprep.mubr.bf16.mxu0 0
        %961 = vmatmul.mubr.bf16.gmra.mxu0 %v606
        %v962 = vpop.f32.mrf.mxu0
        %v963 = vadd.f32 %v572, %v962
        %v964 = vpop.f32.mrf.mxu0
        %v965 = vadd.f32 %v576, %v964
        %v966 = vpop.f32.mrf.mxu0
        %v967 = vpop.f32.mrf.mxu0
        %968 = vdwg.mxu0
        %969 = vmatprep.subr.bf16.mxu0 %v859
        %970 = vmatpush1.bf16.msra.mxu0 %v858
        %971 = vmatprep.subr.bf16.mxu0 %v851
        %972 = vmatpush1.bf16.msra.mxu0 %v850
        %973 = vmatprep.subr.bf16.mxu0 %v843
        %974 = vmatpush1.bf16.msra.mxu0 %v842
        %975 = vmatprep.subr.bf16.mxu0 %v835
        %976 = vmatpush1.bf16.msra.mxu0 %v834
        %977 = vmatprep.subr.bf16.mxu0 %v827
        %978 = vmatpush1.bf16.msra.mxu0 %v826
        %979 = vmatprep.subr.bf16.mxu0 %v819
        %980 = vmatpush1.bf16.msra.mxu0 %v818
        %981 = vmatprep.subr.bf16.mxu0 %v811
        %982 = vmatpush1.bf16.msra.mxu0 %v810
        %983 = vmatprep.subr.bf16.mxu0 %v803
        %984 = vmatpush1.bf16.msra.mxu0 %v802
        %985 = vmatprep.subr.bf16.mxu0 0
        %986 = vmatpush2.bf16.msra.mxu0 0
        %987 = vmatprep.subr.bf16.mxu0 0
        %988 = vmatpush2.bf16.msra.mxu0 0
        %989 = vmatprep.subr.bf16.mxu0 0
        %990 = vmatpush2.bf16.msra.mxu0 0
        %991 = vmatprep.subr.bf16.mxu0 0
        %992 = vmatpush2.bf16.msra.mxu0 0
        %993 = vmatprep.subr.bf16.mxu0 0
        %994 = vmatpush2.bf16.msra.mxu0 0
        %995 = vmatprep.subr.bf16.mxu0 0
        %996 = vmatpush2.bf16.msra.mxu0 0
        %997 = vmatprep.subr.bf16.mxu0 0
        %998 = vmatpush2.bf16.msra.mxu0 0
        %999 = vmatprep.subr.bf16.mxu0 0
        %1000 = vmatpush2.bf16.msra.mxu0 0
        %1001 = vmatprep.mubr.bf16.mxu0 0
        %1002 = vmatmul.mubr.bf16.gmra.mxu0 %v606
        %v1003 = vpop.f32.mrf.mxu0
        %v1004 = vadd.f32 %v580, %v1003
        %v1005 = vpop.f32.mrf.mxu0
        %v1006 = vadd.f32 %v584, %v1005
        %v1007 = vpop.f32.mrf.mxu0
        %v1008 = vpop.f32.mrf.mxu0
        %1009 = vdwg.mxu0
        %1010 = vmatprep.subr.bf16.mxu0 %v861
        %1011 = vmatpush1.bf16.msra.mxu0 %v860
        %1012 = vmatprep.subr.bf16.mxu0 %v853
        %1013 = vmatpush1.bf16.msra.mxu0 %v852
        %1014 = vmatprep.subr.bf16.mxu0 %v845
        %1015 = vmatpush1.bf16.msra.mxu0 %v844
        %1016 = vmatprep.subr.bf16.mxu0 %v837
        %1017 = vmatpush1.bf16.msra.mxu0 %v836
        %1018 = vmatprep.subr.bf16.mxu0 %v829
        %1019 = vmatpush1.bf16.msra.mxu0 %v828
        %1020 = vmatprep.subr.bf16.mxu0 %v821
        %1021 = vmatpush1.bf16.msra.mxu0 %v820
        %1022 = vmatprep.subr.bf16.mxu0 %v813
        %1023 = vmatpush1.bf16.msra.mxu0 %v812
        %1024 = vmatprep.subr.bf16.mxu0 %v805
        %1025 = vmatpush1.bf16.msra.mxu0 %v804
        %1026 = vmatprep.subr.bf16.mxu0 0
        %1027 = vmatpush2.bf16.msra.mxu0 0
        %1028 = vmatprep.subr.bf16.mxu0 0
        %1029 = vmatpush2.bf16.msra.mxu0 0
        %1030 = vmatprep.subr.bf16.mxu0 0
        %1031 = vmatpush2.bf16.msra.mxu0 0
        %1032 = vmatprep.subr.bf16.mxu0 0
        %1033 = vmatpush2.bf16.msra.mxu0 0
        %1034 = vmatprep.subr.bf16.mxu0 0
        %1035 = vmatpush2.bf16.msra.mxu0 0
        %1036 = vmatprep.subr.bf16.mxu0 0
        %1037 = vmatpush2.bf16.msra.mxu0 0
        %1038 = vmatprep.subr.bf16.mxu0 0
        %1039 = vmatpush2.bf16.msra.mxu0 0
        %1040 = vmatprep.subr.bf16.mxu0 0
        %1041 = vmatpush2.bf16.msra.mxu0 0
        %1042 = vmatprep.mubr.bf16.mxu0 0
        %1043 = vmatmul.mubr.bf16.gmra.mxu0 %v606
        %v1044 = vpop.f32.mrf.mxu0
        %v1045 = vadd.f32 %v588, %v1044
        %v1046 = vpop.f32.mrf.mxu0
        %v1047 = vadd.f32 %v592, %v1046
        %v1048 = vpop.f32.mrf.mxu0
        %v1049 = vpop.f32.mrf.mxu0
        %1050 = vdwg.mxu0
        %1051 = vmatprep.subr.bf16.mxu0 %v863
        %1052 = vmatpush1.bf16.msra.mxu0 %v862
        %1053 = vmatprep.subr.bf16.mxu0 %v855
        %1054 = vmatpush1.bf16.msra.mxu0 %v854
        %1055 = vmatprep.subr.bf16.mxu0 %v847
        %1056 = vmatpush1.bf16.msra.mxu0 %v846
        %1057 = vmatprep.subr.bf16.mxu0 %v839
        %1058 = vmatpush1.bf16.msra.mxu0 %v838
        %1059 = vmatprep.subr.bf16.mxu0 %v831
        %1060 = vmatpush1.bf16.msra.mxu0 %v830
        %1061 = vmatprep.subr.bf16.mxu0 %v823
        %1062 = vmatpush1.bf16.msra.mxu0 %v822
        %1063 = vmatprep.subr.bf16.mxu0 %v815
        %1064 = vmatpush1.bf16.msra.mxu0 %v814
        %1065 = vmatprep.subr.bf16.mxu0 %v807
        %1066 = vmatpush1.bf16.msra.mxu0 %v806
        %1067 = vmatprep.subr.bf16.mxu0 0
        %1068 = vmatpush2.bf16.msra.mxu0 0
        %1069 = vmatprep.subr.bf16.mxu0 0
        %1070 = vmatpush2.bf16.msra.mxu0 0
        %1071 = vmatprep.subr.bf16.mxu0 0
        %1072 = vmatpush2.bf16.msra.mxu0 0
        %1073 = vmatprep.subr.bf16.mxu0 0
        %1074 = vmatpush2.bf16.msra.mxu0 0
        %1075 = vmatprep.subr.bf16.mxu0 0
        %1076 = vmatpush2.bf16.msra.mxu0 0
        %1077 = vmatprep.subr.bf16.mxu0 0
        %1078 = vmatpush2.bf16.msra.mxu0 0
        %1079 = vmatprep.subr.bf16.mxu0 0
        %1080 = vmatpush2.bf16.msra.mxu0 0
        %1081 = vmatprep.subr.bf16.mxu0 0
        %1082 = vmatpush2.bf16.msra.mxu0 0
        %1083 = vmatprep.mubr.bf16.mxu0 0
        %1084 = vmatmul.mubr.bf16.gmra.mxu0 %v606
        %v1085 = vpop.f32.mrf.mxu0
        %v1086 = vadd.f32 %v596, %v1085
        %v1087 = vpop.f32.mrf.mxu0
        %v1088 = vadd.f32 %v600, %v1087
        %v1089 = vpop.f32.mrf.mxu0
        %v1090 = vpop.f32.mrf.mxu0
        %1091 = vdwg.mxu0
        %v1092 = vmax.f32 %v963, 0.0
        %v1093 = vmax.f32 %v965, 0.0
        %v1094 = vmax.f32 %v1004, 0.0
        %v1095 = vmax.f32 %v1006, 0.0
        %v1096 = vmax.f32 %v1045, 0.0
        %v1097 = vmax.f32 %v1047, 0.0
        %v1098 = vmax.f32 %v1086, 0.0
        %v1099 = vmax.f32 %v1088, 0.0
        %v1100 = vpack.c.bf16 %v1092, %v1092
        %v1101 = vpack.c.bf16 %v1093, %v1093
        %v1102 = vpack.c.bf16 %v1094, %v1094
        %v1103 = vpack.c.bf16 %v1095, %v1095
        %v1104 = vpack.c.bf16 %v1096, %v1096
        %v1105 = vpack.c.bf16 %v1097, %v1097
        %v1106 = vpack.c.bf16 %v1098, %v1098
        %v1107 = vpack.c.bf16 %v1099, %v1099
        %v1108 = vld [vmem:[%s310] sm:$0xff]
        %v1109 = vld [vmem:[%s310 + $0x8] sm:$0xff]
        %v1110 = vld [vmem:[%s310 + $0x10] sm:$0xff]
        %v1111 = vld [vmem:[%s310 + $0x18] sm:$0xff]
        %v1112 = vld [vmem:[%s310 + $0x20] sm:$0xff]
        %v1113 = vld [vmem:[%s310 + $0x28] sm:$0xff]
        %v1114 = vld [vmem:[%s310 + $0x30] sm:$0xff]
        %v1115 = vld [vmem:[%s310 + $0x38] sm:$0xff]
        %v1116 = vld [vmem:[%s310 + $0x40] sm:$0xff]
        %v1117 = vld [vmem:[%s310 + $0x48] sm:$0xff]
        %v1118 = vld [vmem:[%s310 + $0x50] sm:$0xff]
        %v1119 = vld [vmem:[%s310 + $0x58] sm:$0xff]
        %v1120 = vld [vmem:[%s310 + $0x60] sm:$0xff]
        %v1121 = vld [vmem:[%s310 + $0x68] sm:$0xff]
        %v1122 = vld [vmem:[%s310 + $0x70] sm:$0xff]
        %v1123 = vld [vmem:[%s310 + $0x78] sm:$0xff]
        %v1124 = vld [vmem:[%s310 + $0x80] sm:$0xff]
        %v1125 = vld [vmem:[%s310 + $0x88] sm:$0xff]
        %v1126 = vld [vmem:[%s310 + $0x90] sm:$0xff]
        %v1127 = vld [vmem:[%s310 + $0x98] sm:$0xff]
        %v1128 = vld [vmem:[%s310 + $0xa0] sm:$0xff]
        %v1129 = vld [vmem:[%s310 + $0xa8] sm:$0xff]
        %v1130 = vld [vmem:[%s310 + $0xb0] sm:$0xff]
        %v1131 = vld [vmem:[%s310 + $0xb8] sm:$0xff]
        %v1132 = vld [vmem:[%s310 + $0xc0] sm:$0xff]
        %v1133 = vld [vmem:[%s310 + $0xc8] sm:$0xff]
        %v1134 = vld [vmem:[%s310 + $0xd0] sm:$0xff]
        %v1135 = vld [vmem:[%s310 + $0xd8] sm:$0xff]
        %v1136 = vld [vmem:[%s310 + $0xe0] sm:$0xff]
        %v1137 = vld [vmem:[%s310 + $0xe8] sm:$0xff]
        %v1138 = vld [vmem:[%s310 + $0xf0] sm:$0xff]
        %v1139 = vld [vmem:[%s310 + $0xf8] sm:$0xff]
        %v1140 = vld [vmem:[%s310 + $0x100] sm:$0xff]
        %v1141 = vld [vmem:[%s310 + $0x108] sm:$0xff]
        %v1142 = vld [vmem:[%s310 + $0x110] sm:$0xff]
        %v1143 = vld [vmem:[%s310 + $0x118] sm:$0xff]
        %v1144 = vld [vmem:[%s310 + $0x120] sm:$0xff]
        %v1145 = vld [vmem:[%s310 + $0x128] sm:$0xff]
        %v1146 = vld [vmem:[%s310 + $0x130] sm:$0xff]
        %v1147 = vld [vmem:[%s310 + $0x138] sm:$0xff]
        %v1148 = vld [vmem:[%s310 + $0x140] sm:$0xff]
        %v1149 = vld [vmem:[%s310 + $0x148] sm:$0xff]
        %v1150 = vld [vmem:[%s310 + $0x150] sm:$0xff]
        %v1151 = vld [vmem:[%s310 + $0x158] sm:$0xff]
        %v1152 = vld [vmem:[%s310 + $0x160] sm:$0xff]
        %v1153 = vld [vmem:[%s310 + $0x168] sm:$0xff]
        %v1154 = vld [vmem:[%s310 + $0x170] sm:$0xff]
        %v1155 = vld [vmem:[%s310 + $0x178] sm:$0xff]
        %v1156 = vld [vmem:[%s310 + $0x180] sm:$0xff]
        %v1157 = vld [vmem:[%s310 + $0x188] sm:$0xff]
        %v1158 = vld [vmem:[%s310 + $0x190] sm:$0xff]
        %v1159 = vld [vmem:[%s310 + $0x198] sm:$0xff]
        %v1160 = vld [vmem:[%s310 + $0x1a0] sm:$0xff]
        %v1161 = vld [vmem:[%s310 + $0x1a8] sm:$0xff]
        %v1162 = vld [vmem:[%s310 + $0x1b0] sm:$0xff]
        %v1163 = vld [vmem:[%s310 + $0x1b8] sm:$0xff]
        %v1164 = vld [vmem:[%s310 + $0x1c0] sm:$0xff]
        %v1165 = vld [vmem:[%s310 + $0x1c8] sm:$0xff]
        %v1166 = vld [vmem:[%s310 + $0x1d0] sm:$0xff]
        %v1167 = vld [vmem:[%s310 + $0x1d8] sm:$0xff]
        %v1168 = vld [vmem:[%s310 + $0x1e0] sm:$0xff]
        %v1169 = vld [vmem:[%s310 + $0x1e8] sm:$0xff]
        %v1170 = vld [vmem:[%s310 + $0x1f0] sm:$0xff]
        %v1171 = vld [vmem:[%s310 + $0x1f8] sm:$0xff]
        %v1172 = vld [vmem:[%s310 + $0x200] sm:$0xff]
        %v1173 = vld [vmem:[%s310 + $0x208] sm:$0xff]
        %v1174 = vld [vmem:[%s310 + $0x210] sm:$0xff]
        %v1175 = vld [vmem:[%s310 + $0x218] sm:$0xff]
        %v1176 = vld [vmem:[%s310 + $0x220] sm:$0xff]
        %v1177 = vld [vmem:[%s310 + $0x228] sm:$0xff]
        %v1178 = vld [vmem:[%s310 + $0x230] sm:$0xff]
        %v1179 = vld [vmem:[%s310 + $0x238] sm:$0xff]
        %v1180 = vld [vmem:[%s310 + $0x240] sm:$0xff]
        %v1181 = vld [vmem:[%s310 + $0x248] sm:$0xff]
        %v1182 = vld [vmem:[%s310 + $0x250] sm:$0xff]
        %v1183 = vld [vmem:[%s310 + $0x258] sm:$0xff]
        %v1184 = vld [vmem:[%s310 + $0x260] sm:$0xff]
        %v1185 = vld [vmem:[%s310 + $0x268] sm:$0xff]
        %v1186 = vld [vmem:[%s310 + $0x270] sm:$0xff]
        %v1187 = vld [vmem:[%s310 + $0x278] sm:$0xff]
        %v1188 = vld [vmem:[%s310 + $0x280] sm:$0xff]
        %v1189 = vld [vmem:[%s310 + $0x288] sm:$0xff]
        %v1190 = vld [vmem:[%s310 + $0x290] sm:$0xff]
        %v1191 = vld [vmem:[%s310 + $0x298] sm:$0xff]
        %v1192 = vld [vmem:[%s310 + $0x2a0] sm:$0xff]
        %v1193 = vld [vmem:[%s310 + $0x2a8] sm:$0xff]
        %v1194 = vld [vmem:[%s310 + $0x2b0] sm:$0xff]
        %v1195 = vld [vmem:[%s310 + $0x2b8] sm:$0xff]
        %v1196 = vld [vmem:[%s310 + $0x2c0] sm:$0xff]
        %v1197 = vld [vmem:[%s310 + $0x2c8] sm:$0xff]
        %v1198 = vld [vmem:[%s310 + $0x2d0] sm:$0xff]
        %v1199 = vld [vmem:[%s310 + $0x2d8] sm:$0xff]
        %v1200 = vld [vmem:[%s310 + $0x2e0] sm:$0xff]
        %v1201 = vld [vmem:[%s310 + $0x2e8] sm:$0xff]
        %v1202 = vld [vmem:[%s310 + $0x2f0] sm:$0xff]
        %v1203 = vld [vmem:[%s310 + $0x2f8] sm:$0xff]
        %v1204 = vld [vmem:[%s310 + $0x300] sm:$0xff]
        %v1205 = vld [vmem:[%s310 + $0x308] sm:$0xff]
        %v1206 = vld [vmem:[%s310 + $0x310] sm:$0xff]
        %v1207 = vld [vmem:[%s310 + $0x318] sm:$0xff]
        %v1208 = vld [vmem:[%s310 + $0x320] sm:$0xff]
        %v1209 = vld [vmem:[%s310 + $0x328] sm:$0xff]
        %v1210 = vld [vmem:[%s310 + $0x330] sm:$0xff]
        %v1211 = vld [vmem:[%s310 + $0x338] sm:$0xff]
        %v1212 = vld [vmem:[%s310 + $0x340] sm:$0xff]
        %v1213 = vld [vmem:[%s310 + $0x348] sm:$0xff]
        %v1214 = vld [vmem:[%s310 + $0x350] sm:$0xff]
        %v1215 = vld [vmem:[%s310 + $0x358] sm:$0xff]
        %v1216 = vld [vmem:[%s310 + $0x360] sm:$0xff]
        %v1217 = vld [vmem:[%s310 + $0x368] sm:$0xff]
        %v1218 = vld [vmem:[%s310 + $0x370] sm:$0xff]
        %v1219 = vld [vmem:[%s310 + $0x378] sm:$0xff]
        %v1220 = vld [vmem:[%s310 + $0x380] sm:$0xff]
        %v1221 = vld [vmem:[%s310 + $0x388] sm:$0xff]
        %v1222 = vld [vmem:[%s310 + $0x390] sm:$0xff]
        %v1223 = vld [vmem:[%s310 + $0x398] sm:$0xff]
        %v1224 = vld [vmem:[%s310 + $0x3a0] sm:$0xff]
        %v1225 = vld [vmem:[%s310 + $0x3a8] sm:$0xff]
        %v1226 = vld [vmem:[%s310 + $0x3b0] sm:$0xff]
        %v1227 = vld [vmem:[%s310 + $0x3b8] sm:$0xff]
        %v1228 = vld [vmem:[%s310 + $0x3c0] sm:$0xff]
        %v1229 = vld [vmem:[%s310 + $0x3c8] sm:$0xff]
        %v1230 = vld [vmem:[%s310 + $0x3d0] sm:$0xff]
        %v1231 = vld [vmem:[%s310 + $0x3d8] sm:$0xff]
        %v1232 = vld [vmem:[%s310 + $0x3e0] sm:$0xff]
        %v1233 = vld [vmem:[%s310 + $0x3e8] sm:$0xff]
        %v1234 = vld [vmem:[%s310 + $0x3f0] sm:$0xff]
        %v1235 = vld [vmem:[%s310 + $0x3f8] sm:$0xff]
        %v1236 = vld [vmem:[%s310 + $0x400] sm:$0xff]
        %v1237 = vld [vmem:[%s310 + $0x408] sm:$0xff]
        %v1238 = vld [vmem:[%s310 + $0x410] sm:$0xff]
        %v1239 = vld [vmem:[%s310 + $0x418] sm:$0xff]
        %v1240 = vld [vmem:[%s310 + $0x420] sm:$0xff]
        %v1241 = vld [vmem:[%s310 + $0x428] sm:$0xff]
        %v1242 = vld [vmem:[%s310 + $0x430] sm:$0xff]
        %v1243 = vld [vmem:[%s310 + $0x438] sm:$0xff]
        %v1244 = vld [vmem:[%s310 + $0x440] sm:$0xff]
        %v1245 = vld [vmem:[%s310 + $0x448] sm:$0xff]
        %v1246 = vld [vmem:[%s310 + $0x450] sm:$0xff]
        %v1247 = vld [vmem:[%s310 + $0x458] sm:$0xff]
        %v1248 = vld [vmem:[%s310 + $0x460] sm:$0xff]
        %v1249 = vld [vmem:[%s310 + $0x468] sm:$0xff]
        %v1250 = vld [vmem:[%s310 + $0x470] sm:$0xff]
        %v1251 = vld [vmem:[%s310 + $0x478] sm:$0xff]
        %v1252 = vld [vmem:[%s310 + $0x480] sm:$0xff]
        %v1253 = vld [vmem:[%s310 + $0x488] sm:$0xff]
        %v1254 = vld [vmem:[%s310 + $0x490] sm:$0xff]
        %v1255 = vld [vmem:[%s310 + $0x498] sm:$0xff]
        %v1256 = vld [vmem:[%s310 + $0x4a0] sm:$0xff]
        %v1257 = vld [vmem:[%s310 + $0x4a8] sm:$0xff]
        %v1258 = vld [vmem:[%s310 + $0x4b0] sm:$0xff]
        %v1259 = vld [vmem:[%s310 + $0x4b8] sm:$0xff]
        %v1260 = vld [vmem:[%s310 + $0x4c0] sm:$0xff]
        %v1261 = vld [vmem:[%s310 + $0x4c8] sm:$0xff]
        %v1262 = vld [vmem:[%s310 + $0x4d0] sm:$0xff]
        %v1263 = vld [vmem:[%s310 + $0x4d8] sm:$0xff]
        %v1264 = vld [vmem:[%s310 + $0x4e0] sm:$0xff]
        %v1265 = vld [vmem:[%s310 + $0x4e8] sm:$0xff]
        %v1266 = vld [vmem:[%s310 + $0x4f0] sm:$0xff]
        %v1267 = vld [vmem:[%s310 + $0x4f8] sm:$0xff]
        %v1268 = vld [vmem:[%s310 + $0x500] sm:$0xff]
        %v1269 = vld [vmem:[%s310 + $0x508] sm:$0xff]
        %v1270 = vld [vmem:[%s310 + $0x510] sm:$0xff]
        %v1271 = vld [vmem:[%s310 + $0x518] sm:$0xff]
        %v1272 = vld [vmem:[%s310 + $0x520] sm:$0xff]
        %v1273 = vld [vmem:[%s310 + $0x528] sm:$0xff]
        %v1274 = vld [vmem:[%s310 + $0x530] sm:$0xff]
        %v1275 = vld [vmem:[%s310 + $0x538] sm:$0xff]
        %v1276 = vld [vmem:[%s310 + $0x540] sm:$0xff]
        %v1277 = vld [vmem:[%s310 + $0x548] sm:$0xff]
        %v1278 = vld [vmem:[%s310 + $0x550] sm:$0xff]
        %v1279 = vld [vmem:[%s310 + $0x558] sm:$0xff]
        %v1280 = vld [vmem:[%s310 + $0x560] sm:$0xff]
        %v1281 = vld [vmem:[%s310 + $0x568] sm:$0xff]
        %v1282 = vld [vmem:[%s310 + $0x570] sm:$0xff]
        %v1283 = vld [vmem:[%s310 + $0x578] sm:$0xff]
        %v1284 = vld [vmem:[%s310 + $0x580] sm:$0xff]
        %v1285 = vld [vmem:[%s310 + $0x588] sm:$0xff]
        %v1286 = vld [vmem:[%s310 + $0x590] sm:$0xff]
        %v1287 = vld [vmem:[%s310 + $0x598] sm:$0xff]
        %v1288 = vld [vmem:[%s310 + $0x5a0] sm:$0xff]
        %v1289 = vld [vmem:[%s310 + $0x5a8] sm:$0xff]
        %v1290 = vld [vmem:[%s310 + $0x5b0] sm:$0xff]
        %v1291 = vld [vmem:[%s310 + $0x5b8] sm:$0xff]
        %v1292 = vld [vmem:[%s310 + $0x5c0] sm:$0xff]
        %v1293 = vld [vmem:[%s310 + $0x5c8] sm:$0xff]
        %v1294 = vld [vmem:[%s310 + $0x5d0] sm:$0xff]
        %v1295 = vld [vmem:[%s310 + $0x5d8] sm:$0xff]
        %v1296 = vld [vmem:[%s310 + $0x5e0] sm:$0xff]
        %v1297 = vld [vmem:[%s310 + $0x5e8] sm:$0xff]
        %v1298 = vld [vmem:[%s310 + $0x5f0] sm:$0xff]
        %v1299 = vld [vmem:[%s310 + $0x5f8] sm:$0xff]
        %v1300 = vld [vmem:[%s310 + $0x600] sm:$0xff]
        %v1301 = vld [vmem:[%s310 + $0x608] sm:$0xff]
        %v1302 = vld [vmem:[%s310 + $0x610] sm:$0xff]
        %v1303 = vld [vmem:[%s310 + $0x618] sm:$0xff]
        %v1304 = vld [vmem:[%s310 + $0x620] sm:$0xff]
        %v1305 = vld [vmem:[%s310 + $0x628] sm:$0xff]
        %v1306 = vld [vmem:[%s310 + $0x630] sm:$0xff]
        %v1307 = vld [vmem:[%s310 + $0x638] sm:$0xff]
        %v1308 = vld [vmem:[%s310 + $0x640] sm:$0xff]
        %v1309 = vld [vmem:[%s310 + $0x648] sm:$0xff]
        %v1310 = vld [vmem:[%s310 + $0x650] sm:$0xff]
        %v1311 = vld [vmem:[%s310 + $0x658] sm:$0xff]
        %v1312 = vld [vmem:[%s310 + $0x660] sm:$0xff]
        %v1313 = vld [vmem:[%s310 + $0x668] sm:$0xff]
        %v1314 = vld [vmem:[%s310 + $0x670] sm:$0xff]
        %v1315 = vld [vmem:[%s310 + $0x678] sm:$0xff]
        %v1316 = vld [vmem:[%s310 + $0x680] sm:$0xff]
        %v1317 = vld [vmem:[%s310 + $0x688] sm:$0xff]
        %v1318 = vld [vmem:[%s310 + $0x690] sm:$0xff]
        %v1319 = vld [vmem:[%s310 + $0x698] sm:$0xff]
        %v1320 = vld [vmem:[%s310 + $0x6a0] sm:$0xff]
        %v1321 = vld [vmem:[%s310 + $0x6a8] sm:$0xff]
        %v1322 = vld [vmem:[%s310 + $0x6b0] sm:$0xff]
        %v1323 = vld [vmem:[%s310 + $0x6b8] sm:$0xff]
        %v1324 = vld [vmem:[%s310 + $0x6c0] sm:$0xff]
        %v1325 = vld [vmem:[%s310 + $0x6c8] sm:$0xff]
        %v1326 = vld [vmem:[%s310 + $0x6d0] sm:$0xff]
        %v1327 = vld [vmem:[%s310 + $0x6d8] sm:$0xff]
        %v1328 = vld [vmem:[%s310 + $0x6e0] sm:$0xff]
        %v1329 = vld [vmem:[%s310 + $0x6e8] sm:$0xff]
        %v1330 = vld [vmem:[%s310 + $0x6f0] sm:$0xff]
        %v1331 = vld [vmem:[%s310 + $0x6f8] sm:$0xff]
        %v1332 = vld [vmem:[%s310 + $0x700] sm:$0xff]
        %v1333 = vld [vmem:[%s310 + $0x708] sm:$0xff]
        %v1334 = vld [vmem:[%s310 + $0x710] sm:$0xff]
        %v1335 = vld [vmem:[%s310 + $0x718] sm:$0xff]
        %v1336 = vld [vmem:[%s310 + $0x720] sm:$0xff]
        %v1337 = vld [vmem:[%s310 + $0x728] sm:$0xff]
        %v1338 = vld [vmem:[%s310 + $0x730] sm:$0xff]
        %v1339 = vld [vmem:[%s310 + $0x738] sm:$0xff]
        %v1340 = vld [vmem:[%s310 + $0x740] sm:$0xff]
        %v1341 = vld [vmem:[%s310 + $0x748] sm:$0xff]
        %v1342 = vld [vmem:[%s310 + $0x750] sm:$0xff]
        %v1343 = vld [vmem:[%s310 + $0x758] sm:$0xff]
        %v1344 = vld [vmem:[%s310 + $0x760] sm:$0xff]
        %v1345 = vld [vmem:[%s310 + $0x768] sm:$0xff]
        %v1346 = vld [vmem:[%s310 + $0x770] sm:$0xff]
        %v1347 = vld [vmem:[%s310 + $0x778] sm:$0xff]
        %v1348 = vld [vmem:[%s310 + $0x780] sm:$0xff]
        %v1349 = vld [vmem:[%s310 + $0x788] sm:$0xff]
        %v1350 = vld [vmem:[%s310 + $0x790] sm:$0xff]
        %v1351 = vld [vmem:[%s310 + $0x798] sm:$0xff]
        %v1352 = vld [vmem:[%s310 + $0x7a0] sm:$0xff]
        %v1353 = vld [vmem:[%s310 + $0x7a8] sm:$0xff]
        %v1354 = vld [vmem:[%s310 + $0x7b0] sm:$0xff]
        %v1355 = vld [vmem:[%s310 + $0x7b8] sm:$0xff]
        %v1356 = vld [vmem:[%s310 + $0x7c0] sm:$0xff]
        %v1357 = vld [vmem:[%s310 + $0x7c8] sm:$0xff]
        %v1358 = vld [vmem:[%s310 + $0x7d0] sm:$0xff]
        %v1359 = vld [vmem:[%s310 + $0x7d8] sm:$0xff]
        %v1360 = vld [vmem:[%s310 + $0x7e0] sm:$0xff]
        %v1361 = vld [vmem:[%s310 + $0x7e8] sm:$0xff]
        %v1362 = vld [vmem:[%s310 + $0x7f0] sm:$0xff]
        %v1363 = vld [vmem:[%s310 + $0x7f8] sm:$0xff]
        %v1364 = vlaneseq
        %v1365 = vshrl.u32 %v1364, 7
        %v1366 = vsub.s32 1, %v1365
        %v1367 = vrot.slane %v374, %v1366
        %v1368 = vlaneseq
        %v1369 = vshrl.u32 %v1368, 7
        %v1370 = vsub.s32 1, %v1369
        %v1371 = vrot.slane %v375, %v1370
        %v1372 = vlaneseq
        %v1373 = vshrl.u32 %v1372, 7
        %v1374 = vsub.s32 1, %v1373
        %v1375 = vrot.slane %v376, %v1374
        %v1376 = vlaneseq
        %v1377 = vshrl.u32 %v1376, 7
        %v1378 = vsub.s32 1, %v1377
        %v1379 = vrot.slane %v377, %v1378
        %v1636 = vunpack.c.l.b16 %v1108
        %v1637 = vunpack.c.h.b16 %v1108
        %v1638 = vunpack.c.l.b16 %v1109
        %v1639 = vunpack.c.h.b16 %v1109
        %v1640 = vunpack.c.l.b16 %v1110
        %v1641 = vunpack.c.h.b16 %v1110
        %v1642 = vunpack.c.l.b16 %v1111
        %v1643 = vunpack.c.h.b16 %v1111
        %v1644 = vunpack.c.l.b16 %v1112
        %v1645 = vunpack.c.h.b16 %v1112
        %v1646 = vunpack.c.l.b16 %v1113
        %v1647 = vunpack.c.h.b16 %v1113
        %v1648 = vunpack.c.l.b16 %v1114
        %v1649 = vunpack.c.h.b16 %v1114
        %v1650 = vunpack.c.l.b16 %v1115
        %v1651 = vunpack.c.h.b16 %v1115
        %v1652 = vunpack.c.l.b16 %v1116
        %v1653 = vunpack.c.h.b16 %v1116
        %v1654 = vunpack.c.l.b16 %v1117
        %v1655 = vunpack.c.h.b16 %v1117
        %v1656 = vunpack.c.l.b16 %v1118
        %v1657 = vunpack.c.h.b16 %v1118
        %v1658 = vunpack.c.l.b16 %v1119
        %v1659 = vunpack.c.h.b16 %v1119
        %v1660 = vunpack.c.l.b16 %v1120
        %v1661 = vunpack.c.h.b16 %v1120
        %v1662 = vunpack.c.l.b16 %v1121
        %v1663 = vunpack.c.h.b16 %v1121
        %v1664 = vunpack.c.l.b16 %v1122
        %v1665 = vunpack.c.h.b16 %v1122
        %v1666 = vunpack.c.l.b16 %v1123
        %v1667 = vunpack.c.h.b16 %v1123
        %v1668 = vunpack.c.l.b16 %v1124
        %v1669 = vunpack.c.h.b16 %v1124
        %v1670 = vunpack.c.l.b16 %v1125
        %v1671 = vunpack.c.h.b16 %v1125
        %v1672 = vunpack.c.l.b16 %v1126
        %v1673 = vunpack.c.h.b16 %v1126
        %v1674 = vunpack.c.l.b16 %v1127
        %v1675 = vunpack.c.h.b16 %v1127
        %v1676 = vunpack.c.l.b16 %v1128
        %v1677 = vunpack.c.h.b16 %v1128
        %v1678 = vunpack.c.l.b16 %v1129
        %v1679 = vunpack.c.h.b16 %v1129
        %v1680 = vunpack.c.l.b16 %v1130
        %v1681 = vunpack.c.h.b16 %v1130
        %v1682 = vunpack.c.l.b16 %v1131
        %v1683 = vunpack.c.h.b16 %v1131
        %v1684 = vunpack.c.l.b16 %v1132
        %v1685 = vunpack.c.h.b16 %v1132
        %v1686 = vunpack.c.l.b16 %v1133
        %v1687 = vunpack.c.h.b16 %v1133
        %v1688 = vunpack.c.l.b16 %v1134
        %v1689 = vunpack.c.h.b16 %v1134
        %v1690 = vunpack.c.l.b16 %v1135
        %v1691 = vunpack.c.h.b16 %v1135
        %v1692 = vunpack.c.l.b16 %v1136
        %v1693 = vunpack.c.h.b16 %v1136
        %v1694 = vunpack.c.l.b16 %v1137
        %v1695 = vunpack.c.h.b16 %v1137
        %v1696 = vunpack.c.l.b16 %v1138
        %v1697 = vunpack.c.h.b16 %v1138
        %v1698 = vunpack.c.l.b16 %v1139
        %v1699 = vunpack.c.h.b16 %v1139
        %v1700 = vunpack.c.l.b16 %v1140
        %v1701 = vunpack.c.h.b16 %v1140
        %v1702 = vunpack.c.l.b16 %v1141
        %v1703 = vunpack.c.h.b16 %v1141
        %v1704 = vunpack.c.l.b16 %v1142
        %v1705 = vunpack.c.h.b16 %v1142
        %v1706 = vunpack.c.l.b16 %v1143
        %v1707 = vunpack.c.h.b16 %v1143
        %v1708 = vunpack.c.l.b16 %v1144
        %v1709 = vunpack.c.h.b16 %v1144
        %v1710 = vunpack.c.l.b16 %v1145
        %v1711 = vunpack.c.h.b16 %v1145
        %v1712 = vunpack.c.l.b16 %v1146
        %v1713 = vunpack.c.h.b16 %v1146
        %v1714 = vunpack.c.l.b16 %v1147
        %v1715 = vunpack.c.h.b16 %v1147
        %v1716 = vunpack.c.l.b16 %v1148
        %v1717 = vunpack.c.h.b16 %v1148
        %v1718 = vunpack.c.l.b16 %v1149
        %v1719 = vunpack.c.h.b16 %v1149
        %v1720 = vunpack.c.l.b16 %v1150
        %v1721 = vunpack.c.h.b16 %v1150
        %v1722 = vunpack.c.l.b16 %v1151
        %v1723 = vunpack.c.h.b16 %v1151
        %v1724 = vunpack.c.l.b16 %v1152
        %v1725 = vunpack.c.h.b16 %v1152
        %v1726 = vunpack.c.l.b16 %v1153
        %v1727 = vunpack.c.h.b16 %v1153
        %v1728 = vunpack.c.l.b16 %v1154
        %v1729 = vunpack.c.h.b16 %v1154
        %v1730 = vunpack.c.l.b16 %v1155
        %v1731 = vunpack.c.h.b16 %v1155
        %v1732 = vunpack.c.l.b16 %v1156
        %v1733 = vunpack.c.h.b16 %v1156
        %v1734 = vunpack.c.l.b16 %v1157
        %v1735 = vunpack.c.h.b16 %v1157
        %v1736 = vunpack.c.l.b16 %v1158
        %v1737 = vunpack.c.h.b16 %v1158
        %v1738 = vunpack.c.l.b16 %v1159
        %v1739 = vunpack.c.h.b16 %v1159
        %v1740 = vunpack.c.l.b16 %v1160
        %v1741 = vunpack.c.h.b16 %v1160
        %v1742 = vunpack.c.l.b16 %v1161
        %v1743 = vunpack.c.h.b16 %v1161
        %v1744 = vunpack.c.l.b16 %v1162
        %v1745 = vunpack.c.h.b16 %v1162
        %v1746 = vunpack.c.l.b16 %v1163
        %v1747 = vunpack.c.h.b16 %v1163
        %v1748 = vunpack.c.l.b16 %v1164
        %v1749 = vunpack.c.h.b16 %v1164
        %v1750 = vunpack.c.l.b16 %v1165
        %v1751 = vunpack.c.h.b16 %v1165
        %v1752 = vunpack.c.l.b16 %v1166
        %v1753 = vunpack.c.h.b16 %v1166
        %v1754 = vunpack.c.l.b16 %v1167
        %v1755 = vunpack.c.h.b16 %v1167
        %v1756 = vunpack.c.l.b16 %v1168
        %v1757 = vunpack.c.h.b16 %v1168
        %v1758 = vunpack.c.l.b16 %v1169
        %v1759 = vunpack.c.h.b16 %v1169
        %v1760 = vunpack.c.l.b16 %v1170
        %v1761 = vunpack.c.h.b16 %v1170
        %v1762 = vunpack.c.l.b16 %v1171
        %v1763 = vunpack.c.h.b16 %v1171
        %v1764 = vunpack.c.l.b16 %v1172
        %v1765 = vunpack.c.h.b16 %v1172
        %v1766 = vunpack.c.l.b16 %v1173
        %v1767 = vunpack.c.h.b16 %v1173
        %v1768 = vunpack.c.l.b16 %v1174
        %v1769 = vunpack.c.h.b16 %v1174
        %v1770 = vunpack.c.l.b16 %v1175
        %v1771 = vunpack.c.h.b16 %v1175
        %v1772 = vunpack.c.l.b16 %v1176
        %v1773 = vunpack.c.h.b16 %v1176
        %v1774 = vunpack.c.l.b16 %v1177
        %v1775 = vunpack.c.h.b16 %v1177
        %v1776 = vunpack.c.l.b16 %v1178
        %v1777 = vunpack.c.h.b16 %v1178
        %v1778 = vunpack.c.l.b16 %v1179
        %v1779 = vunpack.c.h.b16 %v1179
        %v1780 = vunpack.c.l.b16 %v1180
        %v1781 = vunpack.c.h.b16 %v1180
        %v1782 = vunpack.c.l.b16 %v1181
        %v1783 = vunpack.c.h.b16 %v1181
        %v1784 = vunpack.c.l.b16 %v1182
        %v1785 = vunpack.c.h.b16 %v1182
        %v1786 = vunpack.c.l.b16 %v1183
        %v1787 = vunpack.c.h.b16 %v1183
        %v1788 = vunpack.c.l.b16 %v1184
        %v1789 = vunpack.c.h.b16 %v1184
        %v1790 = vunpack.c.l.b16 %v1185
        %v1791 = vunpack.c.h.b16 %v1185
        %v1792 = vunpack.c.l.b16 %v1186
        %v1793 = vunpack.c.h.b16 %v1186
        %v1794 = vunpack.c.l.b16 %v1187
        %v1795 = vunpack.c.h.b16 %v1187
        %v1796 = vunpack.c.l.b16 %v1188
        %v1797 = vunpack.c.h.b16 %v1188
        %v1798 = vunpack.c.l.b16 %v1189
        %v1799 = vunpack.c.h.b16 %v1189
        %v1800 = vunpack.c.l.b16 %v1190
        %v1801 = vunpack.c.h.b16 %v1190
        %v1802 = vunpack.c.l.b16 %v1191
        %v1803 = vunpack.c.h.b16 %v1191
        %v1804 = vunpack.c.l.b16 %v1192
        %v1805 = vunpack.c.h.b16 %v1192
        %v1806 = vunpack.c.l.b16 %v1193
        %v1807 = vunpack.c.h.b16 %v1193
        %v1808 = vunpack.c.l.b16 %v1194
        %v1809 = vunpack.c.h.b16 %v1194
        %v1810 = vunpack.c.l.b16 %v1195
        %v1811 = vunpack.c.h.b16 %v1195
        %v1812 = vunpack.c.l.b16 %v1196
        %v1813 = vunpack.c.h.b16 %v1196
        %v1814 = vunpack.c.l.b16 %v1197
        %v1815 = vunpack.c.h.b16 %v1197
        %v1816 = vunpack.c.l.b16 %v1198
        %v1817 = vunpack.c.h.b16 %v1198
        %v1818 = vunpack.c.l.b16 %v1199
        %v1819 = vunpack.c.h.b16 %v1199
        %v1820 = vunpack.c.l.b16 %v1200
        %v1821 = vunpack.c.h.b16 %v1200
        %v1822 = vunpack.c.l.b16 %v1201
        %v1823 = vunpack.c.h.b16 %v1201
        %v1824 = vunpack.c.l.b16 %v1202
        %v1825 = vunpack.c.h.b16 %v1202
        %v1826 = vunpack.c.l.b16 %v1203
        %v1827 = vunpack.c.h.b16 %v1203
        %v1828 = vunpack.c.l.b16 %v1204
        %v1829 = vunpack.c.h.b16 %v1204
        %v1830 = vunpack.c.l.b16 %v1205
        %v1831 = vunpack.c.h.b16 %v1205
        %v1832 = vunpack.c.l.b16 %v1206
        %v1833 = vunpack.c.h.b16 %v1206
        %v1834 = vunpack.c.l.b16 %v1207
        %v1835 = vunpack.c.h.b16 %v1207
        %v1836 = vunpack.c.l.b16 %v1208
        %v1837 = vunpack.c.h.b16 %v1208
        %v1838 = vunpack.c.l.b16 %v1209
        %v1839 = vunpack.c.h.b16 %v1209
        %v1840 = vunpack.c.l.b16 %v1210
        %v1841 = vunpack.c.h.b16 %v1210
        %v1842 = vunpack.c.l.b16 %v1211
        %v1843 = vunpack.c.h.b16 %v1211
        %v1844 = vunpack.c.l.b16 %v1212
        %v1845 = vunpack.c.h.b16 %v1212
        %v1846 = vunpack.c.l.b16 %v1213
        %v1847 = vunpack.c.h.b16 %v1213
        %v1848 = vunpack.c.l.b16 %v1214
        %v1849 = vunpack.c.h.b16 %v1214
        %v1850 = vunpack.c.l.b16 %v1215
        %v1851 = vunpack.c.h.b16 %v1215
        %v1852 = vunpack.c.l.b16 %v1216
        %v1853 = vunpack.c.h.b16 %v1216
        %v1854 = vunpack.c.l.b16 %v1217
        %v1855 = vunpack.c.h.b16 %v1217
        %v1856 = vunpack.c.l.b16 %v1218
        %v1857 = vunpack.c.h.b16 %v1218
        %v1858 = vunpack.c.l.b16 %v1219
        %v1859 = vunpack.c.h.b16 %v1219
        %v1860 = vunpack.c.l.b16 %v1220
        %v1861 = vunpack.c.h.b16 %v1220
        %v1862 = vunpack.c.l.b16 %v1221
        %v1863 = vunpack.c.h.b16 %v1221
        %v1864 = vunpack.c.l.b16 %v1222
        %v1865 = vunpack.c.h.b16 %v1222
        %v1866 = vunpack.c.l.b16 %v1223
        %v1867 = vunpack.c.h.b16 %v1223
        %v1868 = vunpack.c.l.b16 %v1224
        %v1869 = vunpack.c.h.b16 %v1224
        %v1870 = vunpack.c.l.b16 %v1225
        %v1871 = vunpack.c.h.b16 %v1225
        %v1872 = vunpack.c.l.b16 %v1226
        %v1873 = vunpack.c.h.b16 %v1226
        %v1874 = vunpack.c.l.b16 %v1227
        %v1875 = vunpack.c.h.b16 %v1227
        %v1876 = vunpack.c.l.b16 %v1228
        %v1877 = vunpack.c.h.b16 %v1228
        %v1878 = vunpack.c.l.b16 %v1229
        %v1879 = vunpack.c.h.b16 %v1229
        %v1880 = vunpack.c.l.b16 %v1230
        %v1881 = vunpack.c.h.b16 %v1230
        %v1882 = vunpack.c.l.b16 %v1231
        %v1883 = vunpack.c.h.b16 %v1231
        %v1884 = vunpack.c.l.b16 %v1232
        %v1885 = vunpack.c.h.b16 %v1232
        %v1886 = vunpack.c.l.b16 %v1233
        %v1887 = vunpack.c.h.b16 %v1233
        %v1888 = vunpack.c.l.b16 %v1234
        %v1889 = vunpack.c.h.b16 %v1234
        %v1890 = vunpack.c.l.b16 %v1235
        %v1891 = vunpack.c.h.b16 %v1235
        %v1892 = vunpack.c.l.b16 %v1236
        %v1893 = vunpack.c.h.b16 %v1236
        %v1894 = vunpack.c.l.b16 %v1237
        %v1895 = vunpack.c.h.b16 %v1237
        %v1896 = vunpack.c.l.b16 %v1238
        %v1897 = vunpack.c.h.b16 %v1238
        %v1898 = vunpack.c.l.b16 %v1239
        %v1899 = vunpack.c.h.b16 %v1239
        %v1900 = vunpack.c.l.b16 %v1240
        %v1901 = vunpack.c.h.b16 %v1240
        %v1902 = vunpack.c.l.b16 %v1241
        %v1903 = vunpack.c.h.b16 %v1241
        %v1904 = vunpack.c.l.b16 %v1242
        %v1905 = vunpack.c.h.b16 %v1242
        %v1906 = vunpack.c.l.b16 %v1243
        %v1907 = vunpack.c.h.b16 %v1243
        %v1908 = vunpack.c.l.b16 %v1244
        %v1909 = vunpack.c.h.b16 %v1244
        %v1910 = vunpack.c.l.b16 %v1245
        %v1911 = vunpack.c.h.b16 %v1245
        %v1912 = vunpack.c.l.b16 %v1246
        %v1913 = vunpack.c.h.b16 %v1246
        %v1914 = vunpack.c.l.b16 %v1247
        %v1915 = vunpack.c.h.b16 %v1247
        %v1916 = vunpack.c.l.b16 %v1248
        %v1917 = vunpack.c.h.b16 %v1248
        %v1918 = vunpack.c.l.b16 %v1249
        %v1919 = vunpack.c.h.b16 %v1249
        %v1920 = vunpack.c.l.b16 %v1250
        %v1921 = vunpack.c.h.b16 %v1250
        %v1922 = vunpack.c.l.b16 %v1251
        %v1923 = vunpack.c.h.b16 %v1251
        %v1924 = vunpack.c.l.b16 %v1252
        %v1925 = vunpack.c.h.b16 %v1252
        %v1926 = vunpack.c.l.b16 %v1253
        %v1927 = vunpack.c.h.b16 %v1253
        %v1928 = vunpack.c.l.b16 %v1254
        %v1929 = vunpack.c.h.b16 %v1254
        %v1930 = vunpack.c.l.b16 %v1255
        %v1931 = vunpack.c.h.b16 %v1255
        %v1932 = vunpack.c.l.b16 %v1256
        %v1933 = vunpack.c.h.b16 %v1256
        %v1934 = vunpack.c.l.b16 %v1257
        %v1935 = vunpack.c.h.b16 %v1257
        %v1936 = vunpack.c.l.b16 %v1258
        %v1937 = vunpack.c.h.b16 %v1258
        %v1938 = vunpack.c.l.b16 %v1259
        %v1939 = vunpack.c.h.b16 %v1259
        %v1940 = vunpack.c.l.b16 %v1260
        %v1941 = vunpack.c.h.b16 %v1260
        %v1942 = vunpack.c.l.b16 %v1261
        %v1943 = vunpack.c.h.b16 %v1261
        %v1944 = vunpack.c.l.b16 %v1262
        %v1945 = vunpack.c.h.b16 %v1262
        %v1946 = vunpack.c.l.b16 %v1263
        %v1947 = vunpack.c.h.b16 %v1263
        %v1948 = vunpack.c.l.b16 %v1264
        %v1949 = vunpack.c.h.b16 %v1264
        %v1950 = vunpack.c.l.b16 %v1265
        %v1951 = vunpack.c.h.b16 %v1265
        %v1952 = vunpack.c.l.b16 %v1266
        %v1953 = vunpack.c.h.b16 %v1266
        %v1954 = vunpack.c.l.b16 %v1267
        %v1955 = vunpack.c.h.b16 %v1267
        %v1956 = vunpack.c.l.b16 %v1268
        %v1957 = vunpack.c.h.b16 %v1268
        %v1958 = vunpack.c.l.b16 %v1269
        %v1959 = vunpack.c.h.b16 %v1269
        %v1960 = vunpack.c.l.b16 %v1270
        %v1961 = vunpack.c.h.b16 %v1270
        %v1962 = vunpack.c.l.b16 %v1271
        %v1963 = vunpack.c.h.b16 %v1271
        %v1964 = vunpack.c.l.b16 %v1272
        %v1965 = vunpack.c.h.b16 %v1272
        %v1966 = vunpack.c.l.b16 %v1273
        %v1967 = vunpack.c.h.b16 %v1273
        %v1968 = vunpack.c.l.b16 %v1274
        %v1969 = vunpack.c.h.b16 %v1274
        %v1970 = vunpack.c.l.b16 %v1275
        %v1971 = vunpack.c.h.b16 %v1275
        %v1972 = vunpack.c.l.b16 %v1276
        %v1973 = vunpack.c.h.b16 %v1276
        %v1974 = vunpack.c.l.b16 %v1277
        %v1975 = vunpack.c.h.b16 %v1277
        %v1976 = vunpack.c.l.b16 %v1278
        %v1977 = vunpack.c.h.b16 %v1278
        %v1978 = vunpack.c.l.b16 %v1279
        %v1979 = vunpack.c.h.b16 %v1279
        %v1980 = vunpack.c.l.b16 %v1280
        %v1981 = vunpack.c.h.b16 %v1280
        %v1982 = vunpack.c.l.b16 %v1281
        %v1983 = vunpack.c.h.b16 %v1281
        %v1984 = vunpack.c.l.b16 %v1282
        %v1985 = vunpack.c.h.b16 %v1282
        %v1986 = vunpack.c.l.b16 %v1283
        %v1987 = vunpack.c.h.b16 %v1283
        %v1988 = vunpack.c.l.b16 %v1284
        %v1989 = vunpack.c.h.b16 %v1284
        %v1990 = vunpack.c.l.b16 %v1285
        %v1991 = vunpack.c.h.b16 %v1285
        %v1992 = vunpack.c.l.b16 %v1286
        %v1993 = vunpack.c.h.b16 %v1286
        %v1994 = vunpack.c.l.b16 %v1287
        %v1995 = vunpack.c.h.b16 %v1287
        %v1996 = vunpack.c.l.b16 %v1288
        %v1997 = vunpack.c.h.b16 %v1288
        %v1998 = vunpack.c.l.b16 %v1289
        %v1999 = vunpack.c.h.b16 %v1289
        %v2000 = vunpack.c.l.b16 %v1290
        %v2001 = vunpack.c.h.b16 %v1290
        %v2002 = vunpack.c.l.b16 %v1291
        %v2003 = vunpack.c.h.b16 %v1291
        %v2004 = vunpack.c.l.b16 %v1292
        %v2005 = vunpack.c.h.b16 %v1292
        %v2006 = vunpack.c.l.b16 %v1293
        %v2007 = vunpack.c.h.b16 %v1293
        %v2008 = vunpack.c.l.b16 %v1294
        %v2009 = vunpack.c.h.b16 %v1294
        %v2010 = vunpack.c.l.b16 %v1295
        %v2011 = vunpack.c.h.b16 %v1295
        %v2012 = vunpack.c.l.b16 %v1296
        %v2013 = vunpack.c.h.b16 %v1296
        %v2014 = vunpack.c.l.b16 %v1297
        %v2015 = vunpack.c.h.b16 %v1297
        %v2016 = vunpack.c.l.b16 %v1298
        %v2017 = vunpack.c.h.b16 %v1298
        %v2018 = vunpack.c.l.b16 %v1299
        %v2019 = vunpack.c.h.b16 %v1299
        %v2020 = vunpack.c.l.b16 %v1300
        %v2021 = vunpack.c.h.b16 %v1300
        %v2022 = vunpack.c.l.b16 %v1301
        %v2023 = vunpack.c.h.b16 %v1301
        %v2024 = vunpack.c.l.b16 %v1302
        %v2025 = vunpack.c.h.b16 %v1302
        %v2026 = vunpack.c.l.b16 %v1303
        %v2027 = vunpack.c.h.b16 %v1303
        %v2028 = vunpack.c.l.b16 %v1304
        %v2029 = vunpack.c.h.b16 %v1304
        %v2030 = vunpack.c.l.b16 %v1305
        %v2031 = vunpack.c.h.b16 %v1305
        %v2032 = vunpack.c.l.b16 %v1306
        %v2033 = vunpack.c.h.b16 %v1306
        %v2034 = vunpack.c.l.b16 %v1307
        %v2035 = vunpack.c.h.b16 %v1307
        %v2036 = vunpack.c.l.b16 %v1308
        %v2037 = vunpack.c.h.b16 %v1308
        %v2038 = vunpack.c.l.b16 %v1309
        %v2039 = vunpack.c.h.b16 %v1309
        %v2040 = vunpack.c.l.b16 %v1310
        %v2041 = vunpack.c.h.b16 %v1310
        %v2042 = vunpack.c.l.b16 %v1311
        %v2043 = vunpack.c.h.b16 %v1311
        %v2044 = vunpack.c.l.b16 %v1312
        %v2045 = vunpack.c.h.b16 %v1312
        %v2046 = vunpack.c.l.b16 %v1313
        %v2047 = vunpack.c.h.b16 %v1313
        %v2048 = vunpack.c.l.b16 %v1314
        %v2049 = vunpack.c.h.b16 %v1314
        %v2050 = vunpack.c.l.b16 %v1315
        %v2051 = vunpack.c.h.b16 %v1315
        %v2052 = vunpack.c.l.b16 %v1316
        %v2053 = vunpack.c.h.b16 %v1316
        %v2054 = vunpack.c.l.b16 %v1317
        %v2055 = vunpack.c.h.b16 %v1317
        %v2056 = vunpack.c.l.b16 %v1318
        %v2057 = vunpack.c.h.b16 %v1318
        %v2058 = vunpack.c.l.b16 %v1319
        %v2059 = vunpack.c.h.b16 %v1319
        %v2060 = vunpack.c.l.b16 %v1320
        %v2061 = vunpack.c.h.b16 %v1320
        %v2062 = vunpack.c.l.b16 %v1321
        %v2063 = vunpack.c.h.b16 %v1321
        %v2064 = vunpack.c.l.b16 %v1322
        %v2065 = vunpack.c.h.b16 %v1322
        %v2066 = vunpack.c.l.b16 %v1323
        %v2067 = vunpack.c.h.b16 %v1323
        %v2068 = vunpack.c.l.b16 %v1324
        %v2069 = vunpack.c.h.b16 %v1324
        %v2070 = vunpack.c.l.b16 %v1325
        %v2071 = vunpack.c.h.b16 %v1325
        %v2072 = vunpack.c.l.b16 %v1326
        %v2073 = vunpack.c.h.b16 %v1326
        %v2074 = vunpack.c.l.b16 %v1327
        %v2075 = vunpack.c.h.b16 %v1327
        %v2076 = vunpack.c.l.b16 %v1328
        %v2077 = vunpack.c.h.b16 %v1328
        %v2078 = vunpack.c.l.b16 %v1329
        %v2079 = vunpack.c.h.b16 %v1329
        %v2080 = vunpack.c.l.b16 %v1330
        %v2081 = vunpack.c.h.b16 %v1330
        %v2082 = vunpack.c.l.b16 %v1331
        %v2083 = vunpack.c.h.b16 %v1331
        %v2084 = vunpack.c.l.b16 %v1332
        %v2085 = vunpack.c.h.b16 %v1332
        %v2086 = vunpack.c.l.b16 %v1333
        %v2087 = vunpack.c.h.b16 %v1333
        %v2088 = vunpack.c.l.b16 %v1334
        %v2089 = vunpack.c.h.b16 %v1334
        %v2090 = vunpack.c.l.b16 %v1335
        %v2091 = vunpack.c.h.b16 %v1335
        %v2092 = vunpack.c.l.b16 %v1336
        %v2093 = vunpack.c.h.b16 %v1336
        %v2094 = vunpack.c.l.b16 %v1337
        %v2095 = vunpack.c.h.b16 %v1337
        %v2096 = vunpack.c.l.b16 %v1338
        %v2097 = vunpack.c.h.b16 %v1338
        %v2098 = vunpack.c.l.b16 %v1339
        %v2099 = vunpack.c.h.b16 %v1339
        %v2100 = vunpack.c.l.b16 %v1340
        %v2101 = vunpack.c.h.b16 %v1340
        %v2102 = vunpack.c.l.b16 %v1341
        %v2103 = vunpack.c.h.b16 %v1341
        %v2104 = vunpack.c.l.b16 %v1342
        %v2105 = vunpack.c.h.b16 %v1342
        %v2106 = vunpack.c.l.b16 %v1343
        %v2107 = vunpack.c.h.b16 %v1343
        %v2108 = vunpack.c.l.b16 %v1344
        %v2109 = vunpack.c.h.b16 %v1344
        %v2110 = vunpack.c.l.b16 %v1345
        %v2111 = vunpack.c.h.b16 %v1345
        %v2112 = vunpack.c.l.b16 %v1346
        %v2113 = vunpack.c.h.b16 %v1346
        %v2114 = vunpack.c.l.b16 %v1347
        %v2115 = vunpack.c.h.b16 %v1347
        %v2116 = vunpack.c.l.b16 %v1348
        %v2117 = vunpack.c.h.b16 %v1348
        %v2118 = vunpack.c.l.b16 %v1349
        %v2119 = vunpack.c.h.b16 %v1349
        %v2120 = vunpack.c.l.b16 %v1350
        %v2121 = vunpack.c.h.b16 %v1350
        %v2122 = vunpack.c.l.b16 %v1351
        %v2123 = vunpack.c.h.b16 %v1351
        %v2124 = vunpack.c.l.b16 %v1352
        %v2125 = vunpack.c.h.b16 %v1352
        %v2126 = vunpack.c.l.b16 %v1353
        %v2127 = vunpack.c.h.b16 %v1353
        %v2128 = vunpack.c.l.b16 %v1354
        %v2129 = vunpack.c.h.b16 %v1354
        %v2130 = vunpack.c.l.b16 %v1355
        %v2131 = vunpack.c.h.b16 %v1355
        %v2132 = vunpack.c.l.b16 %v1356
        %v2133 = vunpack.c.h.b16 %v1356
        %v2134 = vunpack.c.l.b16 %v1357
        %v2135 = vunpack.c.h.b16 %v1357
        %v2136 = vunpack.c.l.b16 %v1358
        %v2137 = vunpack.c.h.b16 %v1358
        %v2138 = vunpack.c.l.b16 %v1359
        %v2139 = vunpack.c.h.b16 %v1359
        %v2140 = vunpack.c.l.b16 %v1360
        %v2141 = vunpack.c.h.b16 %v1360
        %v2142 = vunpack.c.l.b16 %v1361
        %v2143 = vunpack.c.h.b16 %v1361
        %v2144 = vunpack.c.l.b16 %v1362
        %v2145 = vunpack.c.h.b16 %v1362
        %v2146 = vunpack.c.l.b16 %v1363
        %v2147 = vunpack.c.h.b16 %v1363
        %v2148 = vpack.c.b16 %v1640, %v1636
        %v2149 = vpack.c.b16 %v1641, %v1637
        %v2150 = vpack.c.b16 %v1642, %v1638
        %v2151 = vpack.c.b16 %v1643, %v1639
        %v2152 = vpack.c.b16 %v1648, %v1644
        %v2153 = vpack.c.b16 %v1649, %v1645
        %v2154 = vpack.c.b16 %v1650, %v1646
        %v2155 = vpack.c.b16 %v1651, %v1647
        %v2156 = vpack.c.b16 %v1656, %v1652
        %v2157 = vpack.c.b16 %v1657, %v1653
        %v2158 = vpack.c.b16 %v1658, %v1654
        %v2159 = vpack.c.b16 %v1659, %v1655
        %v2160 = vpack.c.b16 %v1664, %v1660
        %v2161 = vpack.c.b16 %v1665, %v1661
        %v2162 = vpack.c.b16 %v1666, %v1662
        %v2163 = vpack.c.b16 %v1667, %v1663
        %v2164 = vpack.c.b16 %v1672, %v1668
        %v2165 = vpack.c.b16 %v1673, %v1669
        %v2166 = vpack.c.b16 %v1674, %v1670
        %v2167 = vpack.c.b16 %v1675, %v1671
        %v2168 = vpack.c.b16 %v1680, %v1676
        %v2169 = vpack.c.b16 %v1681, %v1677
        %v2170 = vpack.c.b16 %v1682, %v1678
        %v2171 = vpack.c.b16 %v1683, %v1679
        %v2172 = vpack.c.b16 %v1688, %v1684
        %v2173 = vpack.c.b16 %v1689, %v1685
        %v2174 = vpack.c.b16 %v1690, %v1686
        %v2175 = vpack.c.b16 %v1691, %v1687
        %v2176 = vpack.c.b16 %v1696, %v1692
        %v2177 = vpack.c.b16 %v1697, %v1693
        %v2178 = vpack.c.b16 %v1698, %v1694
        %v2179 = vpack.c.b16 %v1699, %v1695
        %v2180 = vpack.c.b16 %v1704, %v1700
        %v2181 = vpack.c.b16 %v1705, %v1701
        %v2182 = vpack.c.b16 %v1706, %v1702
        %v2183 = vpack.c.b16 %v1707, %v1703
        %v2184 = vpack.c.b16 %v1712, %v1708
        %v2185 = vpack.c.b16 %v1713, %v1709
        %v2186 = vpack.c.b16 %v1714, %v1710
        %v2187 = vpack.c.b16 %v1715, %v1711
        %v2188 = vpack.c.b16 %v1720, %v1716
        %v2189 = vpack.c.b16 %v1721, %v1717
        %v2190 = vpack.c.b16 %v1722, %v1718
        %v2191 = vpack.c.b16 %v1723, %v1719
        %v2192 = vpack.c.b16 %v1728, %v1724
        %v2193 = vpack.c.b16 %v1729, %v1725
        %v2194 = vpack.c.b16 %v1730, %v1726
        %v2195 = vpack.c.b16 %v1731, %v1727
        %v2196 = vpack.c.b16 %v1736, %v1732
        %v2197 = vpack.c.b16 %v1737, %v1733
        %v2198 = vpack.c.b16 %v1738, %v1734
        %v2199 = vpack.c.b16 %v1739, %v1735
        %v2200 = vpack.c.b16 %v1744, %v1740
        %v2201 = vpack.c.b16 %v1745, %v1741
        %v2202 = vpack.c.b16 %v1746, %v1742
        %v2203 = vpack.c.b16 %v1747, %v1743
        %v2204 = vpack.c.b16 %v1752, %v1748
        %v2205 = vpack.c.b16 %v1753, %v1749
        %v2206 = vpack.c.b16 %v1754, %v1750
        %v2207 = vpack.c.b16 %v1755, %v1751
        %v2208 = vpack.c.b16 %v1760, %v1756
        %v2209 = vpack.c.b16 %v1761, %v1757
        %v2210 = vpack.c.b16 %v1762, %v1758
        %v2211 = vpack.c.b16 %v1763, %v1759
        %v2212 = vpack.c.b16 %v1768, %v1764
        %v2213 = vpack.c.b16 %v1769, %v1765
        %v2214 = vpack.c.b16 %v1770, %v1766
        %v2215 = vpack.c.b16 %v1771, %v1767
        %v2216 = vpack.c.b16 %v1776, %v1772
        %v2217 = vpack.c.b16 %v1777, %v1773
        %v2218 = vpack.c.b16 %v1778, %v1774
        %v2219 = vpack.c.b16 %v1779, %v1775
        %v2220 = vpack.c.b16 %v1784, %v1780
        %v2221 = vpack.c.b16 %v1785, %v1781
        %v2222 = vpack.c.b16 %v1786, %v1782
        %v2223 = vpack.c.b16 %v1787, %v1783
        %v2224 = vpack.c.b16 %v1792, %v1788
        %v2225 = vpack.c.b16 %v1793, %v1789
        %v2226 = vpack.c.b16 %v1794, %v1790
        %v2227 = vpack.c.b16 %v1795, %v1791
        %v2228 = vpack.c.b16 %v1800, %v1796
        %v2229 = vpack.c.b16 %v1801, %v1797
        %v2230 = vpack.c.b16 %v1802, %v1798
        %v2231 = vpack.c.b16 %v1803, %v1799
        %v2232 = vpack.c.b16 %v1808, %v1804
        %v2233 = vpack.c.b16 %v1809, %v1805
        %v2234 = vpack.c.b16 %v1810, %v1806
        %v2235 = vpack.c.b16 %v1811, %v1807
        %v2236 = vpack.c.b16 %v1816, %v1812
        %v2237 = vpack.c.b16 %v1817, %v1813
        %v2238 = vpack.c.b16 %v1818, %v1814
        %v2239 = vpack.c.b16 %v1819, %v1815
        %v2240 = vpack.c.b16 %v1824, %v1820
        %v2241 = vpack.c.b16 %v1825, %v1821
        %v2242 = vpack.c.b16 %v1826, %v1822
        %v2243 = vpack.c.b16 %v1827, %v1823
        %v2244 = vpack.c.b16 %v1832, %v1828
        %v2245 = vpack.c.b16 %v1833, %v1829
        %v2246 = vpack.c.b16 %v1834, %v1830
        %v2247 = vpack.c.b16 %v1835, %v1831
        %v2248 = vpack.c.b16 %v1840, %v1836
        %v2249 = vpack.c.b16 %v1841, %v1837
        %v2250 = vpack.c.b16 %v1842, %v1838
        %v2251 = vpack.c.b16 %v1843, %v1839
        %v2252 = vpack.c.b16 %v1848, %v1844
        %v2253 = vpack.c.b16 %v1849, %v1845
        %v2254 = vpack.c.b16 %v1850, %v1846
        %v2255 = vpack.c.b16 %v1851, %v1847
        %v2256 = vpack.c.b16 %v1856, %v1852
        %v2257 = vpack.c.b16 %v1857, %v1853
        %v2258 = vpack.c.b16 %v1858, %v1854
        %v2259 = vpack.c.b16 %v1859, %v1855
        %v2260 = vpack.c.b16 %v1864, %v1860
        %v2261 = vpack.c.b16 %v1865, %v1861
        %v2262 = vpack.c.b16 %v1866, %v1862
        %v2263 = vpack.c.b16 %v1867, %v1863
        %v2264 = vpack.c.b16 %v1872, %v1868
        %v2265 = vpack.c.b16 %v1873, %v1869
        %v2266 = vpack.c.b16 %v1874, %v1870
        %v2267 = vpack.c.b16 %v1875, %v1871
        %v2268 = vpack.c.b16 %v1880, %v1876
        %v2269 = vpack.c.b16 %v1881, %v1877
        %v2270 = vpack.c.b16 %v1882, %v1878
        %v2271 = vpack.c.b16 %v1883, %v1879
        %v2272 = vpack.c.b16 %v1888, %v1884
        %v2273 = vpack.c.b16 %v1889, %v1885
        %v2274 = vpack.c.b16 %v1890, %v1886
        %v2275 = vpack.c.b16 %v1891, %v1887
        %v2276 = vpack.c.b16 %v1896, %v1892
        %v2277 = vpack.c.b16 %v1897, %v1893
        %v2278 = vpack.c.b16 %v1898, %v1894
        %v2279 = vpack.c.b16 %v1899, %v1895
        %v2280 = vpack.c.b16 %v1904, %v1900
        %v2281 = vpack.c.b16 %v1905, %v1901
        %v2282 = vpack.c.b16 %v1906, %v1902
        %v2283 = vpack.c.b16 %v1907, %v1903
        %v2284 = vpack.c.b16 %v1912, %v1908
        %v2285 = vpack.c.b16 %v1913, %v1909
        %v2286 = vpack.c.b16 %v1914, %v1910
        %v2287 = vpack.c.b16 %v1915, %v1911
        %v2288 = vpack.c.b16 %v1920, %v1916
        %v2289 = vpack.c.b16 %v1921, %v1917
        %v2290 = vpack.c.b16 %v1922, %v1918
        %v2291 = vpack.c.b16 %v1923, %v1919
        %v2292 = vpack.c.b16 %v1928, %v1924
        %v2293 = vpack.c.b16 %v1929, %v1925
        %v2294 = vpack.c.b16 %v1930, %v1926
        %v2295 = vpack.c.b16 %v1931, %v1927
        %v2296 = vpack.c.b16 %v1936, %v1932
        %v2297 = vpack.c.b16 %v1937, %v1933
        %v2298 = vpack.c.b16 %v1938, %v1934
        %v2299 = vpack.c.b16 %v1939, %v1935
        %v2300 = vpack.c.b16 %v1944, %v1940
        %v2301 = vpack.c.b16 %v1945, %v1941
        %v2302 = vpack.c.b16 %v1946, %v1942
        %v2303 = vpack.c.b16 %v1947, %v1943
        %v2304 = vpack.c.b16 %v1952, %v1948
        %v2305 = vpack.c.b16 %v1953, %v1949
        %v2306 = vpack.c.b16 %v1954, %v1950
        %v2307 = vpack.c.b16 %v1955, %v1951
        %v2308 = vpack.c.b16 %v1960, %v1956
        %v2309 = vpack.c.b16 %v1961, %v1957
        %v2310 = vpack.c.b16 %v1962, %v1958
        %v2311 = vpack.c.b16 %v1963, %v1959
        %v2312 = vpack.c.b16 %v1968, %v1964
        %v2313 = vpack.c.b16 %v1969, %v1965
        %v2314 = vpack.c.b16 %v1970, %v1966
        %v2315 = vpack.c.b16 %v1971, %v1967
        %v2316 = vpack.c.b16 %v1976, %v1972
        %v2317 = vpack.c.b16 %v1977, %v1973
        %v2318 = vpack.c.b16 %v1978, %v1974
        %v2319 = vpack.c.b16 %v1979, %v1975
        %v2320 = vpack.c.b16 %v1984, %v1980
        %v2321 = vpack.c.b16 %v1985, %v1981
        %v2322 = vpack.c.b16 %v1986, %v1982
        %v2323 = vpack.c.b16 %v1987, %v1983
        %v2324 = vpack.c.b16 %v1992, %v1988
        %v2325 = vpack.c.b16 %v1993, %v1989
        %v2326 = vpack.c.b16 %v1994, %v1990
        %v2327 = vpack.c.b16 %v1995, %v1991
        %v2328 = vpack.c.b16 %v2000, %v1996
        %v2329 = vpack.c.b16 %v2001, %v1997
        %v2330 = vpack.c.b16 %v2002, %v1998
        %v2331 = vpack.c.b16 %v2003, %v1999
        %v2332 = vpack.c.b16 %v2008, %v2004
        %v2333 = vpack.c.b16 %v2009, %v2005
        %v2334 = vpack.c.b16 %v2010, %v2006
        %v2335 = vpack.c.b16 %v2011, %v2007
        %v2336 = vpack.c.b16 %v2016, %v2012
        %v2337 = vpack.c.b16 %v2017, %v2013
        %v2338 = vpack.c.b16 %v2018, %v2014
        %v2339 = vpack.c.b16 %v2019, %v2015
        %v2340 = vpack.c.b16 %v2024, %v2020
        %v2341 = vpack.c.b16 %v2025, %v2021
        %v2342 = vpack.c.b16 %v2026, %v2022
        %v2343 = vpack.c.b16 %v2027, %v2023
        %v2344 = vpack.c.b16 %v2032, %v2028
        %v2345 = vpack.c.b16 %v2033, %v2029
        %v2346 = vpack.c.b16 %v2034, %v2030
        %v2347 = vpack.c.b16 %v2035, %v2031
        %v2348 = vpack.c.b16 %v2040, %v2036
        %v2349 = vpack.c.b16 %v2041, %v2037
        %v2350 = vpack.c.b16 %v2042, %v2038
        %v2351 = vpack.c.b16 %v2043, %v2039
        %v2352 = vpack.c.b16 %v2048, %v2044
        %v2353 = vpack.c.b16 %v2049, %v2045
        %v2354 = vpack.c.b16 %v2050, %v2046
        %v2355 = vpack.c.b16 %v2051, %v2047
        %v2356 = vpack.c.b16 %v2056, %v2052
        %v2357 = vpack.c.b16 %v2057, %v2053
        %v2358 = vpack.c.b16 %v2058, %v2054
        %v2359 = vpack.c.b16 %v2059, %v2055
        %v2360 = vpack.c.b16 %v2064, %v2060
        %v2361 = vpack.c.b16 %v2065, %v2061
        %v2362 = vpack.c.b16 %v2066, %v2062
        %v2363 = vpack.c.b16 %v2067, %v2063
        %v2364 = vpack.c.b16 %v2072, %v2068
        %v2365 = vpack.c.b16 %v2073, %v2069
        %v2366 = vpack.c.b16 %v2074, %v2070
        %v2367 = vpack.c.b16 %v2075, %v2071
        %v2368 = vpack.c.b16 %v2080, %v2076
        %v2369 = vpack.c.b16 %v2081, %v2077
        %v2370 = vpack.c.b16 %v2082, %v2078
        %v2371 = vpack.c.b16 %v2083, %v2079
        %v2372 = vpack.c.b16 %v2088, %v2084
        %v2373 = vpack.c.b16 %v2089, %v2085
        %v2374 = vpack.c.b16 %v2090, %v2086
        %v2375 = vpack.c.b16 %v2091, %v2087
        %v2376 = vpack.c.b16 %v2096, %v2092
        %v2377 = vpack.c.b16 %v2097, %v2093
        %v2378 = vpack.c.b16 %v2098, %v2094
        %v2379 = vpack.c.b16 %v2099, %v2095
        %v2380 = vpack.c.b16 %v2104, %v2100
        %v2381 = vpack.c.b16 %v2105, %v2101
        %v2382 = vpack.c.b16 %v2106, %v2102
        %v2383 = vpack.c.b16 %v2107, %v2103
        %v2384 = vpack.c.b16 %v2112, %v2108
        %v2385 = vpack.c.b16 %v2113, %v2109
        %v2386 = vpack.c.b16 %v2114, %v2110
        %v2387 = vpack.c.b16 %v2115, %v2111
        %v2388 = vpack.c.b16 %v2120, %v2116
        %v2389 = vpack.c.b16 %v2121, %v2117
        %v2390 = vpack.c.b16 %v2122, %v2118
        %v2391 = vpack.c.b16 %v2123, %v2119
        %v2392 = vpack.c.b16 %v2128, %v2124
        %v2393 = vpack.c.b16 %v2129, %v2125
        %v2394 = vpack.c.b16 %v2130, %v2126
        %v2395 = vpack.c.b16 %v2131, %v2127
        %v2396 = vpack.c.b16 %v2136, %v2132
        %v2397 = vpack.c.b16 %v2137, %v2133
        %v2398 = vpack.c.b16 %v2138, %v2134
        %v2399 = vpack.c.b16 %v2139, %v2135
        %v2400 = vpack.c.b16 %v2144, %v2140
        %v2401 = vpack.c.b16 %v2145, %v2141
        %v2402 = vpack.c.b16 %v2146, %v2142
        %v2403 = vpack.c.b16 %v2147, %v2143
        %2660 = vmatprep.subr.bf16.mxu0 %v2177
        %2661 = vmatpush1.bf16.msra.mxu0 %v2176
        %2662 = vmatprep.subr.bf16.mxu0 %v2173
        %2663 = vmatpush1.bf16.msra.mxu0 %v2172
        %2664 = vmatprep.subr.bf16.mxu0 %v2169
        %2665 = vmatpush1.bf16.msra.mxu0 %v2168
        %2666 = vmatprep.subr.bf16.mxu0 %v2165
        %2667 = vmatpush1.bf16.msra.mxu0 %v2164
        %2668 = vmatprep.subr.bf16.mxu0 %v2161
        %2669 = vmatpush1.bf16.msra.mxu0 %v2160
        %2670 = vmatprep.subr.bf16.mxu0 %v2157
        %2671 = vmatpush1.bf16.msra.mxu0 %v2156
        %2672 = vmatprep.subr.bf16.mxu0 %v2153
        %2673 = vmatpush1.bf16.msra.mxu0 %v2152
        %2674 = vmatprep.subr.bf16.mxu0 %v2149
        %2675 = vmatpush1.bf16.msra.mxu0 %v2148
        %2676 = vmatprep.subr.bf16.mxu0 %v2209
        %2677 = vmatpush2.bf16.msra.mxu0 %v2208
        %2678 = vmatprep.subr.bf16.mxu0 %v2205
        %2679 = vmatpush2.bf16.msra.mxu0 %v2204
        %2680 = vmatprep.subr.bf16.mxu0 %v2201
        %2681 = vmatpush2.bf16.msra.mxu0 %v2200
        %2682 = vmatprep.subr.bf16.mxu0 %v2197
        %2683 = vmatpush2.bf16.msra.mxu0 %v2196
        %2684 = vmatprep.subr.bf16.mxu0 %v2193
        %2685 = vmatpush2.bf16.msra.mxu0 %v2192
        %2686 = vmatprep.subr.bf16.mxu0 %v2189
        %2687 = vmatpush2.bf16.msra.mxu0 %v2188
        %2688 = vmatprep.subr.bf16.mxu0 %v2185
        %2689 = vmatpush2.bf16.msra.mxu0 %v2184
        %2690 = vmatprep.subr.bf16.mxu0 %v2181
        %2691 = vmatpush2.bf16.msra.mxu0 %v2180
        %2692 = vmatprep.mubr.bf16.mxu0 %v1101
        %2693 = vmatmul.mubr.bf16.gmra.mxu0 %v1100
        %v2694 = vpop.f32.mrf.mxu0
        %v2695 = vadd.f32 %v1367, %v2694
        %v2696 = vpop.f32.mrf.mxu0
        %v2697 = vadd.f32 %v1371, %v2696
        %v2698 = vpop.f32.mrf.mxu0
        %v2699 = vpop.f32.mrf.mxu0
        %2700 = vdwg.mxu0
        %2701 = vmatprep.subr.bf16.mxu0 %v2241
        %2702 = vmatpush1.bf16.msra.mxu0 %v2240
        %2703 = vmatprep.subr.bf16.mxu0 %v2237
        %2704 = vmatpush1.bf16.msra.mxu0 %v2236
        %2705 = vmatprep.subr.bf16.mxu0 %v2233
        %2706 = vmatpush1.bf16.msra.mxu0 %v2232
        %2707 = vmatprep.subr.bf16.mxu0 %v2229
        %2708 = vmatpush1.bf16.msra.mxu0 %v2228
        %2709 = vmatprep.subr.bf16.mxu0 %v2225
        %2710 = vmatpush1.bf16.msra.mxu0 %v2224
        %2711 = vmatprep.subr.bf16.mxu0 %v2221
        %2712 = vmatpush1.bf16.msra.mxu0 %v2220
        %2713 = vmatprep.subr.bf16.mxu0 %v2217
        %2714 = vmatpush1.bf16.msra.mxu0 %v2216
        %2715 = vmatprep.subr.bf16.mxu0 %v2213
        %2716 = vmatpush1.bf16.msra.mxu0 %v2212
        %2717 = vmatprep.subr.bf16.mxu0 %v2273
        %2718 = vmatpush2.bf16.msra.mxu0 %v2272
        %2719 = vmatprep.subr.bf16.mxu0 %v2269
        %2720 = vmatpush2.bf16.msra.mxu0 %v2268
        %2721 = vmatprep.subr.bf16.mxu0 %v2265
        %2722 = vmatpush2.bf16.msra.mxu0 %v2264
        %2723 = vmatprep.subr.bf16.mxu0 %v2261
        %2724 = vmatpush2.bf16.msra.mxu0 %v2260
        %2725 = vmatprep.subr.bf16.mxu0 %v2257
        %2726 = vmatpush2.bf16.msra.mxu0 %v2256
        %2727 = vmatprep.subr.bf16.mxu0 %v2253
        %2728 = vmatpush2.bf16.msra.mxu0 %v2252
        %2729 = vmatprep.subr.bf16.mxu0 %v2249
        %2730 = vmatpush2.bf16.msra.mxu0 %v2248
        %2731 = vmatprep.subr.bf16.mxu0 %v2245
        %2732 = vmatpush2.bf16.msra.mxu0 %v2244
        %2733 = vmatprep.mubr.bf16.mxu0 %v1103
        %2734 = vmatmul.mubr.bf16.gmra.mxu0 %v1102
        %v2735 = vpop.f32.mrf.mxu0
        %v2736 = vadd.f32 %v2695, %v2735
        %v2737 = vpop.f32.mrf.mxu0
        %v2738 = vadd.f32 %v2697, %v2737
        %v2739 = vpop.f32.mrf.mxu0
        %v2740 = vpop.f32.mrf.mxu0
        %2741 = vdwg.mxu0
        %2742 = vmatprep.subr.bf16.mxu0 %v2305
        %2743 = vmatpush1.bf16.msra.mxu0 %v2304
        %2744 = vmatprep.subr.bf16.mxu0 %v2301
        %2745 = vmatpush1.bf16.msra.mxu0 %v2300
        %2746 = vmatprep.subr.bf16.mxu0 %v2297
        %2747 = vmatpush1.bf16.msra.mxu0 %v2296
        %2748 = vmatprep.subr.bf16.mxu0 %v2293
        %2749 = vmatpush1.bf16.msra.mxu0 %v2292
        %2750 = vmatprep.subr.bf16.mxu0 %v2289
        %2751 = vmatpush1.bf16.msra.mxu0 %v2288
        %2752 = vmatprep.subr.bf16.mxu0 %v2285
        %2753 = vmatpush1.bf16.msra.mxu0 %v2284
        %2754 = vmatprep.subr.bf16.mxu0 %v2281
        %2755 = vmatpush1.bf16.msra.mxu0 %v2280
        %2756 = vmatprep.subr.bf16.mxu0 %v2277
        %2757 = vmatpush1.bf16.msra.mxu0 %v2276
        %2758 = vmatprep.subr.bf16.mxu0 %v2337
        %2759 = vmatpush2.bf16.msra.mxu0 %v2336
        %2760 = vmatprep.subr.bf16.mxu0 %v2333
        %2761 = vmatpush2.bf16.msra.mxu0 %v2332
        %2762 = vmatprep.subr.bf16.mxu0 %v2329
        %2763 = vmatpush2.bf16.msra.mxu0 %v2328
        %2764 = vmatprep.subr.bf16.mxu0 %v2325
        %2765 = vmatpush2.bf16.msra.mxu0 %v2324
        %2766 = vmatprep.subr.bf16.mxu0 %v2321
        %2767 = vmatpush2.bf16.msra.mxu0 %v2320
        %2768 = vmatprep.subr.bf16.mxu0 %v2317
        %2769 = vmatpush2.bf16.msra.mxu0 %v2316
        %2770 = vmatprep.subr.bf16.mxu0 %v2313
        %2771 = vmatpush2.bf16.msra.mxu0 %v2312
        %2772 = vmatprep.subr.bf16.mxu0 %v2309
        %2773 = vmatpush2.bf16.msra.mxu0 %v2308
        %2774 = vmatprep.mubr.bf16.mxu0 %v1105
        %2775 = vmatmul.mubr.bf16.gmra.mxu0 %v1104
        %v2776 = vpop.f32.mrf.mxu0
        %v2777 = vadd.f32 %v2736, %v2776
        %v2778 = vpop.f32.mrf.mxu0
        %v2779 = vadd.f32 %v2738, %v2778
        %v2780 = vpop.f32.mrf.mxu0
        %v2781 = vpop.f32.mrf.mxu0
        %2782 = vdwg.mxu0
        %2783 = vmatprep.subr.bf16.mxu0 %v2369
        %2784 = vmatpush1.bf16.msra.mxu0 %v2368
        %2785 = vmatprep.subr.bf16.mxu0 %v2365
        %2786 = vmatpush1.bf16.msra.mxu0 %v2364
        %2787 = vmatprep.subr.bf16.mxu0 %v2361
        %2788 = vmatpush1.bf16.msra.mxu0 %v2360
        %2789 = vmatprep.subr.bf16.mxu0 %v2357
        %2790 = vmatpush1.bf16.msra.mxu0 %v2356
        %2791 = vmatprep.subr.bf16.mxu0 %v2353
        %2792 = vmatpush1.bf16.msra.mxu0 %v2352
        %2793 = vmatprep.subr.bf16.mxu0 %v2349
        %2794 = vmatpush1.bf16.msra.mxu0 %v2348
        %2795 = vmatprep.subr.bf16.mxu0 %v2345
        %2796 = vmatpush1.bf16.msra.mxu0 %v2344
        %2797 = vmatprep.subr.bf16.mxu0 %v2341
        %2798 = vmatpush1.bf16.msra.mxu0 %v2340
        %2799 = vmatprep.subr.bf16.mxu0 %v2401
        %2800 = vmatpush2.bf16.msra.mxu0 %v2400
        %2801 = vmatprep.subr.bf16.mxu0 %v2397
        %2802 = vmatpush2.bf16.msra.mxu0 %v2396
        %2803 = vmatprep.subr.bf16.mxu0 %v2393
        %2804 = vmatpush2.bf16.msra.mxu0 %v2392
        %2805 = vmatprep.subr.bf16.mxu0 %v2389
        %2806 = vmatpush2.bf16.msra.mxu0 %v2388
        %2807 = vmatprep.subr.bf16.mxu0 %v2385
        %2808 = vmatpush2.bf16.msra.mxu0 %v2384
        %2809 = vmatprep.subr.bf16.mxu0 %v2381
        %2810 = vmatpush2.bf16.msra.mxu0 %v2380
        %2811 = vmatprep.subr.bf16.mxu0 %v2377
        %2812 = vmatpush2.bf16.msra.mxu0 %v2376
        %2813 = vmatprep.subr.bf16.mxu0 %v2373
        %2814 = vmatpush2.bf16.msra.mxu0 %v2372
        %2815 = vmatprep.mubr.bf16.mxu0 %v1107
        %2816 = vmatmul.mubr.bf16.gmra.mxu0 %v1106
        %v2817 = vpop.f32.mrf.mxu0
        %v2818 = vadd.f32 %v2777, %v2817
        %v2819 = vpop.f32.mrf.mxu0
        %v2820 = vadd.f32 %v2779, %v2819
        %v2821 = vpop.f32.mrf.mxu0
        %v2822 = vpop.f32.mrf.mxu0
        %2823 = vdwg.mxu0
        %2824 = vmatprep.subr.bf16.mxu0 %v2179
        %2825 = vmatpush1.bf16.msra.mxu0 %v2178
        %2826 = vmatprep.subr.bf16.mxu0 %v2175
        %2827 = vmatpush1.bf16.msra.mxu0 %v2174
        %2828 = vmatprep.subr.bf16.mxu0 %v2171
        %2829 = vmatpush1.bf16.msra.mxu0 %v2170
        %2830 = vmatprep.subr.bf16.mxu0 %v2167
        %2831 = vmatpush1.bf16.msra.mxu0 %v2166
        %2832 = vmatprep.subr.bf16.mxu0 %v2163
        %2833 = vmatpush1.bf16.msra.mxu0 %v2162
        %2834 = vmatprep.subr.bf16.mxu0 %v2159
        %2835 = vmatpush1.bf16.msra.mxu0 %v2158
        %2836 = vmatprep.subr.bf16.mxu0 %v2155
        %2837 = vmatpush1.bf16.msra.mxu0 %v2154
        %2838 = vmatprep.subr.bf16.mxu0 %v2151
        %2839 = vmatpush1.bf16.msra.mxu0 %v2150
        %2840 = vmatprep.subr.bf16.mxu0 %v2211
        %2841 = vmatpush2.bf16.msra.mxu0 %v2210
        %2842 = vmatprep.subr.bf16.mxu0 %v2207
        %2843 = vmatpush2.bf16.msra.mxu0 %v2206
        %2844 = vmatprep.subr.bf16.mxu0 %v2203
        %2845 = vmatpush2.bf16.msra.mxu0 %v2202
        %2846 = vmatprep.subr.bf16.mxu0 %v2199
        %2847 = vmatpush2.bf16.msra.mxu0 %v2198
        %2848 = vmatprep.subr.bf16.mxu0 %v2195
        %2849 = vmatpush2.bf16.msra.mxu0 %v2194
        %2850 = vmatprep.subr.bf16.mxu0 %v2191
        %2851 = vmatpush2.bf16.msra.mxu0 %v2190
        %2852 = vmatprep.subr.bf16.mxu0 %v2187
        %2853 = vmatpush2.bf16.msra.mxu0 %v2186
        %2854 = vmatprep.subr.bf16.mxu0 %v2183
        %2855 = vmatpush2.bf16.msra.mxu0 %v2182
        %2856 = vmatprep.mubr.bf16.mxu0 %v1101
        %2857 = vmatmul.mubr.bf16.gmra.mxu0 %v1100
        %v2858 = vpop.f32.mrf.mxu0
        %v2859 = vadd.f32 %v1375, %v2858
        %v2860 = vpop.f32.mrf.mxu0
        %v2861 = vadd.f32 %v1379, %v2860
        %v2862 = vpop.f32.mrf.mxu0
        %v2863 = vpop.f32.mrf.mxu0
        %2864 = vdwg.mxu0
        %2865 = vmatprep.subr.bf16.mxu0 %v2243
        %2866 = vmatpush1.bf16.msra.mxu0 %v2242
        %2867 = vmatprep.subr.bf16.mxu0 %v2239
        %2868 = vmatpush1.bf16.msra.mxu0 %v2238
        %2869 = vmatprep.subr.bf16.mxu0 %v2235
        %2870 = vmatpush1.bf16.msra.mxu0 %v2234
        %2871 = vmatprep.subr.bf16.mxu0 %v2231
        %2872 = vmatpush1.bf16.msra.mxu0 %v2230
        %2873 = vmatprep.subr.bf16.mxu0 %v2227
        %2874 = vmatpush1.bf16.msra.mxu0 %v2226
        %2875 = vmatprep.subr.bf16.mxu0 %v2223
        %2876 = vmatpush1.bf16.msra.mxu0 %v2222
        %2877 = vmatprep.subr.bf16.mxu0 %v2219
        %2878 = vmatpush1.bf16.msra.mxu0 %v2218
        %2879 = vmatprep.subr.bf16.mxu0 %v2215
        %2880 = vmatpush1.bf16.msra.mxu0 %v2214
        %2881 = vmatprep.subr.bf16.mxu0 %v2275
        %2882 = vmatpush2.bf16.msra.mxu0 %v2274
        %2883 = vmatprep.subr.bf16.mxu0 %v2271
        %2884 = vmatpush2.bf16.msra.mxu0 %v2270
        %2885 = vmatprep.subr.bf16.mxu0 %v2267
        %2886 = vmatpush2.bf16.msra.mxu0 %v2266
        %2887 = vmatprep.subr.bf16.mxu0 %v2263
        %2888 = vmatpush2.bf16.msra.mxu0 %v2262
        %2889 = vmatprep.subr.bf16.mxu0 %v2259
        %2890 = vmatpush2.bf16.msra.mxu0 %v2258
        %2891 = vmatprep.subr.bf16.mxu0 %v2255
        %2892 = vmatpush2.bf16.msra.mxu0 %v2254
        %2893 = vmatprep.subr.bf16.mxu0 %v2251
        %2894 = vmatpush2.bf16.msra.mxu0 %v2250
        %2895 = vmatprep.subr.bf16.mxu0 %v2247
        %2896 = vmatpush2.bf16.msra.mxu0 %v2246
        %2897 = vmatprep.mubr.bf16.mxu0 %v1103
        %2898 = vmatmul.mubr.bf16.gmra.mxu0 %v1102
        %v2899 = vpop.f32.mrf.mxu0
        %v2900 = vadd.f32 %v2859, %v2899
        %v2901 = vpop.f32.mrf.mxu0
        %v2902 = vadd.f32 %v2861, %v2901
        %v2903 = vpop.f32.mrf.mxu0
        %v2904 = vpop.f32.mrf.mxu0
        %2905 = vdwg.mxu0
        %2906 = vmatprep.subr.bf16.mxu0 %v2307
        %2907 = vmatpush1.bf16.msra.mxu0 %v2306
        %2908 = vmatprep.subr.bf16.mxu0 %v2303
        %2909 = vmatpush1.bf16.msra.mxu0 %v2302
        %2910 = vmatprep.subr.bf16.mxu0 %v2299
        %2911 = vmatpush1.bf16.msra.mxu0 %v2298
        %2912 = vmatprep.subr.bf16.mxu0 %v2295
        %2913 = vmatpush1.bf16.msra.mxu0 %v2294
        %2914 = vmatprep.subr.bf16.mxu0 %v2291
        %2915 = vmatpush1.bf16.msra.mxu0 %v2290
        %2916 = vmatprep.subr.bf16.mxu0 %v2287
        %2917 = vmatpush1.bf16.msra.mxu0 %v2286
        %2918 = vmatprep.subr.bf16.mxu0 %v2283
        %2919 = vmatpush1.bf16.msra.mxu0 %v2282
        %2920 = vmatprep.subr.bf16.mxu0 %v2279
        %2921 = vmatpush1.bf16.msra.mxu0 %v2278
        %2922 = vmatprep.subr.bf16.mxu0 %v2339
        %2923 = vmatpush2.bf16.msra.mxu0 %v2338
        %2924 = vmatprep.subr.bf16.mxu0 %v2335
        %2925 = vmatpush2.bf16.msra.mxu0 %v2334
        %2926 = vmatprep.subr.bf16.mxu0 %v2331
        %2927 = vmatpush2.bf16.msra.mxu0 %v2330
        %2928 = vmatprep.subr.bf16.mxu0 %v2327
        %2929 = vmatpush2.bf16.msra.mxu0 %v2326
        %2930 = vmatprep.subr.bf16.mxu0 %v2323
        %2931 = vmatpush2.bf16.msra.mxu0 %v2322
        %2932 = vmatprep.subr.bf16.mxu0 %v2319
        %2933 = vmatpush2.bf16.msra.mxu0 %v2318
        %2934 = vmatprep.subr.bf16.mxu0 %v2315
        %2935 = vmatpush2.bf16.msra.mxu0 %v2314
        %2936 = vmatprep.subr.bf16.mxu0 %v2311
        %2937 = vmatpush2.bf16.msra.mxu0 %v2310
        %2938 = vmatprep.mubr.bf16.mxu0 %v1105
        %2939 = vmatmul.mubr.bf16.gmra.mxu0 %v1104
        %v2940 = vpop.f32.mrf.mxu0
        %v2941 = vadd.f32 %v2900, %v2940
        %v2942 = vpop.f32.mrf.mxu0
        %v2943 = vadd.f32 %v2902, %v2942
        %v2944 = vpop.f32.mrf.mxu0
        %v2945 = vpop.f32.mrf.mxu0
        %2946 = vdwg.mxu0
        %2947 = vmatprep.subr.bf16.mxu0 %v2371
        %2948 = vmatpush1.bf16.msra.mxu0 %v2370
        %2949 = vmatprep.subr.bf16.mxu0 %v2367
        %2950 = vmatpush1.bf16.msra.mxu0 %v2366
        %2951 = vmatprep.subr.bf16.mxu0 %v2363
        %2952 = vmatpush1.bf16.msra.mxu0 %v2362
        %2953 = vmatprep.subr.bf16.mxu0 %v2359
        %2954 = vmatpush1.bf16.msra.mxu0 %v2358
        %2955 = vmatprep.subr.bf16.mxu0 %v2355
        %2956 = vmatpush1.bf16.msra.mxu0 %v2354
        %2957 = vmatprep.subr.bf16.mxu0 %v2351
        %2958 = vmatpush1.bf16.msra.mxu0 %v2350
        %2959 = vmatprep.subr.bf16.mxu0 %v2347
        %2960 = vmatpush1.bf16.msra.mxu0 %v2346
        %2961 = vmatprep.subr.bf16.mxu0 %v2343
        %2962 = vmatpush1.bf16.msra.mxu0 %v2342
        %2963 = vmatprep.subr.bf16.mxu0 %v2403
        %2964 = vmatpush2.bf16.msra.mxu0 %v2402
        %2965 = vmatprep.subr.bf16.mxu0 %v2399
        %2966 = vmatpush2.bf16.msra.mxu0 %v2398
        %2967 = vmatprep.subr.bf16.mxu0 %v2395
        %2968 = vmatpush2.bf16.msra.mxu0 %v2394
        %2969 = vmatprep.subr.bf16.mxu0 %v2391
        %2970 = vmatpush2.bf16.msra.mxu0 %v2390
        %2971 = vmatprep.subr.bf16.mxu0 %v2387
        %2972 = vmatpush2.bf16.msra.mxu0 %v2386
        %2973 = vmatprep.subr.bf16.mxu0 %v2383
        %2974 = vmatpush2.bf16.msra.mxu0 %v2382
        %2975 = vmatprep.subr.bf16.mxu0 %v2379
        %2976 = vmatpush2.bf16.msra.mxu0 %v2378
        %2977 = vmatprep.subr.bf16.mxu0 %v2375
        %2978 = vmatpush2.bf16.msra.mxu0 %v2374
        %2979 = vmatprep.mubr.bf16.mxu0 %v1107
        %2980 = vmatmul.mubr.bf16.gmra.mxu0 %v1106
        %v2981 = vpop.f32.mrf.mxu0
        %v2982 = vadd.f32 %v2941, %v2981
        %v2983 = vpop.f32.mrf.mxu0
        %v2984 = vadd.f32 %v2943, %v2983
        %v2985 = vpop.f32.mrf.mxu0
        %v2986 = vpop.f32.mrf.mxu0
        %2987 = vdwg.mxu0
        %v2988 = vmax.f32 %v2818, 0.0
        %v2989 = vmax.f32 %v2820, 0.0
        %v2990 = vmax.f32 %v2982, 0.0
        %v2991 = vmax.f32 %v2984, 0.0
        %v2992 = vpack.c.bf16 %v2988, %v2988
        %v2993 = vpack.c.bf16 %v2989, %v2989
        %v2994 = vpack.c.bf16 %v2990, %v2990
        %v2995 = vpack.c.bf16 %v2991, %v2991
        %v2996 = vld [vmem:[%s319] sm:$0xff]
        %v2997 = vld [vmem:[%s319 + $0x8] sm:$0xff]
        %v2998 = vld [vmem:[%s319 + $0x10] sm:$0xff]
        %v2999 = vld [vmem:[%s319 + $0x18] sm:$0xff]
        %v3000 = vld [vmem:[%s319 + $0x20] sm:$0xff]
        %v3001 = vld [vmem:[%s319 + $0x28] sm:$0xff]
        %v3002 = vld [vmem:[%s319 + $0x30] sm:$0xff]
        %v3003 = vld [vmem:[%s319 + $0x38] sm:$0xff]
        %v3004 = vld [vmem:[%s319 + $0x40] sm:$0xff]
        %v3005 = vld [vmem:[%s319 + $0x48] sm:$0xff]
        %v3006 = vld [vmem:[%s319 + $0x50] sm:$0xff]
        %v3007 = vld [vmem:[%s319 + $0x58] sm:$0xff]
        %v3008 = vld [vmem:[%s319 + $0x60] sm:$0xff]
        %v3009 = vld [vmem:[%s319 + $0x68] sm:$0xff]
        %v3010 = vld [vmem:[%s319 + $0x70] sm:$0xff]
        %v3011 = vld [vmem:[%s319 + $0x78] sm:$0xff]
        %v3012 = vld [vmem:[%s319 + $0x80] sm:$0xff]
        %v3013 = vld [vmem:[%s319 + $0x88] sm:$0xff]
        %v3014 = vld [vmem:[%s319 + $0x90] sm:$0xff]
        %v3015 = vld [vmem:[%s319 + $0x98] sm:$0xff]
        %v3016 = vld [vmem:[%s319 + $0xa0] sm:$0xff]
        %v3017 = vld [vmem:[%s319 + $0xa8] sm:$0xff]
        %v3018 = vld [vmem:[%s319 + $0xb0] sm:$0xff]
        %v3019 = vld [vmem:[%s319 + $0xb8] sm:$0xff]
        %v3020 = vld [vmem:[%s319 + $0xc0] sm:$0xff]
        %v3021 = vld [vmem:[%s319 + $0xc8] sm:$0xff]
        %v3022 = vld [vmem:[%s319 + $0xd0] sm:$0xff]
        %v3023 = vld [vmem:[%s319 + $0xd8] sm:$0xff]
        %v3024 = vld [vmem:[%s319 + $0xe0] sm:$0xff]
        %v3025 = vld [vmem:[%s319 + $0xe8] sm:$0xff]
        %v3026 = vld [vmem:[%s319 + $0xf0] sm:$0xff]
        %v3027 = vld [vmem:[%s319 + $0xf8] sm:$0xff]
        %v3028 = vld [vmem:[%s319 + $0x100] sm:$0xff]
        %v3029 = vld [vmem:[%s319 + $0x108] sm:$0xff]
        %v3030 = vld [vmem:[%s319 + $0x110] sm:$0xff]
        %v3031 = vld [vmem:[%s319 + $0x118] sm:$0xff]
        %v3032 = vld [vmem:[%s319 + $0x120] sm:$0xff]
        %v3033 = vld [vmem:[%s319 + $0x128] sm:$0xff]
        %v3034 = vld [vmem:[%s319 + $0x130] sm:$0xff]
        %v3035 = vld [vmem:[%s319 + $0x138] sm:$0xff]
        %v3036 = vld [vmem:[%s319 + $0x140] sm:$0xff]
        %v3037 = vld [vmem:[%s319 + $0x148] sm:$0xff]
        %v3038 = vld [vmem:[%s319 + $0x150] sm:$0xff]
        %v3039 = vld [vmem:[%s319 + $0x158] sm:$0xff]
        %v3040 = vld [vmem:[%s319 + $0x160] sm:$0xff]
        %v3041 = vld [vmem:[%s319 + $0x168] sm:$0xff]
        %v3042 = vld [vmem:[%s319 + $0x170] sm:$0xff]
        %v3043 = vld [vmem:[%s319 + $0x178] sm:$0xff]
        %v3044 = vld [vmem:[%s319 + $0x180] sm:$0xff]
        %v3045 = vld [vmem:[%s319 + $0x188] sm:$0xff]
        %v3046 = vld [vmem:[%s319 + $0x190] sm:$0xff]
        %v3047 = vld [vmem:[%s319 + $0x198] sm:$0xff]
        %v3048 = vld [vmem:[%s319 + $0x1a0] sm:$0xff]
        %v3049 = vld [vmem:[%s319 + $0x1a8] sm:$0xff]
        %v3050 = vld [vmem:[%s319 + $0x1b0] sm:$0xff]
        %v3051 = vld [vmem:[%s319 + $0x1b8] sm:$0xff]
        %v3052 = vld [vmem:[%s319 + $0x1c0] sm:$0xff]
        %v3053 = vld [vmem:[%s319 + $0x1c8] sm:$0xff]
        %v3054 = vld [vmem:[%s319 + $0x1d0] sm:$0xff]
        %v3055 = vld [vmem:[%s319 + $0x1d8] sm:$0xff]
        %v3056 = vld [vmem:[%s319 + $0x1e0] sm:$0xff]
        %v3057 = vld [vmem:[%s319 + $0x1e8] sm:$0xff]
        %v3058 = vld [vmem:[%s319 + $0x1f0] sm:$0xff]
        %v3059 = vld [vmem:[%s319 + $0x1f8] sm:$0xff]
        %v3060 = vlaneseq
        %v3061 = vshrl.u32 %v3060, 7
        %v3062 = vsub.s32 1, %v3061
        %v3063 = vrot.slane %v378, %v3062
        %v3064 = vlaneseq
        %v3065 = vshrl.u32 %v3064, 7
        %v3066 = vsub.s32 1, %v3065
        %v3067 = vrot.slane %v379, %v3066
        %v3132 = vunpack.c.l.b16 %v2996
        %v3133 = vunpack.c.h.b16 %v2996
        %v3134 = vunpack.c.l.b16 %v2997
        %v3135 = vunpack.c.h.b16 %v2997
        %v3136 = vunpack.c.l.b16 %v2998
        %v3137 = vunpack.c.h.b16 %v2998
        %v3138 = vunpack.c.l.b16 %v2999
        %v3139 = vunpack.c.h.b16 %v2999
        %v3140 = vunpack.c.l.b16 %v3000
        %v3141 = vunpack.c.h.b16 %v3000
        %v3142 = vunpack.c.l.b16 %v3001
        %v3143 = vunpack.c.h.b16 %v3001
        %v3144 = vunpack.c.l.b16 %v3002
        %v3145 = vunpack.c.h.b16 %v3002
        %v3146 = vunpack.c.l.b16 %v3003
        %v3147 = vunpack.c.h.b16 %v3003
        %v3148 = vunpack.c.l.b16 %v3004
        %v3149 = vunpack.c.h.b16 %v3004
        %v3150 = vunpack.c.l.b16 %v3005
        %v3151 = vunpack.c.h.b16 %v3005
        %v3152 = vunpack.c.l.b16 %v3006
        %v3153 = vunpack.c.h.b16 %v3006
        %v3154 = vunpack.c.l.b16 %v3007
        %v3155 = vunpack.c.h.b16 %v3007
        %v3156 = vunpack.c.l.b16 %v3008
        %v3157 = vunpack.c.h.b16 %v3008
        %v3158 = vunpack.c.l.b16 %v3009
        %v3159 = vunpack.c.h.b16 %v3009
        %v3160 = vunpack.c.l.b16 %v3010
        %v3161 = vunpack.c.h.b16 %v3010
        %v3162 = vunpack.c.l.b16 %v3011
        %v3163 = vunpack.c.h.b16 %v3011
        %v3164 = vunpack.c.l.b16 %v3012
        %v3165 = vunpack.c.h.b16 %v3012
        %v3166 = vunpack.c.l.b16 %v3013
        %v3167 = vunpack.c.h.b16 %v3013
        %v3168 = vunpack.c.l.b16 %v3014
        %v3169 = vunpack.c.h.b16 %v3014
        %v3170 = vunpack.c.l.b16 %v3015
        %v3171 = vunpack.c.h.b16 %v3015
        %v3172 = vunpack.c.l.b16 %v3016
        %v3173 = vunpack.c.h.b16 %v3016
        %v3174 = vunpack.c.l.b16 %v3017
        %v3175 = vunpack.c.h.b16 %v3017
        %v3176 = vunpack.c.l.b16 %v3018
        %v3177 = vunpack.c.h.b16 %v3018
        %v3178 = vunpack.c.l.b16 %v3019
        %v3179 = vunpack.c.h.b16 %v3019
        %v3180 = vunpack.c.l.b16 %v3020
        %v3181 = vunpack.c.h.b16 %v3020
        %v3182 = vunpack.c.l.b16 %v3021
        %v3183 = vunpack.c.h.b16 %v3021
        %v3184 = vunpack.c.l.b16 %v3022
        %v3185 = vunpack.c.h.b16 %v3022
        %v3186 = vunpack.c.l.b16 %v3023
        %v3187 = vunpack.c.h.b16 %v3023
        %v3188 = vunpack.c.l.b16 %v3024
        %v3189 = vunpack.c.h.b16 %v3024
        %v3190 = vunpack.c.l.b16 %v3025
        %v3191 = vunpack.c.h.b16 %v3025
        %v3192 = vunpack.c.l.b16 %v3026
        %v3193 = vunpack.c.h.b16 %v3026
        %v3194 = vunpack.c.l.b16 %v3027
        %v3195 = vunpack.c.h.b16 %v3027
        %v3196 = vunpack.c.l.b16 %v3028
        %v3197 = vunpack.c.h.b16 %v3028
        %v3198 = vunpack.c.l.b16 %v3029
        %v3199 = vunpack.c.h.b16 %v3029
        %v3200 = vunpack.c.l.b16 %v3030
        %v3201 = vunpack.c.h.b16 %v3030
        %v3202 = vunpack.c.l.b16 %v3031
        %v3203 = vunpack.c.h.b16 %v3031
        %v3204 = vunpack.c.l.b16 %v3032
        %v3205 = vunpack.c.h.b16 %v3032
        %v3206 = vunpack.c.l.b16 %v3033
        %v3207 = vunpack.c.h.b16 %v3033
        %v3208 = vunpack.c.l.b16 %v3034
        %v3209 = vunpack.c.h.b16 %v3034
        %v3210 = vunpack.c.l.b16 %v3035
        %v3211 = vunpack.c.h.b16 %v3035
        %v3212 = vunpack.c.l.b16 %v3036
        %v3213 = vunpack.c.h.b16 %v3036
        %v3214 = vunpack.c.l.b16 %v3037
        %v3215 = vunpack.c.h.b16 %v3037
        %v3216 = vunpack.c.l.b16 %v3038
        %v3217 = vunpack.c.h.b16 %v3038
        %v3218 = vunpack.c.l.b16 %v3039
        %v3219 = vunpack.c.h.b16 %v3039
        %v3220 = vunpack.c.l.b16 %v3040
        %v3221 = vunpack.c.h.b16 %v3040
        %v3222 = vunpack.c.l.b16 %v3041
        %v3223 = vunpack.c.h.b16 %v3041
        %v3224 = vunpack.c.l.b16 %v3042
        %v3225 = vunpack.c.h.b16 %v3042
        %v3226 = vunpack.c.l.b16 %v3043
        %v3227 = vunpack.c.h.b16 %v3043
        %v3228 = vunpack.c.l.b16 %v3044
        %v3229 = vunpack.c.h.b16 %v3044
        %v3230 = vunpack.c.l.b16 %v3045
        %v3231 = vunpack.c.h.b16 %v3045
        %v3232 = vunpack.c.l.b16 %v3046
        %v3233 = vunpack.c.h.b16 %v3046
        %v3234 = vunpack.c.l.b16 %v3047
        %v3235 = vunpack.c.h.b16 %v3047
        %v3236 = vunpack.c.l.b16 %v3048
        %v3237 = vunpack.c.h.b16 %v3048
        %v3238 = vunpack.c.l.b16 %v3049
        %v3239 = vunpack.c.h.b16 %v3049
        %v3240 = vunpack.c.l.b16 %v3050
        %v3241 = vunpack.c.h.b16 %v3050
        %v3242 = vunpack.c.l.b16 %v3051
        %v3243 = vunpack.c.h.b16 %v3051
        %v3244 = vunpack.c.l.b16 %v3052
        %v3245 = vunpack.c.h.b16 %v3052
        %v3246 = vunpack.c.l.b16 %v3053
        %v3247 = vunpack.c.h.b16 %v3053
        %v3248 = vunpack.c.l.b16 %v3054
        %v3249 = vunpack.c.h.b16 %v3054
        %v3250 = vunpack.c.l.b16 %v3055
        %v3251 = vunpack.c.h.b16 %v3055
        %v3252 = vunpack.c.l.b16 %v3056
        %v3253 = vunpack.c.h.b16 %v3056
        %v3254 = vunpack.c.l.b16 %v3057
        %v3255 = vunpack.c.h.b16 %v3057
        %v3256 = vunpack.c.l.b16 %v3058
        %v3257 = vunpack.c.h.b16 %v3058
        %v3258 = vunpack.c.l.b16 %v3059
        %v3259 = vunpack.c.h.b16 %v3059
        %v3260 = vpack.c.b16 %v3134, %v3132
        %v3261 = vpack.c.b16 %v3135, %v3133
        %v3262 = vpack.c.b16 %v3138, %v3136
        %v3263 = vpack.c.b16 %v3139, %v3137
        %v3264 = vpack.c.b16 %v3142, %v3140
        %v3265 = vpack.c.b16 %v3143, %v3141
        %v3266 = vpack.c.b16 %v3146, %v3144
        %v3267 = vpack.c.b16 %v3147, %v3145
        %v3268 = vpack.c.b16 %v3150, %v3148
        %v3269 = vpack.c.b16 %v3151, %v3149
        %v3270 = vpack.c.b16 %v3154, %v3152
        %v3271 = vpack.c.b16 %v3155, %v3153
        %v3272 = vpack.c.b16 %v3158, %v3156
        %v3273 = vpack.c.b16 %v3159, %v3157
        %v3274 = vpack.c.b16 %v3162, %v3160
        %v3275 = vpack.c.b16 %v3163, %v3161
        %v3276 = vpack.c.b16 %v3166, %v3164
        %v3277 = vpack.c.b16 %v3167, %v3165
        %v3278 = vpack.c.b16 %v3170, %v3168
        %v3279 = vpack.c.b16 %v3171, %v3169
        %v3280 = vpack.c.b16 %v3174, %v3172
        %v3281 = vpack.c.b16 %v3175, %v3173
        %v3282 = vpack.c.b16 %v3178, %v3176
        %v3283 = vpack.c.b16 %v3179, %v3177
        %v3284 = vpack.c.b16 %v3182, %v3180
        %v3285 = vpack.c.b16 %v3183, %v3181
        %v3286 = vpack.c.b16 %v3186, %v3184
        %v3287 = vpack.c.b16 %v3187, %v3185
        %v3288 = vpack.c.b16 %v3190, %v3188
        %v3289 = vpack.c.b16 %v3191, %v3189
        %v3290 = vpack.c.b16 %v3194, %v3192
        %v3291 = vpack.c.b16 %v3195, %v3193
        %v3292 = vpack.c.b16 %v3198, %v3196
        %v3293 = vpack.c.b16 %v3199, %v3197
        %v3294 = vpack.c.b16 %v3202, %v3200
        %v3295 = vpack.c.b16 %v3203, %v3201
        %v3296 = vpack.c.b16 %v3206, %v3204
        %v3297 = vpack.c.b16 %v3207, %v3205
        %v3298 = vpack.c.b16 %v3210, %v3208
        %v3299 = vpack.c.b16 %v3211, %v3209
        %v3300 = vpack.c.b16 %v3214, %v3212
        %v3301 = vpack.c.b16 %v3215, %v3213
        %v3302 = vpack.c.b16 %v3218, %v3216
        %v3303 = vpack.c.b16 %v3219, %v3217
        %v3304 = vpack.c.b16 %v3222, %v3220
        %v3305 = vpack.c.b16 %v3223, %v3221
        %v3306 = vpack.c.b16 %v3226, %v3224
        %v3307 = vpack.c.b16 %v3227, %v3225
        %v3308 = vpack.c.b16 %v3230, %v3228
        %v3309 = vpack.c.b16 %v3231, %v3229
        %v3310 = vpack.c.b16 %v3234, %v3232
        %v3311 = vpack.c.b16 %v3235, %v3233
        %v3312 = vpack.c.b16 %v3238, %v3236
        %v3313 = vpack.c.b16 %v3239, %v3237
        %v3314 = vpack.c.b16 %v3242, %v3240
        %v3315 = vpack.c.b16 %v3243, %v3241
        %v3316 = vpack.c.b16 %v3246, %v3244
        %v3317 = vpack.c.b16 %v3247, %v3245
        %v3318 = vpack.c.b16 %v3250, %v3248
        %v3319 = vpack.c.b16 %v3251, %v3249
        %v3320 = vpack.c.b16 %v3254, %v3252
        %v3321 = vpack.c.b16 %v3255, %v3253
        %v3322 = vpack.c.b16 %v3258, %v3256
        %v3323 = vpack.c.b16 %v3259, %v3257
        %3388 = vmatprep.subr.bf16.mxu0 %v3275
        %3389 = vmatpush1.bf16.msra.mxu0 %v3274
        %3390 = vmatprep.subr.bf16.mxu0 %v3273
        %3391 = vmatpush1.bf16.msra.mxu0 %v3272
        %3392 = vmatprep.subr.bf16.mxu0 %v3271
        %3393 = vmatpush1.bf16.msra.mxu0 %v3270
        %3394 = vmatprep.subr.bf16.mxu0 %v3269
        %3395 = vmatpush1.bf16.msra.mxu0 %v3268
        %3396 = vmatprep.subr.bf16.mxu0 %v3267
        %3397 = vmatpush1.bf16.msra.mxu0 %v3266
        %3398 = vmatprep.subr.bf16.mxu0 %v3265
        %3399 = vmatpush1.bf16.msra.mxu0 %v3264
        %3400 = vmatprep.subr.bf16.mxu0 %v3263
        %3401 = vmatpush1.bf16.msra.mxu0 %v3262
        %3402 = vmatprep.subr.bf16.mxu0 %v3261
        %3403 = vmatpush1.bf16.msra.mxu0 %v3260
        %3404 = vmatprep.subr.bf16.mxu0 %v3291
        %3405 = vmatpush2.bf16.msra.mxu0 %v3290
        %3406 = vmatprep.subr.bf16.mxu0 %v3289
        %3407 = vmatpush2.bf16.msra.mxu0 %v3288
        %3408 = vmatprep.subr.bf16.mxu0 %v3287
        %3409 = vmatpush2.bf16.msra.mxu0 %v3286
        %3410 = vmatprep.subr.bf16.mxu0 %v3285
        %3411 = vmatpush2.bf16.msra.mxu0 %v3284
        %3412 = vmatprep.subr.bf16.mxu0 %v3283
        %3413 = vmatpush2.bf16.msra.mxu0 %v3282
        %3414 = vmatprep.subr.bf16.mxu0 %v3281
        %3415 = vmatpush2.bf16.msra.mxu0 %v3280
        %3416 = vmatprep.subr.bf16.mxu0 %v3279
        %3417 = vmatpush2.bf16.msra.mxu0 %v3278
        %3418 = vmatprep.subr.bf16.mxu0 %v3277
        %3419 = vmatpush2.bf16.msra.mxu0 %v3276
        %3420 = vmatprep.mubr.bf16.mxu0 %v2993
        %3421 = vmatmul.mubr.bf16.gmra.mxu0 %v2992
        %v3422 = vpop.f32.mrf.mxu0
        %v3423 = vadd.f32 %v3063, %v3422
        %v3424 = vpop.f32.mrf.mxu0
        %v3425 = vadd.f32 %v3067, %v3424
        %v3426 = vpop.f32.mrf.mxu0
        %v3427 = vpop.f32.mrf.mxu0
        %3428 = vdwg.mxu0
        %3429 = vmatprep.subr.bf16.mxu0 %v3307
        %3430 = vmatpush1.bf16.msra.mxu0 %v3306
        %3431 = vmatprep.subr.bf16.mxu0 %v3305
        %3432 = vmatpush1.bf16.msra.mxu0 %v3304
        %3433 = vmatprep.subr.bf16.mxu0 %v3303
        %3434 = vmatpush1.bf16.msra.mxu0 %v3302
        %3435 = vmatprep.subr.bf16.mxu0 %v3301
        %3436 = vmatpush1.bf16.msra.mxu0 %v3300
        %3437 = vmatprep.subr.bf16.mxu0 %v3299
        %3438 = vmatpush1.bf16.msra.mxu0 %v3298
        %3439 = vmatprep.subr.bf16.mxu0 %v3297
        %3440 = vmatpush1.bf16.msra.mxu0 %v3296
        %3441 = vmatprep.subr.bf16.mxu0 %v3295
        %3442 = vmatpush1.bf16.msra.mxu0 %v3294
        %3443 = vmatprep.subr.bf16.mxu0 %v3293
        %3444 = vmatpush1.bf16.msra.mxu0 %v3292
        %3445 = vmatprep.subr.bf16.mxu0 %v3323
        %3446 = vmatpush2.bf16.msra.mxu0 %v3322
        %3447 = vmatprep.subr.bf16.mxu0 %v3321
        %3448 = vmatpush2.bf16.msra.mxu0 %v3320
        %3449 = vmatprep.subr.bf16.mxu0 %v3319
        %3450 = vmatpush2.bf16.msra.mxu0 %v3318
        %3451 = vmatprep.subr.bf16.mxu0 %v3317
        %3452 = vmatpush2.bf16.msra.mxu0 %v3316
        %3453 = vmatprep.subr.bf16.mxu0 %v3315
        %3454 = vmatpush2.bf16.msra.mxu0 %v3314
        %3455 = vmatprep.subr.bf16.mxu0 %v3313
        %3456 = vmatpush2.bf16.msra.mxu0 %v3312
        %3457 = vmatprep.subr.bf16.mxu0 %v3311
        %3458 = vmatpush2.bf16.msra.mxu0 %v3310
        %3459 = vmatprep.subr.bf16.mxu0 %v3309
        %3460 = vmatpush2.bf16.msra.mxu0 %v3308
        %3461 = vmatprep.mubr.bf16.mxu0 %v2995
        %3462 = vmatmul.mubr.bf16.gmra.mxu0 %v2994
        %v3463 = vpop.f32.mrf.mxu0
        %v3464 = vadd.f32 %v3423, %v3463
        %v3465 = vpop.f32.mrf.mxu0
        %v3466 = vadd.f32 %v3425, %v3465
        %v3467 = vpop.f32.mrf.mxu0
        %v3468 = vpop.f32.mrf.mxu0
        %3469 = vdwg.mxu0
        %v3470 = vmax.f32 %v3464, 0.0
        %v3471 = vmax.f32 %v3466, 0.0
        %v3472 = vlaneseq
        %v3473 = vshrl.u32 %v3472, 7
        %v3474 = vsub.s32 1, %v3473
        %v3475 = vrot.slane %v380, %v3474
        %v3476 = vlaneseq
        %v3477 = vshrl.u32 %v3476, 7
        %v3478 = vsub.s32 1, %v3477
        %v3479 = vrot.slane %v381, %v3478
        %v3480 = vmul.f32 %v3470, %v3475
        %v3481 = vmul.f32 %v3471, %v3479
        %vm3482 = vcmask 1041408
        %v3483 = vsel %vm3482, %v3480, 0.0
        %v3484 = vsel %vm3482, %v3481, 0.0
        %v3485 = vadd.f32 %v3483, %v3484
        %3486 = vadd.xlane.f32.xlu0 %v3485
        %v3487 = vpop.xlane.xlu0 %3486
        %v3488 = vlaneseq
        %v3489 = vshrl.u32 %v3488, 7
        %v3490 = vsub.s32 2, %v3489
        %v3491 = vrot.slane %v376, %v3490
        %v3492 = vadd.f32 %v3487, %v3491
        %v3493 = vsub.f32 0.0, %v3492
        %v3494 = vmul.f32 %v3493, 1.442695
        %v3495 = vpow.pop %v3494
        %v3496 = vadd.f32 %v3495, 1.0
        %v3497 = vrcp.pop %v3496
        %v3498 = vmul.f32 1.0, %v3497
        %3500 = vset.pattern.permute.xlu0 0
        %3501 = vperm.xlu0 %3500, %v3498
        %v3502 = vpop.permute.xlu0 %3501
        %3504 = vst [vmem:[%s369] sm:$0x3] %v3502
        %v3505 = vlaneseq
        %v3506 = vshrl.u32 %v3505, 7
        %v3507 = vsub.s32 2, %v3506
        %v3508 = vrot.slane %v382, %v3507
        %v3509 = vmul.f32 %v372, %v3508
        %v3510 = vmul.f32 %v373, %v3508
        %3511 = vadd.xlane.f32.xlu0 %v3509
        %v3512 = vpop.xlane.xlu0 %3511
        %3513 = vadd.xlane.f32.xlu0 %v3510
        %v3514 = vpop.xlane.xlu0 %3513
        %v3516 = vrot.slane %v383, 2
        %s3517 = vtos %v3516
        %v3518 = vstv %s3517
        %v3520 = vadd.f32 %v3512, %v3518
        %v3521 = vadd.f32 %v3514, %v3518
        %v3524 = vlaneseq
        %v3525 = vshrl.u32 %v3524, 7
        %v3526 = vsub.s32 %v410, %v3525
        %v3527 = vrot.slane %v3520, %v3526
        %v3528 = vlaneseq
        %v3529 = vshrl.u32 %v3528, 7
        %v3530 = vsub.s32 %v410, %v3529
        %v3531 = vrot.slane %v3521, %v3530
        %v3532 = vsel %vm419, %v3531, %v3527
        %v3534 = vsel %vm422, %v3532, -inf
        %3535 = vmax.xlane.f32.xlu0 %v3534
        %v3536 = vpop.xlane.xlu0 %3535
        %v3538 = vlaneseq
        %v3539 = vshrl.u32 %v3538, 7
        %v3540 = vsub.s32 0, %v3539
        %v3541 = vrot.slane %v3536, %v3540
        %v3542 = vlaneseq
        %v3543 = vshrl.u32 %v3542, 7
        %v3544 = vsub.s32 1, %v3543
        %v3545 = vrot.slane %v3536, %v3544
        %v3548 = vsub.f32 %v3520, %v3541
        %v3549 = vsub.f32 %v3521, %v3545
        %v3550 = vmul.f32 %v3548, 1.442695
        %v3551 = vpow.pop %v3550
        %v3552 = vmul.f32 %v3549, 1.442695
        %v3553 = vpow.pop %v3552
        %3556 = vset.pattern.permute.xlu0 0
        %3557 = vperm.xlu0 %3556, %v3551
        %v3558 = vpop.permute.xlu0 %3557
        %3559 = vset.pattern.permute.xlu0 0
        %3560 = vperm.xlu0 %3559, %v3553
        %v3561 = vpop.permute.xlu0 %3560
        %v3562 = vlaneseq
        %v3563 = vshrl.u32 %v3562, 7
        %v3564 = vsub.s32 %v410, %v3563
        %v3565 = vrot.slane %v3558, %v3564
        %v3566 = vlaneseq
        %v3567 = vshrl.u32 %v3566, 7
        %v3568 = vsub.s32 %v410, %v3567
        %v3569 = vrot.slane %v3561, %v3568
        %v3570 = vsel %vm419, %v3569, %v3565
        %v3572 = vsel %vm422, %v3570, 0.0
        %3573 = vadd.xlane.f32.xlu0 %v3572
        %v3574 = vpop.xlane.xlu0 %3573
        %v3576 = vlaneseq
        %v3577 = vshrl.u32 %v3576, 7
        %v3578 = vsub.s32 0, %v3577
        %v3579 = vrot.slane %v3574, %v3578
        %v3580 = vlaneseq
        %v3581 = vshrl.u32 %v3580, 7
        %v3582 = vsub.s32 1, %v3581
        %v3583 = vrot.slane %v3574, %v3582
        %v3586 = vrcp.pop %v3579
        %v3587 = vmul.f32 %v3551, %v3586
        %v3588 = vrcp.pop %v3583
        %v3589 = vmul.f32 %v3553, %v3588
        %3591 = vset.pattern.permute.xlu0 0
        %3592 = vperm.xlu0 %3591, %v3587
        %v3593 = vpop.permute.xlu0 %3592
        %3596 = vset.pattern.permute.xlu0 0
        %3597 = vperm.xlu0 %3596, %v3589
        %v3598 = vpop.permute.xlu0 %3597
        %v3600 = vmul.f32 %v3593, %v372
        %v3601 = vmul.f32 %v3598, %v373
        %v3602 = vrot.slane %v3600, 4
        %v3603 = vadd.f32 %v3600, %v3602
        %v3604 = vrot.slane %v3603, 2
        %v3605 = vadd.f32 %v3603, %v3604
        %v3606 = vrot.slane %v3605, 1
        %v3607 = vadd.f32 %v3605, %v3606
        %v3608 = vrot.slane %v3601, 4
        %v3609 = vadd.f32 %v3601, %v3608
        %v3610 = vrot.slane %v3609, 2
        %v3611 = vadd.f32 %v3609, %v3610
        %v3612 = vrot.slane %v3611, 1
        %v3613 = vadd.f32 %v3611, %v3612
        %v3614 = vpack.c.bf16 %v3607, %v3607
        %v3615 = vpack.c.bf16 %v3613, %v3613
        %s3616 = scalar_lea.vmem %s301, 512 [#allocation4]
        %v3617 = vld [vmem:[%s3616] sm:$0xff]
        %v3618 = vld [vmem:[%s3616 + $0x8] sm:$0xff]
        %v3619 = vld [vmem:[%s3616 + $0x10] sm:$0xff]
        %v3620 = vld [vmem:[%s3616 + $0x18] sm:$0xff]
        %v3621 = vld [vmem:[%s3616 + $0x20] sm:$0xff]
        %v3622 = vld [vmem:[%s3616 + $0x28] sm:$0xff]
        %v3623 = vld [vmem:[%s3616 + $0x30] sm:$0xff]
        %v3624 = vld [vmem:[%s3616 + $0x38] sm:$0xff]
        %v3625 = vld [vmem:[%s3616 + $0x40] sm:$0xff]
        %v3626 = vld [vmem:[%s3616 + $0x48] sm:$0xff]
        %v3627 = vld [vmem:[%s3616 + $0x50] sm:$0xff]
        %v3628 = vld [vmem:[%s3616 + $0x58] sm:$0xff]
        %v3629 = vld [vmem:[%s3616 + $0x60] sm:$0xff]
        %v3630 = vld [vmem:[%s3616 + $0x68] sm:$0xff]
        %v3631 = vld [vmem:[%s3616 + $0x70] sm:$0xff]
        %v3632 = vld [vmem:[%s3616 + $0x78] sm:$0xff]
        %v3633 = vld [vmem:[%s3616 + $0x80] sm:$0xff]
        %v3634 = vld [vmem:[%s3616 + $0x88] sm:$0xff]
        %v3635 = vld [vmem:[%s3616 + $0x90] sm:$0xff]
        %v3636 = vld [vmem:[%s3616 + $0x98] sm:$0xff]
        %v3637 = vld [vmem:[%s3616 + $0xa0] sm:$0xff]
        %v3638 = vld [vmem:[%s3616 + $0xa8] sm:$0xff]
        %v3639 = vld [vmem:[%s3616 + $0xb0] sm:$0xff]
        %v3640 = vld [vmem:[%s3616 + $0xb8] sm:$0xff]
        %v3641 = vld [vmem:[%s3616 + $0xc0] sm:$0xff]
        %v3642 = vld [vmem:[%s3616 + $0xc8] sm:$0xff]
        %v3643 = vld [vmem:[%s3616 + $0xd0] sm:$0xff]
        %v3644 = vld [vmem:[%s3616 + $0xd8] sm:$0xff]
        %v3645 = vld [vmem:[%s3616 + $0xe0] sm:$0xff]
        %v3646 = vld [vmem:[%s3616 + $0xe8] sm:$0xff]
        %v3647 = vld [vmem:[%s3616 + $0xf0] sm:$0xff]
        %v3648 = vld [vmem:[%s3616 + $0xf8] sm:$0xff]
        %v3649 = vld [vmem:[%s3616 + $0x100] sm:$0xff]
        %v3650 = vld [vmem:[%s3616 + $0x108] sm:$0xff]
        %v3651 = vld [vmem:[%s3616 + $0x110] sm:$0xff]
        %v3652 = vld [vmem:[%s3616 + $0x118] sm:$0xff]
        %v3653 = vld [vmem:[%s3616 + $0x120] sm:$0xff]
        %v3654 = vld [vmem:[%s3616 + $0x128] sm:$0xff]
        %v3655 = vld [vmem:[%s3616 + $0x130] sm:$0xff]
        %v3656 = vld [vmem:[%s3616 + $0x138] sm:$0xff]
        %v3657 = vld [vmem:[%s3616 + $0x140] sm:$0xff]
        %v3658 = vld [vmem:[%s3616 + $0x148] sm:$0xff]
        %v3659 = vld [vmem:[%s3616 + $0x150] sm:$0xff]
        %v3660 = vld [vmem:[%s3616 + $0x158] sm:$0xff]
        %v3661 = vld [vmem:[%s3616 + $0x160] sm:$0xff]
        %v3662 = vld [vmem:[%s3616 + $0x168] sm:$0xff]
        %v3663 = vld [vmem:[%s3616 + $0x170] sm:$0xff]
        %v3664 = vld [vmem:[%s3616 + $0x178] sm:$0xff]
        %v3665 = vld [vmem:[%s3616 + $0x180] sm:$0xff]
        %v3666 = vld [vmem:[%s3616 + $0x188] sm:$0xff]
        %v3667 = vld [vmem:[%s3616 + $0x190] sm:$0xff]
        %v3668 = vld [vmem:[%s3616 + $0x198] sm:$0xff]
        %v3669 = vld [vmem:[%s3616 + $0x1a0] sm:$0xff]
        %v3670 = vld [vmem:[%s3616 + $0x1a8] sm:$0xff]
        %v3671 = vld [vmem:[%s3616 + $0x1b0] sm:$0xff]
        %v3672 = vld [vmem:[%s3616 + $0x1b8] sm:$0xff]
        %v3673 = vld [vmem:[%s3616 + $0x1c0] sm:$0xff]
        %v3674 = vld [vmem:[%s3616 + $0x1c8] sm:$0xff]
        %v3675 = vld [vmem:[%s3616 + $0x1d0] sm:$0xff]
        %v3676 = vld [vmem:[%s3616 + $0x1d8] sm:$0xff]
        %v3677 = vld [vmem:[%s3616 + $0x1e0] sm:$0xff]
        %v3678 = vld [vmem:[%s3616 + $0x1e8] sm:$0xff]
        %v3679 = vld [vmem:[%s3616 + $0x1f0] sm:$0xff]
        %v3680 = vld [vmem:[%s3616 + $0x1f8] sm:$0xff]
        %v3681 = vlaneseq
        %v3682 = vshrl.u32 %v3681, 7
        %v3683 = vsub.s32 0, %v3682
        %v3684 = vrot.slane %v382, %v3683
        %v3685 = vlaneseq
        %v3686 = vshrl.u32 %v3685, 7
        %v3687 = vsub.s32 0, %v3686
        %v3688 = vrot.slane %v383, %v3687
        %v3689 = vlaneseq
        %v3690 = vshrl.u32 %v3689, 7
        %v3691 = vsub.s32 0, %v3690
        %v3692 = vrot.slane %v384, %v3691
        %v3693 = vlaneseq
        %v3694 = vshrl.u32 %v3693, 7
        %v3695 = vsub.s32 0, %v3694
        %v3696 = vrot.slane %v385, %v3695
        %v3697 = vlaneseq
        %v3698 = vshrl.u32 %v3697, 7
        %v3699 = vsub.s32 0, %v3698
        %v3700 = vrot.slane %v386, %v3699
        %v3701 = vlaneseq
        %v3702 = vshrl.u32 %v3701, 7
        %v3703 = vsub.s32 0, %v3702
        %v3704 = vrot.slane %v387, %v3703
        %v3705 = vlaneseq
        %v3706 = vshrl.u32 %v3705, 7
        %v3707 = vsub.s32 0, %v3706
        %v3708 = vrot.slane %v388, %v3707
        %v3709 = vlaneseq
        %v3710 = vshrl.u32 %v3709, 7
        %v3711 = vsub.s32 0, %v3710
        %v3712 = vrot.slane %v389, %v3711
        %v3715 = vunpack.c.l.b16 %v3614
        %v3716 = vunpack.c.l.b16 %v3615
        %v3717 = vsel %vm419, %v3716, %v3715
        %v3718 = vpack.c.b16 %v3717, %v3717
        %v3784 = vunpack.c.l.b16 %v3617
        %v3785 = vunpack.c.h.b16 %v3617
        %v3786 = vunpack.c.l.b16 %v3618
        %v3787 = vunpack.c.h.b16 %v3618
        %v3788 = vunpack.c.l.b16 %v3619
        %v3789 = vunpack.c.h.b16 %v3619
        %v3790 = vunpack.c.l.b16 %v3620
        %v3791 = vunpack.c.h.b16 %v3620
        %v3792 = vunpack.c.l.b16 %v3621
        %v3793 = vunpack.c.h.b16 %v3621
        %v3794 = vunpack.c.l.b16 %v3622
        %v3795 = vunpack.c.h.b16 %v3622
        %v3796 = vunpack.c.l.b16 %v3623
        %v3797 = vunpack.c.h.b16 %v3623
        %v3798 = vunpack.c.l.b16 %v3624
        %v3799 = vunpack.c.h.b16 %v3624
        %v3800 = vunpack.c.l.b16 %v3625
        %v3801 = vunpack.c.h.b16 %v3625
        %v3802 = vunpack.c.l.b16 %v3626
        %v3803 = vunpack.c.h.b16 %v3626
        %v3804 = vunpack.c.l.b16 %v3627
        %v3805 = vunpack.c.h.b16 %v3627
        %v3806 = vunpack.c.l.b16 %v3628
        %v3807 = vunpack.c.h.b16 %v3628
        %v3808 = vunpack.c.l.b16 %v3629
        %v3809 = vunpack.c.h.b16 %v3629
        %v3810 = vunpack.c.l.b16 %v3630
        %v3811 = vunpack.c.h.b16 %v3630
        %v3812 = vunpack.c.l.b16 %v3631
        %v3813 = vunpack.c.h.b16 %v3631
        %v3814 = vunpack.c.l.b16 %v3632
        %v3815 = vunpack.c.h.b16 %v3632
        %v3816 = vunpack.c.l.b16 %v3633
        %v3817 = vunpack.c.h.b16 %v3633
        %v3818 = vunpack.c.l.b16 %v3634
        %v3819 = vunpack.c.h.b16 %v3634
        %v3820 = vunpack.c.l.b16 %v3635
        %v3821 = vunpack.c.h.b16 %v3635
        %v3822 = vunpack.c.l.b16 %v3636
        %v3823 = vunpack.c.h.b16 %v3636
        %v3824 = vunpack.c.l.b16 %v3637
        %v3825 = vunpack.c.h.b16 %v3637
        %v3826 = vunpack.c.l.b16 %v3638
        %v3827 = vunpack.c.h.b16 %v3638
        %v3828 = vunpack.c.l.b16 %v3639
        %v3829 = vunpack.c.h.b16 %v3639
        %v3830 = vunpack.c.l.b16 %v3640
        %v3831 = vunpack.c.h.b16 %v3640
        %v3832 = vunpack.c.l.b16 %v3641
        %v3833 = vunpack.c.h.b16 %v3641
        %v3834 = vunpack.c.l.b16 %v3642
        %v3835 = vunpack.c.h.b16 %v3642
        %v3836 = vunpack.c.l.b16 %v3643
        %v3837 = vunpack.c.h.b16 %v3643
        %v3838 = vunpack.c.l.b16 %v3644
        %v3839 = vunpack.c.h.b16 %v3644
        %v3840 = vunpack.c.l.b16 %v3645
        %v3841 = vunpack.c.h.b16 %v3645
        %v3842 = vunpack.c.l.b16 %v3646
        %v3843 = vunpack.c.h.b16 %v3646
        %v3844 = vunpack.c.l.b16 %v3647
        %v3845 = vunpack.c.h.b16 %v3647
        %v3846 = vunpack.c.l.b16 %v3648
        %v3847 = vunpack.c.h.b16 %v3648
        %v3848 = vunpack.c.l.b16 %v3649
        %v3849 = vunpack.c.h.b16 %v3649
        %v3850 = vunpack.c.l.b16 %v3650
        %v3851 = vunpack.c.h.b16 %v3650
        %v3852 = vunpack.c.l.b16 %v3651
        %v3853 = vunpack.c.h.b16 %v3651
        %v3854 = vunpack.c.l.b16 %v3652
        %v3855 = vunpack.c.h.b16 %v3652
        %v3856 = vunpack.c.l.b16 %v3653
        %v3857 = vunpack.c.h.b16 %v3653
        %v3858 = vunpack.c.l.b16 %v3654
        %v3859 = vunpack.c.h.b16 %v3654
        %v3860 = vunpack.c.l.b16 %v3655
        %v3861 = vunpack.c.h.b16 %v3655
        %v3862 = vunpack.c.l.b16 %v3656
        %v3863 = vunpack.c.h.b16 %v3656
        %v3864 = vunpack.c.l.b16 %v3657
        %v3865 = vunpack.c.h.b16 %v3657
        %v3866 = vunpack.c.l.b16 %v3658
        %v3867 = vunpack.c.h.b16 %v3658
        %v3868 = vunpack.c.l.b16 %v3659
        %v3869 = vunpack.c.h.b16 %v3659
        %v3870 = vunpack.c.l.b16 %v3660
        %v3871 = vunpack.c.h.b16 %v3660
        %v3872 = vunpack.c.l.b16 %v3661
        %v3873 = vunpack.c.h.b16 %v3661
        %v3874 = vunpack.c.l.b16 %v3662
        %v3875 = vunpack.c.h.b16 %v3662
        %v3876 = vunpack.c.l.b16 %v3663
        %v3877 = vunpack.c.h.b16 %v3663
        %v3878 = vunpack.c.l.b16 %v3664
        %v3879 = vunpack.c.h.b16 %v3664
        %v3880 = vunpack.c.l.b16 %v3665
        %v3881 = vunpack.c.h.b16 %v3665
        %v3882 = vunpack.c.l.b16 %v3666
        %v3883 = vunpack.c.h.b16 %v3666
        %v3884 = vunpack.c.l.b16 %v3667
        %v3885 = vunpack.c.h.b16 %v3667
        %v3886 = vunpack.c.l.b16 %v3668
        %v3887 = vunpack.c.h.b16 %v3668
        %v3888 = vunpack.c.l.b16 %v3669
        %v3889 = vunpack.c.h.b16 %v3669
        %v3890 = vunpack.c.l.b16 %v3670
        %v3891 = vunpack.c.h.b16 %v3670
        %v3892 = vunpack.c.l.b16 %v3671
        %v3893 = vunpack.c.h.b16 %v3671
        %v3894 = vunpack.c.l.b16 %v3672
        %v3895 = vunpack.c.h.b16 %v3672
        %v3896 = vunpack.c.l.b16 %v3673
        %v3897 = vunpack.c.h.b16 %v3673
        %v3898 = vunpack.c.l.b16 %v3674
        %v3899 = vunpack.c.h.b16 %v3674
        %v3900 = vunpack.c.l.b16 %v3675
        %v3901 = vunpack.c.h.b16 %v3675
        %v3902 = vunpack.c.l.b16 %v3676
        %v3903 = vunpack.c.h.b16 %v3676
        %v3904 = vunpack.c.l.b16 %v3677
        %v3905 = vunpack.c.h.b16 %v3677
        %v3906 = vunpack.c.l.b16 %v3678
        %v3907 = vunpack.c.h.b16 %v3678
        %v3908 = vunpack.c.l.b16 %v3679
        %v3909 = vunpack.c.h.b16 %v3679
        %v3910 = vunpack.c.l.b16 %v3680
        %v3911 = vunpack.c.h.b16 %v3680
        %v3912 = vpack.c.b16 %v3792, %v3784
        %v3913 = vpack.c.b16 %v3793, %v3785
        %v3914 = vpack.c.b16 %v3794, %v3786
        %v3915 = vpack.c.b16 %v3795, %v3787
        %v3916 = vpack.c.b16 %v3796, %v3788
        %v3917 = vpack.c.b16 %v3797, %v3789
        %v3918 = vpack.c.b16 %v3798, %v3790
        %v3919 = vpack.c.b16 %v3799, %v3791
        %v3920 = vpack.c.b16 %v3808, %v3800
        %v3921 = vpack.c.b16 %v3809, %v3801
        %v3922 = vpack.c.b16 %v3810, %v3802
        %v3923 = vpack.c.b16 %v3811, %v3803
        %v3924 = vpack.c.b16 %v3812, %v3804
        %v3925 = vpack.c.b16 %v3813, %v3805
        %v3926 = vpack.c.b16 %v3814, %v3806
        %v3927 = vpack.c.b16 %v3815, %v3807
        %v3928 = vpack.c.b16 %v3824, %v3816
        %v3929 = vpack.c.b16 %v3825, %v3817
        %v3930 = vpack.c.b16 %v3826, %v3818
        %v3931 = vpack.c.b16 %v3827, %v3819
        %v3932 = vpack.c.b16 %v3828, %v3820
        %v3933 = vpack.c.b16 %v3829, %v3821
        %v3934 = vpack.c.b16 %v3830, %v3822
        %v3935 = vpack.c.b16 %v3831, %v3823
        %v3936 = vpack.c.b16 %v3840, %v3832
        %v3937 = vpack.c.b16 %v3841, %v3833
        %v3938 = vpack.c.b16 %v3842, %v3834
        %v3939 = vpack.c.b16 %v3843, %v3835
        %v3940 = vpack.c.b16 %v3844, %v3836
        %v3941 = vpack.c.b16 %v3845, %v3837
        %v3942 = vpack.c.b16 %v3846, %v3838
        %v3943 = vpack.c.b16 %v3847, %v3839
        %v3944 = vpack.c.b16 %v3856, %v3848
        %v3945 = vpack.c.b16 %v3857, %v3849
        %v3946 = vpack.c.b16 %v3858, %v3850
        %v3947 = vpack.c.b16 %v3859, %v3851
        %v3948 = vpack.c.b16 %v3860, %v3852
        %v3949 = vpack.c.b16 %v3861, %v3853
        %v3950 = vpack.c.b16 %v3862, %v3854
        %v3951 = vpack.c.b16 %v3863, %v3855
        %v3952 = vpack.c.b16 %v3872, %v3864
        %v3953 = vpack.c.b16 %v3873, %v3865
        %v3954 = vpack.c.b16 %v3874, %v3866
        %v3955 = vpack.c.b16 %v3875, %v3867
        %v3956 = vpack.c.b16 %v3876, %v3868
        %v3957 = vpack.c.b16 %v3877, %v3869
        %v3958 = vpack.c.b16 %v3878, %v3870
        %v3959 = vpack.c.b16 %v3879, %v3871
        %v3960 = vpack.c.b16 %v3888, %v3880
        %v3961 = vpack.c.b16 %v3889, %v3881
        %v3962 = vpack.c.b16 %v3890, %v3882
        %v3963 = vpack.c.b16 %v3891, %v3883
        %v3964 = vpack.c.b16 %v3892, %v3884
        %v3965 = vpack.c.b16 %v3893, %v3885
        %v3966 = vpack.c.b16 %v3894, %v3886
        %v3967 = vpack.c.b16 %v3895, %v3887
        %v3968 = vpack.c.b16 %v3904, %v3896
        %v3969 = vpack.c.b16 %v3905, %v3897
        %v3970 = vpack.c.b16 %v3906, %v3898
        %v3971 = vpack.c.b16 %v3907, %v3899
        %v3972 = vpack.c.b16 %v3908, %v3900
        %v3973 = vpack.c.b16 %v3909, %v3901
        %v3974 = vpack.c.b16 %v3910, %v3902
        %v3975 = vpack.c.b16 %v3911, %v3903
        %4040 = vmatprep.subr.bf16.mxu0 %v3969
        %4041 = vmatpush1.bf16.msra.mxu0 %v3968
        %4042 = vmatprep.subr.bf16.mxu0 %v3961
        %4043 = vmatpush1.bf16.msra.mxu0 %v3960
        %4044 = vmatprep.subr.bf16.mxu0 %v3953
        %4045 = vmatpush1.bf16.msra.mxu0 %v3952
        %4046 = vmatprep.subr.bf16.mxu0 %v3945
        %4047 = vmatpush1.bf16.msra.mxu0 %v3944
        %4048 = vmatprep.subr.bf16.mxu0 %v3937
        %4049 = vmatpush1.bf16.msra.mxu0 %v3936
        %4050 = vmatprep.subr.bf16.mxu0 %v3929
        %4051 = vmatpush1.bf16.msra.mxu0 %v3928
        %4052 = vmatprep.subr.bf16.mxu0 %v3921
        %4053 = vmatpush1.bf16.msra.mxu0 %v3920
        %4054 = vmatprep.subr.bf16.mxu0 %v3913
        %4055 = vmatpush1.bf16.msra.mxu0 %v3912
        %4056 = vmatprep.subr.bf16.mxu0 0
        %4057 = vmatpush2.bf16.msra.mxu0 0
        %4058 = vmatprep.subr.bf16.mxu0 0
        %4059 = vmatpush2.bf16.msra.mxu0 0
        %4060 = vmatprep.subr.bf16.mxu0 0
        %4061 = vmatpush2.bf16.msra.mxu0 0
        %4062 = vmatprep.subr.bf16.mxu0 0
        %4063 = vmatpush2.bf16.msra.mxu0 0
        %4064 = vmatprep.subr.bf16.mxu0 0
        %4065 = vmatpush2.bf16.msra.mxu0 0
        %4066 = vmatprep.subr.bf16.mxu0 0
        %4067 = vmatpush2.bf16.msra.mxu0 0
        %4068 = vmatprep.subr.bf16.mxu0 0
        %4069 = vmatpush2.bf16.msra.mxu0 0
        %4070 = vmatprep.subr.bf16.mxu0 0
        %4071 = vmatpush2.bf16.msra.mxu0 0
        %4072 = vmatprep.mubr.bf16.mxu0 0
        %4073 = vmatmul.mubr.bf16.gmra.mxu0 %v3718
        %v4074 = vpop.f32.mrf.mxu0
        %v4075 = vadd.f32 %v3684, %v4074
        %v4076 = vpop.f32.mrf.mxu0
        %v4077 = vadd.f32 %v3688, %v4076
        %v4078 = vpop.f32.mrf.mxu0
        %v4079 = vpop.f32.mrf.mxu0
        %4080 = vdwg.mxu0
        %4081 = vmatprep.subr.bf16.mxu0 %v3971
        %4082 = vmatpush1.bf16.msra.mxu0 %v3970
        %4083 = vmatprep.subr.bf16.mxu0 %v3963
        %4084 = vmatpush1.bf16.msra.mxu0 %v3962
        %4085 = vmatprep.subr.bf16.mxu0 %v3955
        %4086 = vmatpush1.bf16.msra.mxu0 %v3954
        %4087 = vmatprep.subr.bf16.mxu0 %v3947
        %4088 = vmatpush1.bf16.msra.mxu0 %v3946
        %4089 = vmatprep.subr.bf16.mxu0 %v3939
        %4090 = vmatpush1.bf16.msra.mxu0 %v3938
        %4091 = vmatprep.subr.bf16.mxu0 %v3931
        %4092 = vmatpush1.bf16.msra.mxu0 %v3930
        %4093 = vmatprep.subr.bf16.mxu0 %v3923
        %4094 = vmatpush1.bf16.msra.mxu0 %v3922
        %4095 = vmatprep.subr.bf16.mxu0 %v3915
        %4096 = vmatpush1.bf16.msra.mxu0 %v3914
        %4097 = vmatprep.subr.bf16.mxu0 0
        %4098 = vmatpush2.bf16.msra.mxu0 0
        %4099 = vmatprep.subr.bf16.mxu0 0
        %4100 = vmatpush2.bf16.msra.mxu0 0
        %4101 = vmatprep.subr.bf16.mxu0 0
        %4102 = vmatpush2.bf16.msra.mxu0 0
        %4103 = vmatprep.subr.bf16.mxu0 0
        %4104 = vmatpush2.bf16.msra.mxu0 0
        %4105 = vmatprep.subr.bf16.mxu0 0
        %4106 = vmatpush2.bf16.msra.mxu0 0
        %4107 = vmatprep.subr.bf16.mxu0 0
        %4108 = vmatpush2.bf16.msra.mxu0 0
        %4109 = vmatprep.subr.bf16.mxu0 0
        %4110 = vmatpush2.bf16.msra.mxu0 0
        %4111 = vmatprep.subr.bf16.mxu0 0
        %4112 = vmatpush2.bf16.msra.mxu0 0
        %4113 = vmatprep.mubr.bf16.mxu0 0
        %4114 = vmatmul.mubr.bf16.gmra.mxu0 %v3718
        %v4115 = vpop.f32.mrf.mxu0
        %v4116 = vadd.f32 %v3692, %v4115
        %v4117 = vpop.f32.mrf.mxu0
        %v4118 = vadd.f32 %v3696, %v4117
        %v4119 = vpop.f32.mrf.mxu0
        %v4120 = vpop.f32.mrf.mxu0
        %4121 = vdwg.mxu0
        %4122 = vmatprep.subr.bf16.mxu0 %v3973
        %4123 = vmatpush1.bf16.msra.mxu0 %v3972
        %4124 = vmatprep.subr.bf16.mxu0 %v3965
        %4125 = vmatpush1.bf16.msra.mxu0 %v3964
        %4126 = vmatprep.subr.bf16.mxu0 %v3957
        %4127 = vmatpush1.bf16.msra.mxu0 %v3956
        %4128 = vmatprep.subr.bf16.mxu0 %v3949
        %4129 = vmatpush1.bf16.msra.mxu0 %v3948
        %4130 = vmatprep.subr.bf16.mxu0 %v3941
        %4131 = vmatpush1.bf16.msra.mxu0 %v3940
        %4132 = vmatprep.subr.bf16.mxu0 %v3933
        %4133 = vmatpush1.bf16.msra.mxu0 %v3932
        %4134 = vmatprep.subr.bf16.mxu0 %v3925
        %4135 = vmatpush1.bf16.msra.mxu0 %v3924
        %4136 = vmatprep.subr.bf16.mxu0 %v3917
        %4137 = vmatpush1.bf16.msra.mxu0 %v3916
        %4138 = vmatprep.subr.bf16.mxu0 0
        %4139 = vmatpush2.bf16.msra.mxu0 0
        %4140 = vmatprep.subr.bf16.mxu0 0
        %4141 = vmatpush2.bf16.msra.mxu0 0
        %4142 = vmatprep.subr.bf16.mxu0 0
        %4143 = vmatpush2.bf16.msra.mxu0 0
        %4144 = vmatprep.subr.bf16.mxu0 0
        %4145 = vmatpush2.bf16.msra.mxu0 0
        %4146 = vmatprep.subr.bf16.mxu0 0
        %4147 = vmatpush2.bf16.msra.mxu0 0
        %4148 = vmatprep.subr.bf16.mxu0 0
        %4149 = vmatpush2.bf16.msra.mxu0 0
        %4150 = vmatprep.subr.bf16.mxu0 0
        %4151 = vmatpush2.bf16.msra.mxu0 0
        %4152 = vmatprep.subr.bf16.mxu0 0
        %4153 = vmatpush2.bf16.msra.mxu0 0
        %4154 = vmatprep.mubr.bf16.mxu0 0
        %4155 = vmatmul.mubr.bf16.gmra.mxu0 %v3718
        %v4156 = vpop.f32.mrf.mxu0
        %v4157 = vadd.f32 %v3700, %v4156
        %v4158 = vpop.f32.mrf.mxu0
        %v4159 = vadd.f32 %v3704, %v4158
        %v4160 = vpop.f32.mrf.mxu0
        %v4161 = vpop.f32.mrf.mxu0
        %4162 = vdwg.mxu0
        %4163 = vmatprep.subr.bf16.mxu0 %v3975
        %4164 = vmatpush1.bf16.msra.mxu0 %v3974
        %4165 = vmatprep.subr.bf16.mxu0 %v3967
        %4166 = vmatpush1.bf16.msra.mxu0 %v3966
        %4167 = vmatprep.subr.bf16.mxu0 %v3959
        %4168 = vmatpush1.bf16.msra.mxu0 %v3958
        %4169 = vmatprep.subr.bf16.mxu0 %v3951
        %4170 = vmatpush1.bf16.msra.mxu0 %v3950
        %4171 = vmatprep.subr.bf16.mxu0 %v3943
        %4172 = vmatpush1.bf16.msra.mxu0 %v3942
        %4173 = vmatprep.subr.bf16.mxu0 %v3935
        %4174 = vmatpush1.bf16.msra.mxu0 %v3934
        %4175 = vmatprep.subr.bf16.mxu0 %v3927
        %4176 = vmatpush1.bf16.msra.mxu0 %v3926
        %4177 = vmatprep.subr.bf16.mxu0 %v3919
        %4178 = vmatpush1.bf16.msra.mxu0 %v3918
        %4179 = vmatprep.subr.bf16.mxu0 0
        %4180 = vmatpush2.bf16.msra.mxu0 0
        %4181 = vmatprep.subr.bf16.mxu0 0
        %4182 = vmatpush2.bf16.msra.mxu0 0
        %4183 = vmatprep.subr.bf16.mxu0 0
        %4184 = vmatpush2.bf16.msra.mxu0 0
        %4185 = vmatprep.subr.bf16.mxu0 0
        %4186 = vmatpush2.bf16.msra.mxu0 0
        %4187 = vmatprep.subr.bf16.mxu0 0
        %4188 = vmatpush2.bf16.msra.mxu0 0
        %4189 = vmatprep.subr.bf16.mxu0 0
        %4190 = vmatpush2.bf16.msra.mxu0 0
        %4191 = vmatprep.subr.bf16.mxu0 0
        %4192 = vmatpush2.bf16.msra.mxu0 0
        %4193 = vmatprep.subr.bf16.mxu0 0
        %4194 = vmatpush2.bf16.msra.mxu0 0
        %4195 = vmatprep.mubr.bf16.mxu0 0
        %4196 = vmatmul.mubr.bf16.gmra.mxu0 %v3718
        %v4197 = vpop.f32.mrf.mxu0
        %v4198 = vadd.f32 %v3708, %v4197
        %v4199 = vpop.f32.mrf.mxu0
        %v4200 = vadd.f32 %v3712, %v4199
        %v4201 = vpop.f32.mrf.mxu0
        %v4202 = vpop.f32.mrf.mxu0
        %4203 = vdwg.mxu0
        %v4204 = vmax.f32 %v4075, 0.0
        %v4205 = vmax.f32 %v4077, 0.0
        %v4206 = vmax.f32 %v4116, 0.0
        %v4207 = vmax.f32 %v4118, 0.0
        %v4208 = vmax.f32 %v4157, 0.0
        %v4209 = vmax.f32 %v4159, 0.0
        %v4210 = vmax.f32 %v4198, 0.0
        %v4211 = vmax.f32 %v4200, 0.0
        %v4212 = vpack.c.bf16 %v4204, %v4204
        %v4213 = vpack.c.bf16 %v4205, %v4205
        %v4214 = vpack.c.bf16 %v4206, %v4206
        %v4215 = vpack.c.bf16 %v4207, %v4207
        %v4216 = vpack.c.bf16 %v4208, %v4208
        %v4217 = vpack.c.bf16 %v4209, %v4209
        %v4218 = vpack.c.bf16 %v4210, %v4210
        %v4219 = vpack.c.bf16 %v4211, %v4211
        %s4220 = scalar_lea.vmem %s310, 2048 [#allocation6]
        %v4221 = vld [vmem:[%s4220] sm:$0xff]
        %v4222 = vld [vmem:[%s4220 + $0x8] sm:$0xff]
        %v4223 = vld [vmem:[%s4220 + $0x10] sm:$0xff]
        %v4224 = vld [vmem:[%s4220 + $0x18] sm:$0xff]
        %v4225 = vld [vmem:[%s4220 + $0x20] sm:$0xff]
        %v4226 = vld [vmem:[%s4220 + $0x28] sm:$0xff]
        %v4227 = vld [vmem:[%s4220 + $0x30] sm:$0xff]
        %v4228 = vld [vmem:[%s4220 + $0x38] sm:$0xff]
        %v4229 = vld [vmem:[%s4220 + $0x40] sm:$0xff]
        %v4230 = vld [vmem:[%s4220 + $0x48] sm:$0xff]
        %v4231 = vld [vmem:[%s4220 + $0x50] sm:$0xff]
        %v4232 = vld [vmem:[%s4220 + $0x58] sm:$0xff]
        %v4233 = vld [vmem:[%s4220 + $0x60] sm:$0xff]
        %v4234 = vld [vmem:[%s4220 + $0x68] sm:$0xff]
        %v4235 = vld [vmem:[%s4220 + $0x70] sm:$0xff]
        %v4236 = vld [vmem:[%s4220 + $0x78] sm:$0xff]
        %v4237 = vld [vmem:[%s4220 + $0x80] sm:$0xff]
        %v4238 = vld [vmem:[%s4220 + $0x88] sm:$0xff]
        %v4239 = vld [vmem:[%s4220 + $0x90] sm:$0xff]
        %v4240 = vld [vmem:[%s4220 + $0x98] sm:$0xff]
        %v4241 = vld [vmem:[%s4220 + $0xa0] sm:$0xff]
        %v4242 = vld [vmem:[%s4220 + $0xa8] sm:$0xff]
        %v4243 = vld [vmem:[%s4220 + $0xb0] sm:$0xff]
        %v4244 = vld [vmem:[%s4220 + $0xb8] sm:$0xff]
        %v4245 = vld [vmem:[%s4220 + $0xc0] sm:$0xff]
        %v4246 = vld [vmem:[%s4220 + $0xc8] sm:$0xff]
        %v4247 = vld [vmem:[%s4220 + $0xd0] sm:$0xff]
        %v4248 = vld [vmem:[%s4220 + $0xd8] sm:$0xff]
        %v4249 = vld [vmem:[%s4220 + $0xe0] sm:$0xff]
        %v4250 = vld [vmem:[%s4220 + $0xe8] sm:$0xff]
        %v4251 = vld [vmem:[%s4220 + $0xf0] sm:$0xff]
        %v4252 = vld [vmem:[%s4220 + $0xf8] sm:$0xff]
        %v4253 = vld [vmem:[%s4220 + $0x100] sm:$0xff]
        %v4254 = vld [vmem:[%s4220 + $0x108] sm:$0xff]
        %v4255 = vld [vmem:[%s4220 + $0x110] sm:$0xff]
        %v4256 = vld [vmem:[%s4220 + $0x118] sm:$0xff]
        %v4257 = vld [vmem:[%s4220 + $0x120] sm:$0xff]
        %v4258 = vld [vmem:[%s4220 + $0x128] sm:$0xff]
        %v4259 = vld [vmem:[%s4220 + $0x130] sm:$0xff]
        %v4260 = vld [vmem:[%s4220 + $0x138] sm:$0xff]
        %v4261 = vld [vmem:[%s4220 + $0x140] sm:$0xff]
        %v4262 = vld [vmem:[%s4220 + $0x148] sm:$0xff]
        %v4263 = vld [vmem:[%s4220 + $0x150] sm:$0xff]
        %v4264 = vld [vmem:[%s4220 + $0x158] sm:$0xff]
        %v4265 = vld [vmem:[%s4220 + $0x160] sm:$0xff]
        %v4266 = vld [vmem:[%s4220 + $0x168] sm:$0xff]
        %v4267 = vld [vmem:[%s4220 + $0x170] sm:$0xff]
        %v4268 = vld [vmem:[%s4220 + $0x178] sm:$0xff]
        %v4269 = vld [vmem:[%s4220 + $0x180] sm:$0xff]
        %v4270 = vld [vmem:[%s4220 + $0x188] sm:$0xff]
        %v4271 = vld [vmem:[%s4220 + $0x190] sm:$0xff]
        %v4272 = vld [vmem:[%s4220 + $0x198] sm:$0xff]
        %v4273 = vld [vmem:[%s4220 + $0x1a0] sm:$0xff]
        %v4274 = vld [vmem:[%s4220 + $0x1a8] sm:$0xff]
        %v4275 = vld [vmem:[%s4220 + $0x1b0] sm:$0xff]
        %v4276 = vld [vmem:[%s4220 + $0x1b8] sm:$0xff]
        %v4277 = vld [vmem:[%s4220 + $0x1c0] sm:$0xff]
        %v4278 = vld [vmem:[%s4220 + $0x1c8] sm:$0xff]
        %v4279 = vld [vmem:[%s4220 + $0x1d0] sm:$0xff]
        %v4280 = vld [vmem:[%s4220 + $0x1d8] sm:$0xff]
        %v4281 = vld [vmem:[%s4220 + $0x1e0] sm:$0xff]
        %v4282 = vld [vmem:[%s4220 + $0x1e8] sm:$0xff]
        %v4283 = vld [vmem:[%s4220 + $0x1f0] sm:$0xff]
        %v4284 = vld [vmem:[%s4220 + $0x1f8] sm:$0xff]
        %v4285 = vld [vmem:[%s4220 + $0x200] sm:$0xff]
        %v4286 = vld [vmem:[%s4220 + $0x208] sm:$0xff]
        %v4287 = vld [vmem:[%s4220 + $0x210] sm:$0xff]
        %v4288 = vld [vmem:[%s4220 + $0x218] sm:$0xff]
        %v4289 = vld [vmem:[%s4220 + $0x220] sm:$0xff]
        %v4290 = vld [vmem:[%s4220 + $0x228] sm:$0xff]
        %v4291 = vld [vmem:[%s4220 + $0x230] sm:$0xff]
        %v4292 = vld [vmem:[%s4220 + $0x238] sm:$0xff]
        %v4293 = vld [vmem:[%s4220 + $0x240] sm:$0xff]
        %v4294 = vld [vmem:[%s4220 + $0x248] sm:$0xff]
        %v4295 = vld [vmem:[%s4220 + $0x250] sm:$0xff]
        %v4296 = vld [vmem:[%s4220 + $0x258] sm:$0xff]
        %v4297 = vld [vmem:[%s4220 + $0x260] sm:$0xff]
        %v4298 = vld [vmem:[%s4220 + $0x268] sm:$0xff]
        %v4299 = vld [vmem:[%s4220 + $0x270] sm:$0xff]
        %v4300 = vld [vmem:[%s4220 + $0x278] sm:$0xff]
        %v4301 = vld [vmem:[%s4220 + $0x280] sm:$0xff]
        %v4302 = vld [vmem:[%s4220 + $0x288] sm:$0xff]
        %v4303 = vld [vmem:[%s4220 + $0x290] sm:$0xff]
        %v4304 = vld [vmem:[%s4220 + $0x298] sm:$0xff]
        %v4305 = vld [vmem:[%s4220 + $0x2a0] sm:$0xff]
        %v4306 = vld [vmem:[%s4220 + $0x2a8] sm:$0xff]
        %v4307 = vld [vmem:[%s4220 + $0x2b0] sm:$0xff]
        %v4308 = vld [vmem:[%s4220 + $0x2b8] sm:$0xff]
        %v4309 = vld [vmem:[%s4220 + $0x2c0] sm:$0xff]
        %v4310 = vld [vmem:[%s4220 + $0x2c8] sm:$0xff]
        %v4311 = vld [vmem:[%s4220 + $0x2d0] sm:$0xff]
        %v4312 = vld [vmem:[%s4220 + $0x2d8] sm:$0xff]
        %v4313 = vld [vmem:[%s4220 + $0x2e0] sm:$0xff]
        %v4314 = vld [vmem:[%s4220 + $0x2e8] sm:$0xff]
        %v4315 = vld [vmem:[%s4220 + $0x2f0] sm:$0xff]
        %v4316 = vld [vmem:[%s4220 + $0x2f8] sm:$0xff]
        %v4317 = vld [vmem:[%s4220 + $0x300] sm:$0xff]
        %v4318 = vld [vmem:[%s4220 + $0x308] sm:$0xff]
        %v4319 = vld [vmem:[%s4220 + $0x310] sm:$0xff]
        %v4320 = vld [vmem:[%s4220 + $0x318] sm:$0xff]
        %v4321 = vld [vmem:[%s4220 + $0x320] sm:$0xff]
        %v4322 = vld [vmem:[%s4220 + $0x328] sm:$0xff]
        %v4323 = vld [vmem:[%s4220 + $0x330] sm:$0xff]
        %v4324 = vld [vmem:[%s4220 + $0x338] sm:$0xff]
        %v4325 = vld [vmem:[%s4220 + $0x340] sm:$0xff]
        %v4326 = vld [vmem:[%s4220 + $0x348] sm:$0xff]
        %v4327 = vld [vmem:[%s4220 + $0x350] sm:$0xff]
        %v4328 = vld [vmem:[%s4220 + $0x358] sm:$0xff]
        %v4329 = vld [vmem:[%s4220 + $0x360] sm:$0xff]
        %v4330 = vld [vmem:[%s4220 + $0x368] sm:$0xff]
        %v4331 = vld [vmem:[%s4220 + $0x370] sm:$0xff]
        %v4332 = vld [vmem:[%s4220 + $0x378] sm:$0xff]
        %v4333 = vld [vmem:[%s4220 + $0x380] sm:$0xff]
        %v4334 = vld [vmem:[%s4220 + $0x388] sm:$0xff]
        %v4335 = vld [vmem:[%s4220 + $0x390] sm:$0xff]
        %v4336 = vld [vmem:[%s4220 + $0x398] sm:$0xff]
        %v4337 = vld [vmem:[%s4220 + $0x3a0] sm:$0xff]
        %v4338 = vld [vmem:[%s4220 + $0x3a8] sm:$0xff]
        %v4339 = vld [vmem:[%s4220 + $0x3b0] sm:$0xff]
        %v4340 = vld [vmem:[%s4220 + $0x3b8] sm:$0xff]
        %v4341 = vld [vmem:[%s4220 + $0x3c0] sm:$0xff]
        %v4342 = vld [vmem:[%s4220 + $0x3c8] sm:$0xff]
        %v4343 = vld [vmem:[%s4220 + $0x3d0] sm:$0xff]
        %v4344 = vld [vmem:[%s4220 + $0x3d8] sm:$0xff]
        %v4345 = vld [vmem:[%s4220 + $0x3e0] sm:$0xff]
        %v4346 = vld [vmem:[%s4220 + $0x3e8] sm:$0xff]
        %v4347 = vld [vmem:[%s4220 + $0x3f0] sm:$0xff]
        %v4348 = vld [vmem:[%s4220 + $0x3f8] sm:$0xff]
        %v4349 = vld [vmem:[%s4220 + $0x400] sm:$0xff]
        %v4350 = vld [vmem:[%s4220 + $0x408] sm:$0xff]
        %v4351 = vld [vmem:[%s4220 + $0x410] sm:$0xff]
        %v4352 = vld [vmem:[%s4220 + $0x418] sm:$0xff]
        %v4353 = vld [vmem:[%s4220 + $0x420] sm:$0xff]
        %v4354 = vld [vmem:[%s4220 + $0x428] sm:$0xff]
        %v4355 = vld [vmem:[%s4220 + $0x430] sm:$0xff]
        %v4356 = vld [vmem:[%s4220 + $0x438] sm:$0xff]
        %v4357 = vld [vmem:[%s4220 + $0x440] sm:$0xff]
        %v4358 = vld [vmem:[%s4220 + $0x448] sm:$0xff]
        %v4359 = vld [vmem:[%s4220 + $0x450] sm:$0xff]
        %v4360 = vld [vmem:[%s4220 + $0x458] sm:$0xff]
        %v4361 = vld [vmem:[%s4220 + $0x460] sm:$0xff]
        %v4362 = vld [vmem:[%s4220 + $0x468] sm:$0xff]
        %v4363 = vld [vmem:[%s4220 + $0x470] sm:$0xff]
        %v4364 = vld [vmem:[%s4220 + $0x478] sm:$0xff]
        %v4365 = vld [vmem:[%s4220 + $0x480] sm:$0xff]
        %v4366 = vld [vmem:[%s4220 + $0x488] sm:$0xff]
        %v4367 = vld [vmem:[%s4220 + $0x490] sm:$0xff]
        %v4368 = vld [vmem:[%s4220 + $0x498] sm:$0xff]
        %v4369 = vld [vmem:[%s4220 + $0x4a0] sm:$0xff]
        %v4370 = vld [vmem:[%s4220 + $0x4a8] sm:$0xff]
        %v4371 = vld [vmem:[%s4220 + $0x4b0] sm:$0xff]
        %v4372 = vld [vmem:[%s4220 + $0x4b8] sm:$0xff]
        %v4373 = vld [vmem:[%s4220 + $0x4c0] sm:$0xff]
        %v4374 = vld [vmem:[%s4220 + $0x4c8] sm:$0xff]
        %v4375 = vld [vmem:[%s4220 + $0x4d0] sm:$0xff]
        %v4376 = vld [vmem:[%s4220 + $0x4d8] sm:$0xff]
        %v4377 = vld [vmem:[%s4220 + $0x4e0] sm:$0xff]
        %v4378 = vld [vmem:[%s4220 + $0x4e8] sm:$0xff]
        %v4379 = vld [vmem:[%s4220 + $0x4f0] sm:$0xff]
        %v4380 = vld [vmem:[%s4220 + $0x4f8] sm:$0xff]
        %v4381 = vld [vmem:[%s4220 + $0x500] sm:$0xff]
        %v4382 = vld [vmem:[%s4220 + $0x508] sm:$0xff]
        %v4383 = vld [vmem:[%s4220 + $0x510] sm:$0xff]
        %v4384 = vld [vmem:[%s4220 + $0x518] sm:$0xff]
        %v4385 = vld [vmem:[%s4220 + $0x520] sm:$0xff]
        %v4386 = vld [vmem:[%s4220 + $0x528] sm:$0xff]
        %v4387 = vld [vmem:[%s4220 + $0x530] sm:$0xff]
        %v4388 = vld [vmem:[%s4220 + $0x538] sm:$0xff]
        %v4389 = vld [vmem:[%s4220 + $0x540] sm:$0xff]
        %v4390 = vld [vmem:[%s4220 + $0x548] sm:$0xff]
        %v4391 = vld [vmem:[%s4220 + $0x550] sm:$0xff]
        %v4392 = vld [vmem:[%s4220 + $0x558] sm:$0xff]
        %v4393 = vld [vmem:[%s4220 + $0x560] sm:$0xff]
        %v4394 = vld [vmem:[%s4220 + $0x568] sm:$0xff]
        %v4395 = vld [vmem:[%s4220 + $0x570] sm:$0xff]
        %v4396 = vld [vmem:[%s4220 + $0x578] sm:$0xff]
        %v4397 = vld [vmem:[%s4220 + $0x580] sm:$0xff]
        %v4398 = vld [vmem:[%s4220 + $0x588] sm:$0xff]
        %v4399 = vld [vmem:[%s4220 + $0x590] sm:$0xff]
        %v4400 = vld [vmem:[%s4220 + $0x598] sm:$0xff]
        %v4401 = vld [vmem:[%s4220 + $0x5a0] sm:$0xff]
        %v4402 = vld [vmem:[%s4220 + $0x5a8] sm:$0xff]
        %v4403 = vld [vmem:[%s4220 + $0x5b0] sm:$0xff]
        %v4404 = vld [vmem:[%s4220 + $0x5b8] sm:$0xff]
        %v4405 = vld [vmem:[%s4220 + $0x5c0] sm:$0xff]
        %v4406 = vld [vmem:[%s4220 + $0x5c8] sm:$0xff]
        %v4407 = vld [vmem:[%s4220 + $0x5d0] sm:$0xff]
        %v4408 = vld [vmem:[%s4220 + $0x5d8] sm:$0xff]
        %v4409 = vld [vmem:[%s4220 + $0x5e0] sm:$0xff]
        %v4410 = vld [vmem:[%s4220 + $0x5e8] sm:$0xff]
        %v4411 = vld [vmem:[%s4220 + $0x5f0] sm:$0xff]
        %v4412 = vld [vmem:[%s4220 + $0x5f8] sm:$0xff]
        %v4413 = vld [vmem:[%s4220 + $0x600] sm:$0xff]
        %v4414 = vld [vmem:[%s4220 + $0x608] sm:$0xff]
        %v4415 = vld [vmem:[%s4220 + $0x610] sm:$0xff]
        %v4416 = vld [vmem:[%s4220 + $0x618] sm:$0xff]
        %v4417 = vld [vmem:[%s4220 + $0x620] sm:$0xff]
        %v4418 = vld [vmem:[%s4220 + $0x628] sm:$0xff]
        %v4419 = vld [vmem:[%s4220 + $0x630] sm:$0xff]
        %v4420 = vld [vmem:[%s4220 + $0x638] sm:$0xff]
        %v4421 = vld [vmem:[%s4220 + $0x640] sm:$0xff]
        %v4422 = vld [vmem:[%s4220 + $0x648] sm:$0xff]
        %v4423 = vld [vmem:[%s4220 + $0x650] sm:$0xff]
        %v4424 = vld [vmem:[%s4220 + $0x658] sm:$0xff]
        %v4425 = vld [vmem:[%s4220 + $0x660] sm:$0xff]
        %v4426 = vld [vmem:[%s4220 + $0x668] sm:$0xff]
        %v4427 = vld [vmem:[%s4220 + $0x670] sm:$0xff]
        %v4428 = vld [vmem:[%s4220 + $0x678] sm:$0xff]
        %v4429 = vld [vmem:[%s4220 + $0x680] sm:$0xff]
        %v4430 = vld [vmem:[%s4220 + $0x688] sm:$0xff]
        %v4431 = vld [vmem:[%s4220 + $0x690] sm:$0xff]
        %v4432 = vld [vmem:[%s4220 + $0x698] sm:$0xff]
        %v4433 = vld [vmem:[%s4220 + $0x6a0] sm:$0xff]
        %v4434 = vld [vmem:[%s4220 + $0x6a8] sm:$0xff]
        %v4435 = vld [vmem:[%s4220 + $0x6b0] sm:$0xff]
        %v4436 = vld [vmem:[%s4220 + $0x6b8] sm:$0xff]
        %v4437 = vld [vmem:[%s4220 + $0x6c0] sm:$0xff]
        %v4438 = vld [vmem:[%s4220 + $0x6c8] sm:$0xff]
        %v4439 = vld [vmem:[%s4220 + $0x6d0] sm:$0xff]
        %v4440 = vld [vmem:[%s4220 + $0x6d8] sm:$0xff]
        %v4441 = vld [vmem:[%s4220 + $0x6e0] sm:$0xff]
        %v4442 = vld [vmem:[%s4220 + $0x6e8] sm:$0xff]
        %v4443 = vld [vmem:[%s4220 + $0x6f0] sm:$0xff]
        %v4444 = vld [vmem:[%s4220 + $0x6f8] sm:$0xff]
        %v4445 = vld [vmem:[%s4220 + $0x700] sm:$0xff]
        %v4446 = vld [vmem:[%s4220 + $0x708] sm:$0xff]
        %v4447 = vld [vmem:[%s4220 + $0x710] sm:$0xff]
        %v4448 = vld [vmem:[%s4220 + $0x718] sm:$0xff]
        %v4449 = vld [vmem:[%s4220 + $0x720] sm:$0xff]
        %v4450 = vld [vmem:[%s4220 + $0x728] sm:$0xff]
        %v4451 = vld [vmem:[%s4220 + $0x730] sm:$0xff]
        %v4452 = vld [vmem:[%s4220 + $0x738] sm:$0xff]
        %v4453 = vld [vmem:[%s4220 + $0x740] sm:$0xff]
        %v4454 = vld [vmem:[%s4220 + $0x748] sm:$0xff]
        %v4455 = vld [vmem:[%s4220 + $0x750] sm:$0xff]
        %v4456 = vld [vmem:[%s4220 + $0x758] sm:$0xff]
        %v4457 = vld [vmem:[%s4220 + $0x760] sm:$0xff]
        %v4458 = vld [vmem:[%s4220 + $0x768] sm:$0xff]
        %v4459 = vld [vmem:[%s4220 + $0x770] sm:$0xff]
        %v4460 = vld [vmem:[%s4220 + $0x778] sm:$0xff]
        %v4461 = vld [vmem:[%s4220 + $0x780] sm:$0xff]
        %v4462 = vld [vmem:[%s4220 + $0x788] sm:$0xff]
        %v4463 = vld [vmem:[%s4220 + $0x790] sm:$0xff]
        %v4464 = vld [vmem:[%s4220 + $0x798] sm:$0xff]
        %v4465 = vld [vmem:[%s4220 + $0x7a0] sm:$0xff]
        %v4466 = vld [vmem:[%s4220 + $0x7a8] sm:$0xff]
        %v4467 = vld [vmem:[%s4220 + $0x7b0] sm:$0xff]
        %v4468 = vld [vmem:[%s4220 + $0x7b8] sm:$0xff]
        %v4469 = vld [vmem:[%s4220 + $0x7c0] sm:$0xff]
        %v4470 = vld [vmem:[%s4220 + $0x7c8] sm:$0xff]
        %v4471 = vld [vmem:[%s4220 + $0x7d0] sm:$0xff]
        %v4472 = vld [vmem:[%s4220 + $0x7d8] sm:$0xff]
        %v4473 = vld [vmem:[%s4220 + $0x7e0] sm:$0xff]
        %v4474 = vld [vmem:[%s4220 + $0x7e8] sm:$0xff]
        %v4475 = vld [vmem:[%s4220 + $0x7f0] sm:$0xff]
        %v4476 = vld [vmem:[%s4220 + $0x7f8] sm:$0xff]
        %v4477 = vlaneseq
        %v4478 = vshrl.u32 %v4477, 7
        %v4479 = vsub.s32 1, %v4478
        %v4480 = vrot.slane %v382, %v4479
        %v4481 = vlaneseq
        %v4482 = vshrl.u32 %v4481, 7
        %v4483 = vsub.s32 1, %v4482
        %v4484 = vrot.slane %v383, %v4483
        %v4485 = vlaneseq
        %v4486 = vshrl.u32 %v4485, 7
        %v4487 = vsub.s32 1, %v4486
        %v4488 = vrot.slane %v384, %v4487
        %v4489 = vlaneseq
        %v4490 = vshrl.u32 %v4489, 7
        %v4491 = vsub.s32 1, %v4490
        %v4492 = vrot.slane %v385, %v4491
        %v4749 = vunpack.c.l.b16 %v4221
        %v4750 = vunpack.c.h.b16 %v4221
        %v4751 = vunpack.c.l.b16 %v4222
        %v4752 = vunpack.c.h.b16 %v4222
        %v4753 = vunpack.c.l.b16 %v4223
        %v4754 = vunpack.c.h.b16 %v4223
        %v4755 = vunpack.c.l.b16 %v4224
        %v4756 = vunpack.c.h.b16 %v4224
        %v4757 = vunpack.c.l.b16 %v4225
        %v4758 = vunpack.c.h.b16 %v4225
        %v4759 = vunpack.c.l.b16 %v4226
        %v4760 = vunpack.c.h.b16 %v4226
        %v4761 = vunpack.c.l.b16 %v4227
        %v4762 = vunpack.c.h.b16 %v4227
        %v4763 = vunpack.c.l.b16 %v4228
        %v4764 = vunpack.c.h.b16 %v4228
        %v4765 = vunpack.c.l.b16 %v4229
        %v4766 = vunpack.c.h.b16 %v4229
        %v4767 = vunpack.c.l.b16 %v4230
        %v4768 = vunpack.c.h.b16 %v4230
        %v4769 = vunpack.c.l.b16 %v4231
        %v4770 = vunpack.c.h.b16 %v4231
        %v4771 = vunpack.c.l.b16 %v4232
        %v4772 = vunpack.c.h.b16 %v4232
        %v4773 = vunpack.c.l.b16 %v4233
        %v4774 = vunpack.c.h.b16 %v4233
        %v4775 = vunpack.c.l.b16 %v4234
        %v4776 = vunpack.c.h.b16 %v4234
        %v4777 = vunpack.c.l.b16 %v4235
        %v4778 = vunpack.c.h.b16 %v4235
        %v4779 = vunpack.c.l.b16 %v4236
        %v4780 = vunpack.c.h.b16 %v4236
        %v4781 = vunpack.c.l.b16 %v4237
        %v4782 = vunpack.c.h.b16 %v4237
        %v4783 = vunpack.c.l.b16 %v4238
        %v4784 = vunpack.c.h.b16 %v4238
        %v4785 = vunpack.c.l.b16 %v4239
        %v4786 = vunpack.c.h.b16 %v4239
        %v4787 = vunpack.c.l.b16 %v4240
        %v4788 = vunpack.c.h.b16 %v4240
        %v4789 = vunpack.c.l.b16 %v4241
        %v4790 = vunpack.c.h.b16 %v4241
        %v4791 = vunpack.c.l.b16 %v4242
        %v4792 = vunpack.c.h.b16 %v4242
        %v4793 = vunpack.c.l.b16 %v4243
        %v4794 = vunpack.c.h.b16 %v4243
        %v4795 = vunpack.c.l.b16 %v4244
        %v4796 = vunpack.c.h.b16 %v4244
        %v4797 = vunpack.c.l.b16 %v4245
        %v4798 = vunpack.c.h.b16 %v4245
        %v4799 = vunpack.c.l.b16 %v4246
        %v4800 = vunpack.c.h.b16 %v4246
        %v4801 = vunpack.c.l.b16 %v4247
        %v4802 = vunpack.c.h.b16 %v4247
        %v4803 = vunpack.c.l.b16 %v4248
        %v4804 = vunpack.c.h.b16 %v4248
        %v4805 = vunpack.c.l.b16 %v4249
        %v4806 = vunpack.c.h.b16 %v4249
        %v4807 = vunpack.c.l.b16 %v4250
        %v4808 = vunpack.c.h.b16 %v4250
        %v4809 = vunpack.c.l.b16 %v4251
        %v4810 = vunpack.c.h.b16 %v4251
        %v4811 = vunpack.c.l.b16 %v4252
        %v4812 = vunpack.c.h.b16 %v4252
        %v4813 = vunpack.c.l.b16 %v4253
        %v4814 = vunpack.c.h.b16 %v4253
        %v4815 = vunpack.c.l.b16 %v4254
        %v4816 = vunpack.c.h.b16 %v4254
        %v4817 = vunpack.c.l.b16 %v4255
        %v4818 = vunpack.c.h.b16 %v4255
        %v4819 = vunpack.c.l.b16 %v4256
        %v4820 = vunpack.c.h.b16 %v4256
        %v4821 = vunpack.c.l.b16 %v4257
        %v4822 = vunpack.c.h.b16 %v4257
        %v4823 = vunpack.c.l.b16 %v4258
        %v4824 = vunpack.c.h.b16 %v4258
        %v4825 = vunpack.c.l.b16 %v4259
        %v4826 = vunpack.c.h.b16 %v4259
        %v4827 = vunpack.c.l.b16 %v4260
        %v4828 = vunpack.c.h.b16 %v4260
        %v4829 = vunpack.c.l.b16 %v4261
        %v4830 = vunpack.c.h.b16 %v4261
        %v4831 = vunpack.c.l.b16 %v4262
        %v4832 = vunpack.c.h.b16 %v4262
        %v4833 = vunpack.c.l.b16 %v4263
        %v4834 = vunpack.c.h.b16 %v4263
        %v4835 = vunpack.c.l.b16 %v4264
        %v4836 = vunpack.c.h.b16 %v4264
        %v4837 = vunpack.c.l.b16 %v4265
        %v4838 = vunpack.c.h.b16 %v4265
        %v4839 = vunpack.c.l.b16 %v4266
        %v4840 = vunpack.c.h.b16 %v4266
        %v4841 = vunpack.c.l.b16 %v4267
        %v4842 = vunpack.c.h.b16 %v4267
        %v4843 = vunpack.c.l.b16 %v4268
        %v4844 = vunpack.c.h.b16 %v4268
        %v4845 = vunpack.c.l.b16 %v4269
        %v4846 = vunpack.c.h.b16 %v4269
        %v4847 = vunpack.c.l.b16 %v4270
        %v4848 = vunpack.c.h.b16 %v4270
        %v4849 = vunpack.c.l.b16 %v4271
        %v4850 = vunpack.c.h.b16 %v4271
        %v4851 = vunpack.c.l.b16 %v4272
        %v4852 = vunpack.c.h.b16 %v4272
        %v4853 = vunpack.c.l.b16 %v4273
        %v4854 = vunpack.c.h.b16 %v4273
        %v4855 = vunpack.c.l.b16 %v4274
        %v4856 = vunpack.c.h.b16 %v4274
        %v4857 = vunpack.c.l.b16 %v4275
        %v4858 = vunpack.c.h.b16 %v4275
        %v4859 = vunpack.c.l.b16 %v4276
        %v4860 = vunpack.c.h.b16 %v4276
        %v4861 = vunpack.c.l.b16 %v4277
        %v4862 = vunpack.c.h.b16 %v4277
        %v4863 = vunpack.c.l.b16 %v4278
        %v4864 = vunpack.c.h.b16 %v4278
        %v4865 = vunpack.c.l.b16 %v4279
        %v4866 = vunpack.c.h.b16 %v4279
        %v4867 = vunpack.c.l.b16 %v4280
        %v4868 = vunpack.c.h.b16 %v4280
        %v4869 = vunpack.c.l.b16 %v4281
        %v4870 = vunpack.c.h.b16 %v4281
        %v4871 = vunpack.c.l.b16 %v4282
        %v4872 = vunpack.c.h.b16 %v4282
        %v4873 = vunpack.c.l.b16 %v4283
        %v4874 = vunpack.c.h.b16 %v4283
        %v4875 = vunpack.c.l.b16 %v4284
        %v4876 = vunpack.c.h.b16 %v4284
        %v4877 = vunpack.c.l.b16 %v4285
        %v4878 = vunpack.c.h.b16 %v4285
        %v4879 = vunpack.c.l.b16 %v4286
        %v4880 = vunpack.c.h.b16 %v4286
        %v4881 = vunpack.c.l.b16 %v4287
        %v4882 = vunpack.c.h.b16 %v4287
        %v4883 = vunpack.c.l.b16 %v4288
        %v4884 = vunpack.c.h.b16 %v4288
        %v4885 = vunpack.c.l.b16 %v4289
        %v4886 = vunpack.c.h.b16 %v4289
        %v4887 = vunpack.c.l.b16 %v4290
        %v4888 = vunpack.c.h.b16 %v4290
        %v4889 = vunpack.c.l.b16 %v4291
        %v4890 = vunpack.c.h.b16 %v4291
        %v4891 = vunpack.c.l.b16 %v4292
        %v4892 = vunpack.c.h.b16 %v4292
        %v4893 = vunpack.c.l.b16 %v4293
        %v4894 = vunpack.c.h.b16 %v4293
        %v4895 = vunpack.c.l.b16 %v4294
        %v4896 = vunpack.c.h.b16 %v4294
        %v4897 = vunpack.c.l.b16 %v4295
        %v4898 = vunpack.c.h.b16 %v4295
        %v4899 = vunpack.c.l.b16 %v4296
        %v4900 = vunpack.c.h.b16 %v4296
        %v4901 = vunpack.c.l.b16 %v4297
        %v4902 = vunpack.c.h.b16 %v4297
        %v4903 = vunpack.c.l.b16 %v4298
        %v4904 = vunpack.c.h.b16 %v4298
        %v4905 = vunpack.c.l.b16 %v4299
        %v4906 = vunpack.c.h.b16 %v4299
        %v4907 = vunpack.c.l.b16 %v4300
        %v4908 = vunpack.c.h.b16 %v4300
        %v4909 = vunpack.c.l.b16 %v4301
        %v4910 = vunpack.c.h.b16 %v4301
        %v4911 = vunpack.c.l.b16 %v4302
        %v4912 = vunpack.c.h.b16 %v4302
        %v4913 = vunpack.c.l.b16 %v4303
        %v4914 = vunpack.c.h.b16 %v4303
        %v4915 = vunpack.c.l.b16 %v4304
        %v4916 = vunpack.c.h.b16 %v4304
        %v4917 = vunpack.c.l.b16 %v4305
        %v4918 = vunpack.c.h.b16 %v4305
        %v4919 = vunpack.c.l.b16 %v4306
        %v4920 = vunpack.c.h.b16 %v4306
        %v4921 = vunpack.c.l.b16 %v4307
        %v4922 = vunpack.c.h.b16 %v4307
        %v4923 = vunpack.c.l.b16 %v4308
        %v4924 = vunpack.c.h.b16 %v4308
        %v4925 = vunpack.c.l.b16 %v4309
        %v4926 = vunpack.c.h.b16 %v4309
        %v4927 = vunpack.c.l.b16 %v4310
        %v4928 = vunpack.c.h.b16 %v4310
        %v4929 = vunpack.c.l.b16 %v4311
        %v4930 = vunpack.c.h.b16 %v4311
        %v4931 = vunpack.c.l.b16 %v4312
        %v4932 = vunpack.c.h.b16 %v4312
        %v4933 = vunpack.c.l.b16 %v4313
        %v4934 = vunpack.c.h.b16 %v4313
        %v4935 = vunpack.c.l.b16 %v4314
        %v4936 = vunpack.c.h.b16 %v4314
        %v4937 = vunpack.c.l.b16 %v4315
        %v4938 = vunpack.c.h.b16 %v4315
        %v4939 = vunpack.c.l.b16 %v4316
        %v4940 = vunpack.c.h.b16 %v4316
        %v4941 = vunpack.c.l.b16 %v4317
        %v4942 = vunpack.c.h.b16 %v4317
        %v4943 = vunpack.c.l.b16 %v4318
        %v4944 = vunpack.c.h.b16 %v4318
        %v4945 = vunpack.c.l.b16 %v4319
        %v4946 = vunpack.c.h.b16 %v4319
        %v4947 = vunpack.c.l.b16 %v4320
        %v4948 = vunpack.c.h.b16 %v4320
        %v4949 = vunpack.c.l.b16 %v4321
        %v4950 = vunpack.c.h.b16 %v4321
        %v4951 = vunpack.c.l.b16 %v4322
        %v4952 = vunpack.c.h.b16 %v4322
        %v4953 = vunpack.c.l.b16 %v4323
        %v4954 = vunpack.c.h.b16 %v4323
        %v4955 = vunpack.c.l.b16 %v4324
        %v4956 = vunpack.c.h.b16 %v4324
        %v4957 = vunpack.c.l.b16 %v4325
        %v4958 = vunpack.c.h.b16 %v4325
        %v4959 = vunpack.c.l.b16 %v4326
        %v4960 = vunpack.c.h.b16 %v4326
        %v4961 = vunpack.c.l.b16 %v4327
        %v4962 = vunpack.c.h.b16 %v4327
        %v4963 = vunpack.c.l.b16 %v4328
        %v4964 = vunpack.c.h.b16 %v4328
        %v4965 = vunpack.c.l.b16 %v4329
        %v4966 = vunpack.c.h.b16 %v4329
        %v4967 = vunpack.c.l.b16 %v4330
        %v4968 = vunpack.c.h.b16 %v4330
        %v4969 = vunpack.c.l.b16 %v4331
        %v4970 = vunpack.c.h.b16 %v4331
        %v4971 = vunpack.c.l.b16 %v4332
        %v4972 = vunpack.c.h.b16 %v4332
        %v4973 = vunpack.c.l.b16 %v4333
        %v4974 = vunpack.c.h.b16 %v4333
        %v4975 = vunpack.c.l.b16 %v4334
        %v4976 = vunpack.c.h.b16 %v4334
        %v4977 = vunpack.c.l.b16 %v4335
        %v4978 = vunpack.c.h.b16 %v4335
        %v4979 = vunpack.c.l.b16 %v4336
        %v4980 = vunpack.c.h.b16 %v4336
        %v4981 = vunpack.c.l.b16 %v4337
        %v4982 = vunpack.c.h.b16 %v4337
        %v4983 = vunpack.c.l.b16 %v4338
        %v4984 = vunpack.c.h.b16 %v4338
        %v4985 = vunpack.c.l.b16 %v4339
        %v4986 = vunpack.c.h.b16 %v4339
        %v4987 = vunpack.c.l.b16 %v4340
        %v4988 = vunpack.c.h.b16 %v4340
        %v4989 = vunpack.c.l.b16 %v4341
        %v4990 = vunpack.c.h.b16 %v4341
        %v4991 = vunpack.c.l.b16 %v4342
        %v4992 = vunpack.c.h.b16 %v4342
        %v4993 = vunpack.c.l.b16 %v4343
        %v4994 = vunpack.c.h.b16 %v4343
        %v4995 = vunpack.c.l.b16 %v4344
        %v4996 = vunpack.c.h.b16 %v4344
        %v4997 = vunpack.c.l.b16 %v4345
        %v4998 = vunpack.c.h.b16 %v4345
        %v4999 = vunpack.c.l.b16 %v4346
        %v5000 = vunpack.c.h.b16 %v4346
        %v5001 = vunpack.c.l.b16 %v4347
        %v5002 = vunpack.c.h.b16 %v4347
        %v5003 = vunpack.c.l.b16 %v4348
        %v5004 = vunpack.c.h.b16 %v4348
        %v5005 = vunpack.c.l.b16 %v4349
        %v5006 = vunpack.c.h.b16 %v4349
        %v5007 = vunpack.c.l.b16 %v4350
        %v5008 = vunpack.c.h.b16 %v4350
        %v5009 = vunpack.c.l.b16 %v4351
        %v5010 = vunpack.c.h.b16 %v4351
        %v5011 = vunpack.c.l.b16 %v4352
        %v5012 = vunpack.c.h.b16 %v4352
        %v5013 = vunpack.c.l.b16 %v4353
        %v5014 = vunpack.c.h.b16 %v4353
        %v5015 = vunpack.c.l.b16 %v4354
        %v5016 = vunpack.c.h.b16 %v4354
        %v5017 = vunpack.c.l.b16 %v4355
        %v5018 = vunpack.c.h.b16 %v4355
        %v5019 = vunpack.c.l.b16 %v4356
        %v5020 = vunpack.c.h.b16 %v4356
        %v5021 = vunpack.c.l.b16 %v4357
        %v5022 = vunpack.c.h.b16 %v4357
        %v5023 = vunpack.c.l.b16 %v4358
        %v5024 = vunpack.c.h.b16 %v4358
        %v5025 = vunpack.c.l.b16 %v4359
        %v5026 = vunpack.c.h.b16 %v4359
        %v5027 = vunpack.c.l.b16 %v4360
        %v5028 = vunpack.c.h.b16 %v4360
        %v5029 = vunpack.c.l.b16 %v4361
        %v5030 = vunpack.c.h.b16 %v4361
        %v5031 = vunpack.c.l.b16 %v4362
        %v5032 = vunpack.c.h.b16 %v4362
        %v5033 = vunpack.c.l.b16 %v4363
        %v5034 = vunpack.c.h.b16 %v4363
        %v5035 = vunpack.c.l.b16 %v4364
        %v5036 = vunpack.c.h.b16 %v4364
        %v5037 = vunpack.c.l.b16 %v4365
        %v5038 = vunpack.c.h.b16 %v4365
        %v5039 = vunpack.c.l.b16 %v4366
        %v5040 = vunpack.c.h.b16 %v4366
        %v5041 = vunpack.c.l.b16 %v4367
        %v5042 = vunpack.c.h.b16 %v4367
        %v5043 = vunpack.c.l.b16 %v4368
        %v5044 = vunpack.c.h.b16 %v4368
        %v5045 = vunpack.c.l.b16 %v4369
        %v5046 = vunpack.c.h.b16 %v4369
        %v5047 = vunpack.c.l.b16 %v4370
        %v5048 = vunpack.c.h.b16 %v4370
        %v5049 = vunpack.c.l.b16 %v4371
        %v5050 = vunpack.c.h.b16 %v4371
        %v5051 = vunpack.c.l.b16 %v4372
        %v5052 = vunpack.c.h.b16 %v4372
        %v5053 = vunpack.c.l.b16 %v4373
        %v5054 = vunpack.c.h.b16 %v4373
        %v5055 = vunpack.c.l.b16 %v4374
        %v5056 = vunpack.c.h.b16 %v4374
        %v5057 = vunpack.c.l.b16 %v4375
        %v5058 = vunpack.c.h.b16 %v4375
        %v5059 = vunpack.c.l.b16 %v4376
        %v5060 = vunpack.c.h.b16 %v4376
        %v5061 = vunpack.c.l.b16 %v4377
        %v5062 = vunpack.c.h.b16 %v4377
        %v5063 = vunpack.c.l.b16 %v4378
        %v5064 = vunpack.c.h.b16 %v4378
        %v5065 = vunpack.c.l.b16 %v4379
        %v5066 = vunpack.c.h.b16 %v4379
        %v5067 = vunpack.c.l.b16 %v4380
        %v5068 = vunpack.c.h.b16 %v4380
        %v5069 = vunpack.c.l.b16 %v4381
        %v5070 = vunpack.c.h.b16 %v4381
        %v5071 = vunpack.c.l.b16 %v4382
        %v5072 = vunpack.c.h.b16 %v4382
        %v5073 = vunpack.c.l.b16 %v4383
        %v5074 = vunpack.c.h.b16 %v4383
        %v5075 = vunpack.c.l.b16 %v4384
        %v5076 = vunpack.c.h.b16 %v4384
        %v5077 = vunpack.c.l.b16 %v4385
        %v5078 = vunpack.c.h.b16 %v4385
        %v5079 = vunpack.c.l.b16 %v4386
        %v5080 = vunpack.c.h.b16 %v4386
        %v5081 = vunpack.c.l.b16 %v4387
        %v5082 = vunpack.c.h.b16 %v4387
        %v5083 = vunpack.c.l.b16 %v4388
        %v5084 = vunpack.c.h.b16 %v4388
        %v5085 = vunpack.c.l.b16 %v4389
        %v5086 = vunpack.c.h.b16 %v4389
        %v5087 = vunpack.c.l.b16 %v4390
        %v5088 = vunpack.c.h.b16 %v4390
        %v5089 = vunpack.c.l.b16 %v4391
        %v5090 = vunpack.c.h.b16 %v4391
        %v5091 = vunpack.c.l.b16 %v4392
        %v5092 = vunpack.c.h.b16 %v4392
        %v5093 = vunpack.c.l.b16 %v4393
        %v5094 = vunpack.c.h.b16 %v4393
        %v5095 = vunpack.c.l.b16 %v4394
        %v5096 = vunpack.c.h.b16 %v4394
        %v5097 = vunpack.c.l.b16 %v4395
        %v5098 = vunpack.c.h.b16 %v4395
        %v5099 = vunpack.c.l.b16 %v4396
        %v5100 = vunpack.c.h.b16 %v4396
        %v5101 = vunpack.c.l.b16 %v4397
        %v5102 = vunpack.c.h.b16 %v4397
        %v5103 = vunpack.c.l.b16 %v4398
        %v5104 = vunpack.c.h.b16 %v4398
        %v5105 = vunpack.c.l.b16 %v4399
        %v5106 = vunpack.c.h.b16 %v4399
        %v5107 = vunpack.c.l.b16 %v4400
        %v5108 = vunpack.c.h.b16 %v4400
        %v5109 = vunpack.c.l.b16 %v4401
        %v5110 = vunpack.c.h.b16 %v4401
        %v5111 = vunpack.c.l.b16 %v4402
        %v5112 = vunpack.c.h.b16 %v4402
        %v5113 = vunpack.c.l.b16 %v4403
        %v5114 = vunpack.c.h.b16 %v4403
        %v5115 = vunpack.c.l.b16 %v4404
        %v5116 = vunpack.c.h.b16 %v4404
        %v5117 = vunpack.c.l.b16 %v4405
        %v5118 = vunpack.c.h.b16 %v4405
        %v5119 = vunpack.c.l.b16 %v4406
        %v5120 = vunpack.c.h.b16 %v4406
        %v5121 = vunpack.c.l.b16 %v4407
        %v5122 = vunpack.c.h.b16 %v4407
        %v5123 = vunpack.c.l.b16 %v4408
        %v5124 = vunpack.c.h.b16 %v4408
        %v5125 = vunpack.c.l.b16 %v4409
        %v5126 = vunpack.c.h.b16 %v4409
        %v5127 = vunpack.c.l.b16 %v4410
        %v5128 = vunpack.c.h.b16 %v4410
        %v5129 = vunpack.c.l.b16 %v4411
        %v5130 = vunpack.c.h.b16 %v4411
        %v5131 = vunpack.c.l.b16 %v4412
        %v5132 = vunpack.c.h.b16 %v4412
        %v5133 = vunpack.c.l.b16 %v4413
        %v5134 = vunpack.c.h.b16 %v4413
        %v5135 = vunpack.c.l.b16 %v4414
        %v5136 = vunpack.c.h.b16 %v4414
        %v5137 = vunpack.c.l.b16 %v4415
        %v5138 = vunpack.c.h.b16 %v4415
        %v5139 = vunpack.c.l.b16 %v4416
        %v5140 = vunpack.c.h.b16 %v4416
        %v5141 = vunpack.c.l.b16 %v4417
        %v5142 = vunpack.c.h.b16 %v4417
        %v5143 = vunpack.c.l.b16 %v4418
        %v5144 = vunpack.c.h.b16 %v4418
        %v5145 = vunpack.c.l.b16 %v4419
        %v5146 = vunpack.c.h.b16 %v4419
        %v5147 = vunpack.c.l.b16 %v4420
        %v5148 = vunpack.c.h.b16 %v4420
        %v5149 = vunpack.c.l.b16 %v4421
        %v5150 = vunpack.c.h.b16 %v4421
        %v5151 = vunpack.c.l.b16 %v4422
        %v5152 = vunpack.c.h.b16 %v4422
        %v5153 = vunpack.c.l.b16 %v4423
        %v5154 = vunpack.c.h.b16 %v4423
        %v5155 = vunpack.c.l.b16 %v4424
        %v5156 = vunpack.c.h.b16 %v4424
        %v5157 = vunpack.c.l.b16 %v4425
        %v5158 = vunpack.c.h.b16 %v4425
        %v5159 = vunpack.c.l.b16 %v4426
        %v5160 = vunpack.c.h.b16 %v4426
        %v5161 = vunpack.c.l.b16 %v4427
        %v5162 = vunpack.c.h.b16 %v4427
        %v5163 = vunpack.c.l.b16 %v4428
        %v5164 = vunpack.c.h.b16 %v4428
        %v5165 = vunpack.c.l.b16 %v4429
        %v5166 = vunpack.c.h.b16 %v4429
        %v5167 = vunpack.c.l.b16 %v4430
        %v5168 = vunpack.c.h.b16 %v4430
        %v5169 = vunpack.c.l.b16 %v4431
        %v5170 = vunpack.c.h.b16 %v4431
        %v5171 = vunpack.c.l.b16 %v4432
        %v5172 = vunpack.c.h.b16 %v4432
        %v5173 = vunpack.c.l.b16 %v4433
        %v5174 = vunpack.c.h.b16 %v4433
        %v5175 = vunpack.c.l.b16 %v4434
        %v5176 = vunpack.c.h.b16 %v4434
        %v5177 = vunpack.c.l.b16 %v4435
        %v5178 = vunpack.c.h.b16 %v4435
        %v5179 = vunpack.c.l.b16 %v4436
        %v5180 = vunpack.c.h.b16 %v4436
        %v5181 = vunpack.c.l.b16 %v4437
        %v5182 = vunpack.c.h.b16 %v4437
        %v5183 = vunpack.c.l.b16 %v4438
        %v5184 = vunpack.c.h.b16 %v4438
        %v5185 = vunpack.c.l.b16 %v4439
        %v5186 = vunpack.c.h.b16 %v4439
        %v5187 = vunpack.c.l.b16 %v4440
        %v5188 = vunpack.c.h.b16 %v4440
        %v5189 = vunpack.c.l.b16 %v4441
        %v5190 = vunpack.c.h.b16 %v4441
        %v5191 = vunpack.c.l.b16 %v4442
        %v5192 = vunpack.c.h.b16 %v4442
        %v5193 = vunpack.c.l.b16 %v4443
        %v5194 = vunpack.c.h.b16 %v4443
        %v5195 = vunpack.c.l.b16 %v4444
        %v5196 = vunpack.c.h.b16 %v4444
        %v5197 = vunpack.c.l.b16 %v4445
        %v5198 = vunpack.c.h.b16 %v4445
        %v5199 = vunpack.c.l.b16 %v4446
        %v5200 = vunpack.c.h.b16 %v4446
        %v5201 = vunpack.c.l.b16 %v4447
        %v5202 = vunpack.c.h.b16 %v4447
        %v5203 = vunpack.c.l.b16 %v4448
        %v5204 = vunpack.c.h.b16 %v4448
        %v5205 = vunpack.c.l.b16 %v4449
        %v5206 = vunpack.c.h.b16 %v4449
        %v5207 = vunpack.c.l.b16 %v4450
        %v5208 = vunpack.c.h.b16 %v4450
        %v5209 = vunpack.c.l.b16 %v4451
        %v5210 = vunpack.c.h.b16 %v4451
        %v5211 = vunpack.c.l.b16 %v4452
        %v5212 = vunpack.c.h.b16 %v4452
        %v5213 = vunpack.c.l.b16 %v4453
        %v5214 = vunpack.c.h.b16 %v4453
        %v5215 = vunpack.c.l.b16 %v4454
        %v5216 = vunpack.c.h.b16 %v4454
        %v5217 = vunpack.c.l.b16 %v4455
        %v5218 = vunpack.c.h.b16 %v4455
        %v5219 = vunpack.c.l.b16 %v4456
        %v5220 = vunpack.c.h.b16 %v4456
        %v5221 = vunpack.c.l.b16 %v4457
        %v5222 = vunpack.c.h.b16 %v4457
        %v5223 = vunpack.c.l.b16 %v4458
        %v5224 = vunpack.c.h.b16 %v4458
        %v5225 = vunpack.c.l.b16 %v4459
        %v5226 = vunpack.c.h.b16 %v4459
        %v5227 = vunpack.c.l.b16 %v4460
        %v5228 = vunpack.c.h.b16 %v4460
        %v5229 = vunpack.c.l.b16 %v4461
        %v5230 = vunpack.c.h.b16 %v4461
        %v5231 = vunpack.c.l.b16 %v4462
        %v5232 = vunpack.c.h.b16 %v4462
        %v5233 = vunpack.c.l.b16 %v4463
        %v5234 = vunpack.c.h.b16 %v4463
        %v5235 = vunpack.c.l.b16 %v4464
        %v5236 = vunpack.c.h.b16 %v4464
        %v5237 = vunpack.c.l.b16 %v4465
        %v5238 = vunpack.c.h.b16 %v4465
        %v5239 = vunpack.c.l.b16 %v4466
        %v5240 = vunpack.c.h.b16 %v4466
        %v5241 = vunpack.c.l.b16 %v4467
        %v5242 = vunpack.c.h.b16 %v4467
        %v5243 = vunpack.c.l.b16 %v4468
        %v5244 = vunpack.c.h.b16 %v4468
        %v5245 = vunpack.c.l.b16 %v4469
        %v5246 = vunpack.c.h.b16 %v4469
        %v5247 = vunpack.c.l.b16 %v4470
        %v5248 = vunpack.c.h.b16 %v4470
        %v5249 = vunpack.c.l.b16 %v4471
        %v5250 = vunpack.c.h.b16 %v4471
        %v5251 = vunpack.c.l.b16 %v4472
        %v5252 = vunpack.c.h.b16 %v4472
        %v5253 = vunpack.c.l.b16 %v4473
        %v5254 = vunpack.c.h.b16 %v4473
        %v5255 = vunpack.c.l.b16 %v4474
        %v5256 = vunpack.c.h.b16 %v4474
        %v5257 = vunpack.c.l.b16 %v4475
        %v5258 = vunpack.c.h.b16 %v4475
        %v5259 = vunpack.c.l.b16 %v4476
        %v5260 = vunpack.c.h.b16 %v4476
        %v5261 = vpack.c.b16 %v4753, %v4749
        %v5262 = vpack.c.b16 %v4754, %v4750
        %v5263 = vpack.c.b16 %v4755, %v4751
        %v5264 = vpack.c.b16 %v4756, %v4752
        %v5265 = vpack.c.b16 %v4761, %v4757
        %v5266 = vpack.c.b16 %v4762, %v4758
        %v5267 = vpack.c.b16 %v4763, %v4759
        %v5268 = vpack.c.b16 %v4764, %v4760
        %v5269 = vpack.c.b16 %v4769, %v4765
        %v5270 = vpack.c.b16 %v4770, %v4766
        %v5271 = vpack.c.b16 %v4771, %v4767
        %v5272 = vpack.c.b16 %v4772, %v4768
        %v5273 = vpack.c.b16 %v4777, %v4773
        %v5274 = vpack.c.b16 %v4778, %v4774
        %v5275 = vpack.c.b16 %v4779, %v4775
        %v5276 = vpack.c.b16 %v4780, %v4776
        %v5277 = vpack.c.b16 %v4785, %v4781
        %v5278 = vpack.c.b16 %v4786, %v4782
        %v5279 = vpack.c.b16 %v4787, %v4783
        %v5280 = vpack.c.b16 %v4788, %v4784
        %v5281 = vpack.c.b16 %v4793, %v4789
        %v5282 = vpack.c.b16 %v4794, %v4790
        %v5283 = vpack.c.b16 %v4795, %v4791
        %v5284 = vpack.c.b16 %v4796, %v4792
        %v5285 = vpack.c.b16 %v4801, %v4797
        %v5286 = vpack.c.b16 %v4802, %v4798
        %v5287 = vpack.c.b16 %v4803, %v4799
        %v5288 = vpack.c.b16 %v4804, %v4800
        %v5289 = vpack.c.b16 %v4809, %v4805
        %v5290 = vpack.c.b16 %v4810, %v4806
        %v5291 = vpack.c.b16 %v4811, %v4807
        %v5292 = vpack.c.b16 %v4812, %v4808
        %v5293 = vpack.c.b16 %v4817, %v4813
        %v5294 = vpack.c.b16 %v4818, %v4814
        %v5295 = vpack.c.b16 %v4819, %v4815
        %v5296 = vpack.c.b16 %v4820, %v4816
        %v5297 = vpack.c.b16 %v4825, %v4821
        %v5298 = vpack.c.b16 %v4826, %v4822
        %v5299 = vpack.c.b16 %v4827, %v4823
        %v5300 = vpack.c.b16 %v4828, %v4824
        %v5301 = vpack.c.b16 %v4833, %v4829
        %v5302 = vpack.c.b16 %v4834, %v4830
        %v5303 = vpack.c.b16 %v4835, %v4831
        %v5304 = vpack.c.b16 %v4836, %v4832
        %v5305 = vpack.c.b16 %v4841, %v4837
        %v5306 = vpack.c.b16 %v4842, %v4838
        %v5307 = vpack.c.b16 %v4843, %v4839
        %v5308 = vpack.c.b16 %v4844, %v4840
        %v5309 = vpack.c.b16 %v4849, %v4845
        %v5310 = vpack.c.b16 %v4850, %v4846
        %v5311 = vpack.c.b16 %v4851, %v4847
        %v5312 = vpack.c.b16 %v4852, %v4848
        %v5313 = vpack.c.b16 %v4857, %v4853
        %v5314 = vpack.c.b16 %v4858, %v4854
        %v5315 = vpack.c.b16 %v4859, %v4855
        %v5316 = vpack.c.b16 %v4860, %v4856
        %v5317 = vpack.c.b16 %v4865, %v4861
        %v5318 = vpack.c.b16 %v4866, %v4862
        %v5319 = vpack.c.b16 %v4867, %v4863
        %v5320 = vpack.c.b16 %v4868, %v4864
        %v5321 = vpack.c.b16 %v4873, %v4869
        %v5322 = vpack.c.b16 %v4874, %v4870
        %v5323 = vpack.c.b16 %v4875, %v4871
        %v5324 = vpack.c.b16 %v4876, %v4872
        %v5325 = vpack.c.b16 %v4881, %v4877
        %v5326 = vpack.c.b16 %v4882, %v4878
        %v5327 = vpack.c.b16 %v4883, %v4879
        %v5328 = vpack.c.b16 %v4884, %v4880
        %v5329 = vpack.c.b16 %v4889, %v4885
        %v5330 = vpack.c.b16 %v4890, %v4886
        %v5331 = vpack.c.b16 %v4891, %v4887
        %v5332 = vpack.c.b16 %v4892, %v4888
        %v5333 = vpack.c.b16 %v4897, %v4893
        %v5334 = vpack.c.b16 %v4898, %v4894
        %v5335 = vpack.c.b16 %v4899, %v4895
        %v5336 = vpack.c.b16 %v4900, %v4896
        %v5337 = vpack.c.b16 %v4905, %v4901
        %v5338 = vpack.c.b16 %v4906, %v4902
        %v5339 = vpack.c.b16 %v4907, %v4903
        %v5340 = vpack.c.b16 %v4908, %v4904
        %v5341 = vpack.c.b16 %v4913, %v4909
        %v5342 = vpack.c.b16 %v4914, %v4910
        %v5343 = vpack.c.b16 %v4915, %v4911
        %v5344 = vpack.c.b16 %v4916, %v4912
        %v5345 = vpack.c.b16 %v4921, %v4917
        %v5346 = vpack.c.b16 %v4922, %v4918
        %v5347 = vpack.c.b16 %v4923, %v4919
        %v5348 = vpack.c.b16 %v4924, %v4920
        %v5349 = vpack.c.b16 %v4929, %v4925
        %v5350 = vpack.c.b16 %v4930, %v4926
        %v5351 = vpack.c.b16 %v4931, %v4927
        %v5352 = vpack.c.b16 %v4932, %v4928
        %v5353 = vpack.c.b16 %v4937, %v4933
        %v5354 = vpack.c.b16 %v4938, %v4934
        %v5355 = vpack.c.b16 %v4939, %v4935
        %v5356 = vpack.c.b16 %v4940, %v4936
        %v5357 = vpack.c.b16 %v4945, %v4941
        %v5358 = vpack.c.b16 %v4946, %v4942
        %v5359 = vpack.c.b16 %v4947, %v4943
        %v5360 = vpack.c.b16 %v4948, %v4944
        %v5361 = vpack.c.b16 %v4953, %v4949
        %v5362 = vpack.c.b16 %v4954, %v4950
        %v5363 = vpack.c.b16 %v4955, %v4951
        %v5364 = vpack.c.b16 %v4956, %v4952
        %v5365 = vpack.c.b16 %v4961, %v4957
        %v5366 = vpack.c.b16 %v4962, %v4958
        %v5367 = vpack.c.b16 %v4963, %v4959
        %v5368 = vpack.c.b16 %v4964, %v4960
        %v5369 = vpack.c.b16 %v4969, %v4965
        %v5370 = vpack.c.b16 %v4970, %v4966
        %v5371 = vpack.c.b16 %v4971, %v4967
        %v5372 = vpack.c.b16 %v4972, %v4968
        %v5373 = vpack.c.b16 %v4977, %v4973
        %v5374 = vpack.c.b16 %v4978, %v4974
        %v5375 = vpack.c.b16 %v4979, %v4975
        %v5376 = vpack.c.b16 %v4980, %v4976
        %v5377 = vpack.c.b16 %v4985, %v4981
        %v5378 = vpack.c.b16 %v4986, %v4982
        %v5379 = vpack.c.b16 %v4987, %v4983
        %v5380 = vpack.c.b16 %v4988, %v4984
        %v5381 = vpack.c.b16 %v4993, %v4989
        %v5382 = vpack.c.b16 %v4994, %v4990
        %v5383 = vpack.c.b16 %v4995, %v4991
        %v5384 = vpack.c.b16 %v4996, %v4992
        %v5385 = vpack.c.b16 %v5001, %v4997
        %v5386 = vpack.c.b16 %v5002, %v4998
        %v5387 = vpack.c.b16 %v5003, %v4999
        %v5388 = vpack.c.b16 %v5004, %v5000
        %v5389 = vpack.c.b16 %v5009, %v5005
        %v5390 = vpack.c.b16 %v5010, %v5006
        %v5391 = vpack.c.b16 %v5011, %v5007
        %v5392 = vpack.c.b16 %v5012, %v5008
        %v5393 = vpack.c.b16 %v5017, %v5013
        %v5394 = vpack.c.b16 %v5018, %v5014
        %v5395 = vpack.c.b16 %v5019, %v5015
        %v5396 = vpack.c.b16 %v5020, %v5016
        %v5397 = vpack.c.b16 %v5025, %v5021
        %v5398 = vpack.c.b16 %v5026, %v5022
        %v5399 = vpack.c.b16 %v5027, %v5023
        %v5400 = vpack.c.b16 %v5028, %v5024
        %v5401 = vpack.c.b16 %v5033, %v5029
        %v5402 = vpack.c.b16 %v5034, %v5030
        %v5403 = vpack.c.b16 %v5035, %v5031
        %v5404 = vpack.c.b16 %v5036, %v5032
        %v5405 = vpack.c.b16 %v5041, %v5037
        %v5406 = vpack.c.b16 %v5042, %v5038
        %v5407 = vpack.c.b16 %v5043, %v5039
        %v5408 = vpack.c.b16 %v5044, %v5040
        %v5409 = vpack.c.b16 %v5049, %v5045
        %v5410 = vpack.c.b16 %v5050, %v5046
        %v5411 = vpack.c.b16 %v5051, %v5047
        %v5412 = vpack.c.b16 %v5052, %v5048
        %v5413 = vpack.c.b16 %v5057, %v5053
        %v5414 = vpack.c.b16 %v5058, %v5054
        %v5415 = vpack.c.b16 %v5059, %v5055
        %v5416 = vpack.c.b16 %v5060, %v5056
        %v5417 = vpack.c.b16 %v5065, %v5061
        %v5418 = vpack.c.b16 %v5066, %v5062
        %v5419 = vpack.c.b16 %v5067, %v5063
        %v5420 = vpack.c.b16 %v5068, %v5064
        %v5421 = vpack.c.b16 %v5073, %v5069
        %v5422 = vpack.c.b16 %v5074, %v5070
        %v5423 = vpack.c.b16 %v5075, %v5071
        %v5424 = vpack.c.b16 %v5076, %v5072
        %v5425 = vpack.c.b16 %v5081, %v5077
        %v5426 = vpack.c.b16 %v5082, %v5078
        %v5427 = vpack.c.b16 %v5083, %v5079
        %v5428 = vpack.c.b16 %v5084, %v5080
        %v5429 = vpack.c.b16 %v5089, %v5085
        %v5430 = vpack.c.b16 %v5090, %v5086
        %v5431 = vpack.c.b16 %v5091, %v5087
        %v5432 = vpack.c.b16 %v5092, %v5088
        %v5433 = vpack.c.b16 %v5097, %v5093
        %v5434 = vpack.c.b16 %v5098, %v5094
        %v5435 = vpack.c.b16 %v5099, %v5095
        %v5436 = vpack.c.b16 %v5100, %v5096
        %v5437 = vpack.c.b16 %v5105, %v5101
        %v5438 = vpack.c.b16 %v5106, %v5102
        %v5439 = vpack.c.b16 %v5107, %v5103
        %v5440 = vpack.c.b16 %v5108, %v5104
        %v5441 = vpack.c.b16 %v5113, %v5109
        %v5442 = vpack.c.b16 %v5114, %v5110
        %v5443 = vpack.c.b16 %v5115, %v5111
        %v5444 = vpack.c.b16 %v5116, %v5112
        %v5445 = vpack.c.b16 %v5121, %v5117
        %v5446 = vpack.c.b16 %v5122, %v5118
        %v5447 = vpack.c.b16 %v5123, %v5119
        %v5448 = vpack.c.b16 %v5124, %v5120
        %v5449 = vpack.c.b16 %v5129, %v5125
        %v5450 = vpack.c.b16 %v5130, %v5126
        %v5451 = vpack.c.b16 %v5131, %v5127
        %v5452 = vpack.c.b16 %v5132, %v5128
        %v5453 = vpack.c.b16 %v5137, %v5133
        %v5454 = vpack.c.b16 %v5138, %v5134
        %v5455 = vpack.c.b16 %v5139, %v5135
        %v5456 = vpack.c.b16 %v5140, %v5136
        %v5457 = vpack.c.b16 %v5145, %v5141
        %v5458 = vpack.c.b16 %v5146, %v5142
        %v5459 = vpack.c.b16 %v5147, %v5143
        %v5460 = vpack.c.b16 %v5148, %v5144
        %v5461 = vpack.c.b16 %v5153, %v5149
        %v5462 = vpack.c.b16 %v5154, %v5150
        %v5463 = vpack.c.b16 %v5155, %v5151
        %v5464 = vpack.c.b16 %v5156, %v5152
        %v5465 = vpack.c.b16 %v5161, %v5157
        %v5466 = vpack.c.b16 %v5162, %v5158
        %v5467 = vpack.c.b16 %v5163, %v5159
        %v5468 = vpack.c.b16 %v5164, %v5160
        %v5469 = vpack.c.b16 %v5169, %v5165
        %v5470 = vpack.c.b16 %v5170, %v5166
        %v5471 = vpack.c.b16 %v5171, %v5167
        %v5472 = vpack.c.b16 %v5172, %v5168
        %v5473 = vpack.c.b16 %v5177, %v5173
        %v5474 = vpack.c.b16 %v5178, %v5174
        %v5475 = vpack.c.b16 %v5179, %v5175
        %v5476 = vpack.c.b16 %v5180, %v5176
        %v5477 = vpack.c.b16 %v5185, %v5181
        %v5478 = vpack.c.b16 %v5186, %v5182
        %v5479 = vpack.c.b16 %v5187, %v5183
        %v5480 = vpack.c.b16 %v5188, %v5184
        %v5481 = vpack.c.b16 %v5193, %v5189
        %v5482 = vpack.c.b16 %v5194, %v5190
        %v5483 = vpack.c.b16 %v5195, %v5191
        %v5484 = vpack.c.b16 %v5196, %v5192
        %v5485 = vpack.c.b16 %v5201, %v5197
        %v5486 = vpack.c.b16 %v5202, %v5198
        %v5487 = vpack.c.b16 %v5203, %v5199
        %v5488 = vpack.c.b16 %v5204, %v5200
        %v5489 = vpack.c.b16 %v5209, %v5205
        %v5490 = vpack.c.b16 %v5210, %v5206
        %v5491 = vpack.c.b16 %v5211, %v5207
        %v5492 = vpack.c.b16 %v5212, %v5208
        %v5493 = vpack.c.b16 %v5217, %v5213
        %v5494 = vpack.c.b16 %v5218, %v5214
        %v5495 = vpack.c.b16 %v5219, %v5215
        %v5496 = vpack.c.b16 %v5220, %v5216
        %v5497 = vpack.c.b16 %v5225, %v5221
        %v5498 = vpack.c.b16 %v5226, %v5222
        %v5499 = vpack.c.b16 %v5227, %v5223
        %v5500 = vpack.c.b16 %v5228, %v5224
        %v5501 = vpack.c.b16 %v5233, %v5229
        %v5502 = vpack.c.b16 %v5234, %v5230
        %v5503 = vpack.c.b16 %v5235, %v5231
        %v5504 = vpack.c.b16 %v5236, %v5232
        %v5505 = vpack.c.b16 %v5241, %v5237
        %v5506 = vpack.c.b16 %v5242, %v5238
        %v5507 = vpack.c.b16 %v5243, %v5239
        %v5508 = vpack.c.b16 %v5244, %v5240
        %v5509 = vpack.c.b16 %v5249, %v5245
        %v5510 = vpack.c.b16 %v5250, %v5246
        %v5511 = vpack.c.b16 %v5251, %v5247
        %v5512 = vpack.c.b16 %v5252, %v5248
        %v5513 = vpack.c.b16 %v5257, %v5253
        %v5514 = vpack.c.b16 %v5258, %v5254
        %v5515 = vpack.c.b16 %v5259, %v5255
        %v5516 = vpack.c.b16 %v5260, %v5256
        %5773 = vmatprep.subr.bf16.mxu0 %v5290
        %5774 = vmatpush1.bf16.msra.mxu0 %v5289
        %5775 = vmatprep.subr.bf16.mxu0 %v5286
        %5776 = vmatpush1.bf16.msra.mxu0 %v5285
        %5777 = vmatprep.subr.bf16.mxu0 %v5282
        %5778 = vmatpush1.bf16.msra.mxu0 %v5281
        %5779 = vmatprep.subr.bf16.mxu0 %v5278
        %5780 = vmatpush1.bf16.msra.mxu0 %v5277
        %5781 = vmatprep.subr.bf16.mxu0 %v5274
        %5782 = vmatpush1.bf16.msra.mxu0 %v5273
        %5783 = vmatprep.subr.bf16.mxu0 %v5270
        %5784 = vmatpush1.bf16.msra.mxu0 %v5269
        %5785 = vmatprep.subr.bf16.mxu0 %v5266
        %5786 = vmatpush1.bf16.msra.mxu0 %v5265
        %5787 = vmatprep.subr.bf16.mxu0 %v5262
        %5788 = vmatpush1.bf16.msra.mxu0 %v5261
        %5789 = vmatprep.subr.bf16.mxu0 %v5322
        %5790 = vmatpush2.bf16.msra.mxu0 %v5321
        %5791 = vmatprep.subr.bf16.mxu0 %v5318
        %5792 = vmatpush2.bf16.msra.mxu0 %v5317
        %5793 = vmatprep.subr.bf16.mxu0 %v5314
        %5794 = vmatpush2.bf16.msra.mxu0 %v5313
        %5795 = vmatprep.subr.bf16.mxu0 %v5310
        %5796 = vmatpush2.bf16.msra.mxu0 %v5309
        %5797 = vmatprep.subr.bf16.mxu0 %v5306
        %5798 = vmatpush2.bf16.msra.mxu0 %v5305
        %5799 = vmatprep.subr.bf16.mxu0 %v5302
        %5800 = vmatpush2.bf16.msra.mxu0 %v5301
        %5801 = vmatprep.subr.bf16.mxu0 %v5298
        %5802 = vmatpush2.bf16.msra.mxu0 %v5297
        %5803 = vmatprep.subr.bf16.mxu0 %v5294
        %5804 = vmatpush2.bf16.msra.mxu0 %v5293
        %5805 = vmatprep.mubr.bf16.mxu0 %v4213
        %5806 = vmatmul.mubr.bf16.gmra.mxu0 %v4212
        %v5807 = vpop.f32.mrf.mxu0
        %v5808 = vadd.f32 %v4480, %v5807
        %v5809 = vpop.f32.mrf.mxu0
        %v5810 = vadd.f32 %v4484, %v5809
        %v5811 = vpop.f32.mrf.mxu0
        %v5812 = vpop.f32.mrf.mxu0
        %5813 = vdwg.mxu0
        %5814 = vmatprep.subr.bf16.mxu0 %v5354
        %5815 = vmatpush1.bf16.msra.mxu0 %v5353
        %5816 = vmatprep.subr.bf16.mxu0 %v5350
        %5817 = vmatpush1.bf16.msra.mxu0 %v5349
        %5818 = vmatprep.subr.bf16.mxu0 %v5346
        %5819 = vmatpush1.bf16.msra.mxu0 %v5345
        %5820 = vmatprep.subr.bf16.mxu0 %v5342
        %5821 = vmatpush1.bf16.msra.mxu0 %v5341
        %5822 = vmatprep.subr.bf16.mxu0 %v5338
        %5823 = vmatpush1.bf16.msra.mxu0 %v5337
        %5824 = vmatprep.subr.bf16.mxu0 %v5334
        %5825 = vmatpush1.bf16.msra.mxu0 %v5333
        %5826 = vmatprep.subr.bf16.mxu0 %v5330
        %5827 = vmatpush1.bf16.msra.mxu0 %v5329
        %5828 = vmatprep.subr.bf16.mxu0 %v5326
        %5829 = vmatpush1.bf16.msra.mxu0 %v5325
        %5830 = vmatprep.subr.bf16.mxu0 %v5386
        %5831 = vmatpush2.bf16.msra.mxu0 %v5385
        %5832 = vmatprep.subr.bf16.mxu0 %v5382
        %5833 = vmatpush2.bf16.msra.mxu0 %v5381
        %5834 = vmatprep.subr.bf16.mxu0 %v5378
        %5835 = vmatpush2.bf16.msra.mxu0 %v5377
        %5836 = vmatprep.subr.bf16.mxu0 %v5374
        %5837 = vmatpush2.bf16.msra.mxu0 %v5373
        %5838 = vmatprep.subr.bf16.mxu0 %v5370
        %5839 = vmatpush2.bf16.msra.mxu0 %v5369
        %5840 = vmatprep.subr.bf16.mxu0 %v5366
        %5841 = vmatpush2.bf16.msra.mxu0 %v5365
        %5842 = vmatprep.subr.bf16.mxu0 %v5362
        %5843 = vmatpush2.bf16.msra.mxu0 %v5361
        %5844 = vmatprep.subr.bf16.mxu0 %v5358
        %5845 = vmatpush2.bf16.msra.mxu0 %v5357
        %5846 = vmatprep.mubr.bf16.mxu0 %v4215
        %5847 = vmatmul.mubr.bf16.gmra.mxu0 %v4214
        %v5848 = vpop.f32.mrf.mxu0
        %v5849 = vadd.f32 %v5808, %v5848
        %v5850 = vpop.f32.mrf.mxu0
        %v5851 = vadd.f32 %v5810, %v5850
        %v5852 = vpop.f32.mrf.mxu0
        %v5853 = vpop.f32.mrf.mxu0
        %5854 = vdwg.mxu0
        %5855 = vmatprep.subr.bf16.mxu0 %v5418
        %5856 = vmatpush1.bf16.msra.mxu0 %v5417
        %5857 = vmatprep.subr.bf16.mxu0 %v5414
        %5858 = vmatpush1.bf16.msra.mxu0 %v5413
        %5859 = vmatprep.subr.bf16.mxu0 %v5410
        %5860 = vmatpush1.bf16.msra.mxu0 %v5409
        %5861 = vmatprep.subr.bf16.mxu0 %v5406
        %5862 = vmatpush1.bf16.msra.mxu0 %v5405
        %5863 = vmatprep.subr.bf16.mxu0 %v5402
        %5864 = vmatpush1.bf16.msra.mxu0 %v5401
        %5865 = vmatprep.subr.bf16.mxu0 %v5398
        %5866 = vmatpush1.bf16.msra.mxu0 %v5397
        %5867 = vmatprep.subr.bf16.mxu0 %v5394
        %5868 = vmatpush1.bf16.msra.mxu0 %v5393
        %5869 = vmatprep.subr.bf16.mxu0 %v5390
        %5870 = vmatpush1.bf16.msra.mxu0 %v5389
        %5871 = vmatprep.subr.bf16.mxu0 %v5450
        %5872 = vmatpush2.bf16.msra.mxu0 %v5449
        %5873 = vmatprep.subr.bf16.mxu0 %v5446
        %5874 = vmatpush2.bf16.msra.mxu0 %v5445
        %5875 = vmatprep.subr.bf16.mxu0 %v5442
        %5876 = vmatpush2.bf16.msra.mxu0 %v5441
        %5877 = vmatprep.subr.bf16.mxu0 %v5438
        %5878 = vmatpush2.bf16.msra.mxu0 %v5437
        %5879 = vmatprep.subr.bf16.mxu0 %v5434
        %5880 = vmatpush2.bf16.msra.mxu0 %v5433
        %5881 = vmatprep.subr.bf16.mxu0 %v5430
        %5882 = vmatpush2.bf16.msra.mxu0 %v5429
        %5883 = vmatprep.subr.bf16.mxu0 %v5426
        %5884 = vmatpush2.bf16.msra.mxu0 %v5425
        %5885 = vmatprep.subr.bf16.mxu0 %v5422
        %5886 = vmatpush2.bf16.msra.mxu0 %v5421
        %5887 = vmatprep.mubr.bf16.mxu0 %v4217
        %5888 = vmatmul.mubr.bf16.gmra.mxu0 %v4216
        %v5889 = vpop.f32.mrf.mxu0
        %v5890 = vadd.f32 %v5849, %v5889
        %v5891 = vpop.f32.mrf.mxu0
        %v5892 = vadd.f32 %v5851, %v5891
        %v5893 = vpop.f32.mrf.mxu0
        %v5894 = vpop.f32.mrf.mxu0
        %5895 = vdwg.mxu0
        %5896 = vmatprep.subr.bf16.mxu0 %v5482
        %5897 = vmatpush1.bf16.msra.mxu0 %v5481
        %5898 = vmatprep.subr.bf16.mxu0 %v5478
        %5899 = vmatpush1.bf16.msra.mxu0 %v5477
        %5900 = vmatprep.subr.bf16.mxu0 %v5474
        %5901 = vmatpush1.bf16.msra.mxu0 %v5473
        %5902 = vmatprep.subr.bf16.mxu0 %v5470
        %5903 = vmatpush1.bf16.msra.mxu0 %v5469
        %5904 = vmatprep.subr.bf16.mxu0 %v5466
        %5905 = vmatpush1.bf16.msra.mxu0 %v5465
        %5906 = vmatprep.subr.bf16.mxu0 %v5462
        %5907 = vmatpush1.bf16.msra.mxu0 %v5461
        %5908 = vmatprep.subr.bf16.mxu0 %v5458
        %5909 = vmatpush1.bf16.msra.mxu0 %v5457
        %5910 = vmatprep.subr.bf16.mxu0 %v5454
        %5911 = vmatpush1.bf16.msra.mxu0 %v5453
        %5912 = vmatprep.subr.bf16.mxu0 %v5514
        %5913 = vmatpush2.bf16.msra.mxu0 %v5513
        %5914 = vmatprep.subr.bf16.mxu0 %v5510
        %5915 = vmatpush2.bf16.msra.mxu0 %v5509
        %5916 = vmatprep.subr.bf16.mxu0 %v5506
        %5917 = vmatpush2.bf16.msra.mxu0 %v5505
        %5918 = vmatprep.subr.bf16.mxu0 %v5502
        %5919 = vmatpush2.bf16.msra.mxu0 %v5501
        %5920 = vmatprep.subr.bf16.mxu0 %v5498
        %5921 = vmatpush2.bf16.msra.mxu0 %v5497
        %5922 = vmatprep.subr.bf16.mxu0 %v5494
        %5923 = vmatpush2.bf16.msra.mxu0 %v5493
        %5924 = vmatprep.subr.bf16.mxu0 %v5490
        %5925 = vmatpush2.bf16.msra.mxu0 %v5489
        %5926 = vmatprep.subr.bf16.mxu0 %v5486
        %5927 = vmatpush2.bf16.msra.mxu0 %v5485
        %5928 = vmatprep.mubr.bf16.mxu0 %v4219
        %5929 = vmatmul.mubr.bf16.gmra.mxu0 %v4218
        %v5930 = vpop.f32.mrf.mxu0
        %v5931 = vadd.f32 %v5890, %v5930
        %v5932 = vpop.f32.mrf.mxu0
        %v5933 = vadd.f32 %v5892, %v5932
        %v5934 = vpop.f32.mrf.mxu0
        %v5935 = vpop.f32.mrf.mxu0
        %5936 = vdwg.mxu0
        %5937 = vmatprep.subr.bf16.mxu0 %v5292
        %5938 = vmatpush1.bf16.msra.mxu0 %v5291
        %5939 = vmatprep.subr.bf16.mxu0 %v5288
        %5940 = vmatpush1.bf16.msra.mxu0 %v5287
        %5941 = vmatprep.subr.bf16.mxu0 %v5284
        %5942 = vmatpush1.bf16.msra.mxu0 %v5283
        %5943 = vmatprep.subr.bf16.mxu0 %v5280
        %5944 = vmatpush1.bf16.msra.mxu0 %v5279
        %5945 = vmatprep.subr.bf16.mxu0 %v5276
        %5946 = vmatpush1.bf16.msra.mxu0 %v5275
        %5947 = vmatprep.subr.bf16.mxu0 %v5272
        %5948 = vmatpush1.bf16.msra.mxu0 %v5271
        %5949 = vmatprep.subr.bf16.mxu0 %v5268
        %5950 = vmatpush1.bf16.msra.mxu0 %v5267
        %5951 = vmatprep.subr.bf16.mxu0 %v5264
        %5952 = vmatpush1.bf16.msra.mxu0 %v5263
        %5953 = vmatprep.subr.bf16.mxu0 %v5324
        %5954 = vmatpush2.bf16.msra.mxu0 %v5323
        %5955 = vmatprep.subr.bf16.mxu0 %v5320
        %5956 = vmatpush2.bf16.msra.mxu0 %v5319
        %5957 = vmatprep.subr.bf16.mxu0 %v5316
        %5958 = vmatpush2.bf16.msra.mxu0 %v5315
        %5959 = vmatprep.subr.bf16.mxu0 %v5312
        %5960 = vmatpush2.bf16.msra.mxu0 %v5311
        %5961 = vmatprep.subr.bf16.mxu0 %v5308
        %5962 = vmatpush2.bf16.msra.mxu0 %v5307
        %5963 = vmatprep.subr.bf16.mxu0 %v5304
        %5964 = vmatpush2.bf16.msra.mxu0 %v5303
        %5965 = vmatprep.subr.bf16.mxu0 %v5300
        %5966 = vmatpush2.bf16.msra.mxu0 %v5299
        %5967 = vmatprep.subr.bf16.mxu0 %v5296
        %5968 = vmatpush2.bf16.msra.mxu0 %v5295
        %5969 = vmatprep.mubr.bf16.mxu0 %v4213
        %5970 = vmatmul.mubr.bf16.gmra.mxu0 %v4212
        %v5971 = vpop.f32.mrf.mxu0
        %v5972 = vadd.f32 %v4488, %v5971
        %v5973 = vpop.f32.mrf.mxu0
        %v5974 = vadd.f32 %v4492, %v5973
        %v5975 = vpop.f32.mrf.mxu0
        %v5976 = vpop.f32.mrf.mxu0
        %5977 = vdwg.mxu0
        %5978 = vmatprep.subr.bf16.mxu0 %v5356
        %5979 = vmatpush1.bf16.msra.mxu0 %v5355
        %5980 = vmatprep.subr.bf16.mxu0 %v5352
        %5981 = vmatpush1.bf16.msra.mxu0 %v5351
        %5982 = vmatprep.subr.bf16.mxu0 %v5348
        %5983 = vmatpush1.bf16.msra.mxu0 %v5347
        %5984 = vmatprep.subr.bf16.mxu0 %v5344
        %5985 = vmatpush1.bf16.msra.mxu0 %v5343
        %5986 = vmatprep.subr.bf16.mxu0 %v5340
        %5987 = vmatpush1.bf16.msra.mxu0 %v5339
        %5988 = vmatprep.subr.bf16.mxu0 %v5336
        %5989 = vmatpush1.bf16.msra.mxu0 %v5335
        %5990 = vmatprep.subr.bf16.mxu0 %v5332
        %5991 = vmatpush1.bf16.msra.mxu0 %v5331
        %5992 = vmatprep.subr.bf16.mxu0 %v5328
        %5993 = vmatpush1.bf16.msra.mxu0 %v5327
        %5994 = vmatprep.subr.bf16.mxu0 %v5388
        %5995 = vmatpush2.bf16.msra.mxu0 %v5387
        %5996 = vmatprep.subr.bf16.mxu0 %v5384
        %5997 = vmatpush2.bf16.msra.mxu0 %v5383
        %5998 = vmatprep.subr.bf16.mxu0 %v5380
        %5999 = vmatpush2.bf16.msra.mxu0 %v5379
        %6000 = vmatprep.subr.bf16.mxu0 %v5376
        %6001 = vmatpush2.bf16.msra.mxu0 %v5375
        %6002 = vmatprep.subr.bf16.mxu0 %v5372
        %6003 = vmatpush2.bf16.msra.mxu0 %v5371
        %6004 = vmatprep.subr.bf16.mxu0 %v5368
        %6005 = vmatpush2.bf16.msra.mxu0 %v5367
        %6006 = vmatprep.subr.bf16.mxu0 %v5364
        %6007 = vmatpush2.bf16.msra.mxu0 %v5363
        %6008 = vmatprep.subr.bf16.mxu0 %v5360
        %6009 = vmatpush2.bf16.msra.mxu0 %v5359
        %6010 = vmatprep.mubr.bf16.mxu0 %v4215
        %6011 = vmatmul.mubr.bf16.gmra.mxu0 %v4214
        %v6012 = vpop.f32.mrf.mxu0
        %v6013 = vadd.f32 %v5972, %v6012
        %v6014 = vpop.f32.mrf.mxu0
        %v6015 = vadd.f32 %v5974, %v6014
        %v6016 = vpop.f32.mrf.mxu0
        %v6017 = vpop.f32.mrf.mxu0
        %6018 = vdwg.mxu0
        %6019 = vmatprep.subr.bf16.mxu0 %v5420
        %6020 = vmatpush1.bf16.msra.mxu0 %v5419
        %6021 = vmatprep.subr.bf16.mxu0 %v5416
        %6022 = vmatpush1.bf16.msra.mxu0 %v5415
        %6023 = vmatprep.subr.bf16.mxu0 %v5412
        %6024 = vmatpush1.bf16.msra.mxu0 %v5411
        %6025 = vmatprep.subr.bf16.mxu0 %v5408
        %6026 = vmatpush1.bf16.msra.mxu0 %v5407
        %6027 = vmatprep.subr.bf16.mxu0 %v5404
        %6028 = vmatpush1.bf16.msra.mxu0 %v5403
        %6029 = vmatprep.subr.bf16.mxu0 %v5400
        %6030 = vmatpush1.bf16.msra.mxu0 %v5399
        %6031 = vmatprep.subr.bf16.mxu0 %v5396
        %6032 = vmatpush1.bf16.msra.mxu0 %v5395
        %6033 = vmatprep.subr.bf16.mxu0 %v5392
        %6034 = vmatpush1.bf16.msra.mxu0 %v5391
        %6035 = vmatprep.subr.bf16.mxu0 %v5452
        %6036 = vmatpush2.bf16.msra.mxu0 %v5451
        %6037 = vmatprep.subr.bf16.mxu0 %v5448
        %6038 = vmatpush2.bf16.msra.mxu0 %v5447
        %6039 = vmatprep.subr.bf16.mxu0 %v5444
        %6040 = vmatpush2.bf16.msra.mxu0 %v5443
        %6041 = vmatprep.subr.bf16.mxu0 %v5440
        %6042 = vmatpush2.bf16.msra.mxu0 %v5439
        %6043 = vmatprep.subr.bf16.mxu0 %v5436
        %6044 = vmatpush2.bf16.msra.mxu0 %v5435
        %6045 = vmatprep.subr.bf16.mxu0 %v5432
        %6046 = vmatpush2.bf16.msra.mxu0 %v5431
        %6047 = vmatprep.subr.bf16.mxu0 %v5428
        %6048 = vmatpush2.bf16.msra.mxu0 %v5427
        %6049 = vmatprep.subr.bf16.mxu0 %v5424
        %6050 = vmatpush2.bf16.msra.mxu0 %v5423
        %6051 = vmatprep.mubr.bf16.mxu0 %v4217
        %6052 = vmatmul.mubr.bf16.gmra.mxu0 %v4216
        %v6053 = vpop.f32.mrf.mxu0
        %v6054 = vadd.f32 %v6013, %v6053
        %v6055 = vpop.f32.mrf.mxu0
        %v6056 = vadd.f32 %v6015, %v6055
        %v6057 = vpop.f32.mrf.mxu0
        %v6058 = vpop.f32.mrf.mxu0
        %6059 = vdwg.mxu0
        %6060 = vmatprep.subr.bf16.mxu0 %v5484
        %6061 = vmatpush1.bf16.msra.mxu0 %v5483
        %6062 = vmatprep.subr.bf16.mxu0 %v5480
        %6063 = vmatpush1.bf16.msra.mxu0 %v5479
        %6064 = vmatprep.subr.bf16.mxu0 %v5476
        %6065 = vmatpush1.bf16.msra.mxu0 %v5475
        %6066 = vmatprep.subr.bf16.mxu0 %v5472
        %6067 = vmatpush1.bf16.msra.mxu0 %v5471
        %6068 = vmatprep.subr.bf16.mxu0 %v5468
        %6069 = vmatpush1.bf16.msra.mxu0 %v5467
        %6070 = vmatprep.subr.bf16.mxu0 %v5464
        %6071 = vmatpush1.bf16.msra.mxu0 %v5463
        %6072 = vmatprep.subr.bf16.mxu0 %v5460
        %6073 = vmatpush1.bf16.msra.mxu0 %v5459
        %6074 = vmatprep.subr.bf16.mxu0 %v5456
        %6075 = vmatpush1.bf16.msra.mxu0 %v5455
        %6076 = vmatprep.subr.bf16.mxu0 %v5516
        %6077 = vmatpush2.bf16.msra.mxu0 %v5515
        %6078 = vmatprep.subr.bf16.mxu0 %v5512
        %6079 = vmatpush2.bf16.msra.mxu0 %v5511
        %6080 = vmatprep.subr.bf16.mxu0 %v5508
        %6081 = vmatpush2.bf16.msra.mxu0 %v5507
        %6082 = vmatprep.subr.bf16.mxu0 %v5504
        %6083 = vmatpush2.bf16.msra.mxu0 %v5503
        %6084 = vmatprep.subr.bf16.mxu0 %v5500
        %6085 = vmatpush2.bf16.msra.mxu0 %v5499
        %6086 = vmatprep.subr.bf16.mxu0 %v5496
        %6087 = vmatpush2.bf16.msra.mxu0 %v5495
        %6088 = vmatprep.subr.bf16.mxu0 %v5492
        %6089 = vmatpush2.bf16.msra.mxu0 %v5491
        %6090 = vmatprep.subr.bf16.mxu0 %v5488
        %6091 = vmatpush2.bf16.msra.mxu0 %v5487
        %6092 = vmatprep.mubr.bf16.mxu0 %v4219
        %6093 = vmatmul.mubr.bf16.gmra.mxu0 %v4218
        %v6094 = vpop.f32.mrf.mxu0
        %v6095 = vadd.f32 %v6054, %v6094
        %v6096 = vpop.f32.mrf.mxu0
        %v6097 = vadd.f32 %v6056, %v6096
        %v6098 = vpop.f32.mrf.mxu0
        %v6099 = vpop.f32.mrf.mxu0
        %6100 = vdwg.mxu0
        %v6101 = vmax.f32 %v5931, 0.0
        %v6102 = vmax.f32 %v5933, 0.0
        %v6103 = vmax.f32 %v6095, 0.0
        %v6104 = vmax.f32 %v6097, 0.0
        %v6105 = vpack.c.bf16 %v6101, %v6101
        %v6106 = vpack.c.bf16 %v6102, %v6102
        %v6107 = vpack.c.bf16 %v6103, %v6103
        %v6108 = vpack.c.bf16 %v6104, %v6104
        %s6109 = scalar_lea.vmem %s319, 512 [#allocation7]
        %v6110 = vld [vmem:[%s6109] sm:$0xff]
        %v6111 = vld [vmem:[%s6109 + $0x8] sm:$0xff]
        %v6112 = vld [vmem:[%s6109 + $0x10] sm:$0xff]
        %v6113 = vld [vmem:[%s6109 + $0x18] sm:$0xff]
        %v6114 = vld [vmem:[%s6109 + $0x20] sm:$0xff]
        %v6115 = vld [vmem:[%s6109 + $0x28] sm:$0xff]
        %v6116 = vld [vmem:[%s6109 + $0x30] sm:$0xff]
        %v6117 = vld [vmem:[%s6109 + $0x38] sm:$0xff]
        %v6118 = vld [vmem:[%s6109 + $0x40] sm:$0xff]
        %v6119 = vld [vmem:[%s6109 + $0x48] sm:$0xff]
        %v6120 = vld [vmem:[%s6109 + $0x50] sm:$0xff]
        %v6121 = vld [vmem:[%s6109 + $0x58] sm:$0xff]
        %v6122 = vld [vmem:[%s6109 + $0x60] sm:$0xff]
        %v6123 = vld [vmem:[%s6109 + $0x68] sm:$0xff]
        %v6124 = vld [vmem:[%s6109 + $0x70] sm:$0xff]
        %v6125 = vld [vmem:[%s6109 + $0x78] sm:$0xff]
        %v6126 = vld [vmem:[%s6109 + $0x80] sm:$0xff]
        %v6127 = vld [vmem:[%s6109 + $0x88] sm:$0xff]
        %v6128 = vld [vmem:[%s6109 + $0x90] sm:$0xff]
        %v6129 = vld [vmem:[%s6109 + $0x98] sm:$0xff]
        %v6130 = vld [vmem:[%s6109 + $0xa0] sm:$0xff]
        %v6131 = vld [vmem:[%s6109 + $0xa8] sm:$0xff]
        %v6132 = vld [vmem:[%s6109 + $0xb0] sm:$0xff]
        %v6133 = vld [vmem:[%s6109 + $0xb8] sm:$0xff]
        %v6134 = vld [vmem:[%s6109 + $0xc0] sm:$0xff]
        %v6135 = vld [vmem:[%s6109 + $0xc8] sm:$0xff]
        %v6136 = vld [vmem:[%s6109 + $0xd0] sm:$0xff]
        %v6137 = vld [vmem:[%s6109 + $0xd8] sm:$0xff]
        %v6138 = vld [vmem:[%s6109 + $0xe0] sm:$0xff]
        %v6139 = vld [vmem:[%s6109 + $0xe8] sm:$0xff]
        %v6140 = vld [vmem:[%s6109 + $0xf0] sm:$0xff]
        %v6141 = vld [vmem:[%s6109 + $0xf8] sm:$0xff]
        %v6142 = vld [vmem:[%s6109 + $0x100] sm:$0xff]
        %v6143 = vld [vmem:[%s6109 + $0x108] sm:$0xff]
        %v6144 = vld [vmem:[%s6109 + $0x110] sm:$0xff]
        %v6145 = vld [vmem:[%s6109 + $0x118] sm:$0xff]
        %v6146 = vld [vmem:[%s6109 + $0x120] sm:$0xff]
        %v6147 = vld [vmem:[%s6109 + $0x128] sm:$0xff]
        %v6148 = vld [vmem:[%s6109 + $0x130] sm:$0xff]
        %v6149 = vld [vmem:[%s6109 + $0x138] sm:$0xff]
        %v6150 = vld [vmem:[%s6109 + $0x140] sm:$0xff]
        %v6151 = vld [vmem:[%s6109 + $0x148] sm:$0xff]
        %v6152 = vld [vmem:[%s6109 + $0x150] sm:$0xff]
        %v6153 = vld [vmem:[%s6109 + $0x158] sm:$0xff]
        %v6154 = vld [vmem:[%s6109 + $0x160] sm:$0xff]
        %v6155 = vld [vmem:[%s6109 + $0x168] sm:$0xff]
        %v6156 = vld [vmem:[%s6109 + $0x170] sm:$0xff]
        %v6157 = vld [vmem:[%s6109 + $0x178] sm:$0xff]
        %v6158 = vld [vmem:[%s6109 + $0x180] sm:$0xff]
        %v6159 = vld [vmem:[%s6109 + $0x188] sm:$0xff]
        %v6160 = vld [vmem:[%s6109 + $0x190] sm:$0xff]
        %v6161 = vld [vmem:[%s6109 + $0x198] sm:$0xff]
        %v6162 = vld [vmem:[%s6109 + $0x1a0] sm:$0xff]
        %v6163 = vld [vmem:[%s6109 + $0x1a8] sm:$0xff]
        %v6164 = vld [vmem:[%s6109 + $0x1b0] sm:$0xff]
        %v6165 = vld [vmem:[%s6109 + $0x1b8] sm:$0xff]
        %v6166 = vld [vmem:[%s6109 + $0x1c0] sm:$0xff]
        %v6167 = vld [vmem:[%s6109 + $0x1c8] sm:$0xff]
        %v6168 = vld [vmem:[%s6109 + $0x1d0] sm:$0xff]
        %v6169 = vld [vmem:[%s6109 + $0x1d8] sm:$0xff]
        %v6170 = vld [vmem:[%s6109 + $0x1e0] sm:$0xff]
        %v6171 = vld [vmem:[%s6109 + $0x1e8] sm:$0xff]
        %v6172 = vld [vmem:[%s6109 + $0x1f0] sm:$0xff]
        %v6173 = vld [vmem:[%s6109 + $0x1f8] sm:$0xff]
        %v6174 = vlaneseq
        %v6175 = vshrl.u32 %v6174, 7
        %v6176 = vsub.s32 1, %v6175
        %v6177 = vrot.slane %v386, %v6176
        %v6178 = vlaneseq
        %v6179 = vshrl.u32 %v6178, 7
        %v6180 = vsub.s32 1, %v6179
        %v6181 = vrot.slane %v387, %v6180
        %v6246 = vunpack.c.l.b16 %v6110
        %v6247 = vunpack.c.h.b16 %v6110
        %v6248 = vunpack.c.l.b16 %v6111
        %v6249 = vunpack.c.h.b16 %v6111
        %v6250 = vunpack.c.l.b16 %v6112
        %v6251 = vunpack.c.h.b16 %v6112
        %v6252 = vunpack.c.l.b16 %v6113
        %v6253 = vunpack.c.h.b16 %v6113
        %v6254 = vunpack.c.l.b16 %v6114
        %v6255 = vunpack.c.h.b16 %v6114
        %v6256 = vunpack.c.l.b16 %v6115
        %v6257 = vunpack.c.h.b16 %v6115
        %v6258 = vunpack.c.l.b16 %v6116
        %v6259 = vunpack.c.h.b16 %v6116
        %v6260 = vunpack.c.l.b16 %v6117
        %v6261 = vunpack.c.h.b16 %v6117
        %v6262 = vunpack.c.l.b16 %v6118
        %v6263 = vunpack.c.h.b16 %v6118
        %v6264 = vunpack.c.l.b16 %v6119
        %v6265 = vunpack.c.h.b16 %v6119
        %v6266 = vunpack.c.l.b16 %v6120
        %v6267 = vunpack.c.h.b16 %v6120
        %v6268 = vunpack.c.l.b16 %v6121
        %v6269 = vunpack.c.h.b16 %v6121
        %v6270 = vunpack.c.l.b16 %v6122
        %v6271 = vunpack.c.h.b16 %v6122
        %v6272 = vunpack.c.l.b16 %v6123
        %v6273 = vunpack.c.h.b16 %v6123
        %v6274 = vunpack.c.l.b16 %v6124
        %v6275 = vunpack.c.h.b16 %v6124
        %v6276 = vunpack.c.l.b16 %v6125
        %v6277 = vunpack.c.h.b16 %v6125
        %v6278 = vunpack.c.l.b16 %v6126
        %v6279 = vunpack.c.h.b16 %v6126
        %v6280 = vunpack.c.l.b16 %v6127
        %v6281 = vunpack.c.h.b16 %v6127
        %v6282 = vunpack.c.l.b16 %v6128
        %v6283 = vunpack.c.h.b16 %v6128
        %v6284 = vunpack.c.l.b16 %v6129
        %v6285 = vunpack.c.h.b16 %v6129
        %v6286 = vunpack.c.l.b16 %v6130
        %v6287 = vunpack.c.h.b16 %v6130
        %v6288 = vunpack.c.l.b16 %v6131
        %v6289 = vunpack.c.h.b16 %v6131
        %v6290 = vunpack.c.l.b16 %v6132
        %v6291 = vunpack.c.h.b16 %v6132
        %v6292 = vunpack.c.l.b16 %v6133
        %v6293 = vunpack.c.h.b16 %v6133
        %v6294 = vunpack.c.l.b16 %v6134
        %v6295 = vunpack.c.h.b16 %v6134
        %v6296 = vunpack.c.l.b16 %v6135
        %v6297 = vunpack.c.h.b16 %v6135
        %v6298 = vunpack.c.l.b16 %v6136
        %v6299 = vunpack.c.h.b16 %v6136
        %v6300 = vunpack.c.l.b16 %v6137
        %v6301 = vunpack.c.h.b16 %v6137
        %v6302 = vunpack.c.l.b16 %v6138
        %v6303 = vunpack.c.h.b16 %v6138
        %v6304 = vunpack.c.l.b16 %v6139
        %v6305 = vunpack.c.h.b16 %v6139
        %v6306 = vunpack.c.l.b16 %v6140
        %v6307 = vunpack.c.h.b16 %v6140
        %v6308 = vunpack.c.l.b16 %v6141
        %v6309 = vunpack.c.h.b16 %v6141
        %v6310 = vunpack.c.l.b16 %v6142
        %v6311 = vunpack.c.h.b16 %v6142
        %v6312 = vunpack.c.l.b16 %v6143
        %v6313 = vunpack.c.h.b16 %v6143
        %v6314 = vunpack.c.l.b16 %v6144
        %v6315 = vunpack.c.h.b16 %v6144
        %v6316 = vunpack.c.l.b16 %v6145
        %v6317 = vunpack.c.h.b16 %v6145
        %v6318 = vunpack.c.l.b16 %v6146
        %v6319 = vunpack.c.h.b16 %v6146
        %v6320 = vunpack.c.l.b16 %v6147
        %v6321 = vunpack.c.h.b16 %v6147
        %v6322 = vunpack.c.l.b16 %v6148
        %v6323 = vunpack.c.h.b16 %v6148
        %v6324 = vunpack.c.l.b16 %v6149
        %v6325 = vunpack.c.h.b16 %v6149
        %v6326 = vunpack.c.l.b16 %v6150
        %v6327 = vunpack.c.h.b16 %v6150
        %v6328 = vunpack.c.l.b16 %v6151
        %v6329 = vunpack.c.h.b16 %v6151
        %v6330 = vunpack.c.l.b16 %v6152
        %v6331 = vunpack.c.h.b16 %v6152
        %v6332 = vunpack.c.l.b16 %v6153
        %v6333 = vunpack.c.h.b16 %v6153
        %v6334 = vunpack.c.l.b16 %v6154
        %v6335 = vunpack.c.h.b16 %v6154
        %v6336 = vunpack.c.l.b16 %v6155
        %v6337 = vunpack.c.h.b16 %v6155
        %v6338 = vunpack.c.l.b16 %v6156
        %v6339 = vunpack.c.h.b16 %v6156
        %v6340 = vunpack.c.l.b16 %v6157
        %v6341 = vunpack.c.h.b16 %v6157
        %v6342 = vunpack.c.l.b16 %v6158
        %v6343 = vunpack.c.h.b16 %v6158
        %v6344 = vunpack.c.l.b16 %v6159
        %v6345 = vunpack.c.h.b16 %v6159
        %v6346 = vunpack.c.l.b16 %v6160
        %v6347 = vunpack.c.h.b16 %v6160
        %v6348 = vunpack.c.l.b16 %v6161
        %v6349 = vunpack.c.h.b16 %v6161
        %v6350 = vunpack.c.l.b16 %v6162
        %v6351 = vunpack.c.h.b16 %v6162
        %v6352 = vunpack.c.l.b16 %v6163
        %v6353 = vunpack.c.h.b16 %v6163
        %v6354 = vunpack.c.l.b16 %v6164
        %v6355 = vunpack.c.h.b16 %v6164
        %v6356 = vunpack.c.l.b16 %v6165
        %v6357 = vunpack.c.h.b16 %v6165
        %v6358 = vunpack.c.l.b16 %v6166
        %v6359 = vunpack.c.h.b16 %v6166
        %v6360 = vunpack.c.l.b16 %v6167
        %v6361 = vunpack.c.h.b16 %v6167
        %v6362 = vunpack.c.l.b16 %v6168
        %v6363 = vunpack.c.h.b16 %v6168
        %v6364 = vunpack.c.l.b16 %v6169
        %v6365 = vunpack.c.h.b16 %v6169
        %v6366 = vunpack.c.l.b16 %v6170
        %v6367 = vunpack.c.h.b16 %v6170
        %v6368 = vunpack.c.l.b16 %v6171
        %v6369 = vunpack.c.h.b16 %v6171
        %v6370 = vunpack.c.l.b16 %v6172
        %v6371 = vunpack.c.h.b16 %v6172
        %v6372 = vunpack.c.l.b16 %v6173
        %v6373 = vunpack.c.h.b16 %v6173
        %v6374 = vpack.c.b16 %v6248, %v6246
        %v6375 = vpack.c.b16 %v6249, %v6247
        %v6376 = vpack.c.b16 %v6252, %v6250
        %v6377 = vpack.c.b16 %v6253, %v6251
        %v6378 = vpack.c.b16 %v6256, %v6254
        %v6379 = vpack.c.b16 %v6257, %v6255
        %v6380 = vpack.c.b16 %v6260, %v6258
        %v6381 = vpack.c.b16 %v6261, %v6259
        %v6382 = vpack.c.b16 %v6264, %v6262
        %v6383 = vpack.c.b16 %v6265, %v6263
        %v6384 = vpack.c.b16 %v6268, %v6266
        %v6385 = vpack.c.b16 %v6269, %v6267
        %v6386 = vpack.c.b16 %v6272, %v6270
        %v6387 = vpack.c.b16 %v6273, %v6271
        %v6388 = vpack.c.b16 %v6276, %v6274
        %v6389 = vpack.c.b16 %v6277, %v6275
        %v6390 = vpack.c.b16 %v6280, %v6278
        %v6391 = vpack.c.b16 %v6281, %v6279
        %v6392 = vpack.c.b16 %v6284, %v6282
        %v6393 = vpack.c.b16 %v6285, %v6283
        %v6394 = vpack.c.b16 %v6288, %v6286
        %v6395 = vpack.c.b16 %v6289, %v6287
        %v6396 = vpack.c.b16 %v6292, %v6290
        %v6397 = vpack.c.b16 %v6293, %v6291
        %v6398 = vpack.c.b16 %v6296, %v6294
        %v6399 = vpack.c.b16 %v6297, %v6295
        %v6400 = vpack.c.b16 %v6300, %v6298
        %v6401 = vpack.c.b16 %v6301, %v6299
        %v6402 = vpack.c.b16 %v6304, %v6302
        %v6403 = vpack.c.b16 %v6305, %v6303
        %v6404 = vpack.c.b16 %v6308, %v6306
        %v6405 = vpack.c.b16 %v6309, %v6307
        %v6406 = vpack.c.b16 %v6312, %v6310
        %v6407 = vpack.c.b16 %v6313, %v6311
        %v6408 = vpack.c.b16 %v6316, %v6314
        %v6409 = vpack.c.b16 %v6317, %v6315
        %v6410 = vpack.c.b16 %v6320, %v6318
        %v6411 = vpack.c.b16 %v6321, %v6319
        %v6412 = vpack.c.b16 %v6324, %v6322
        %v6413 = vpack.c.b16 %v6325, %v6323
        %v6414 = vpack.c.b16 %v6328, %v6326
        %v6415 = vpack.c.b16 %v6329, %v6327
        %v6416 = vpack.c.b16 %v6332, %v6330
        %v6417 = vpack.c.b16 %v6333, %v6331
        %v6418 = vpack.c.b16 %v6336, %v6334
        %v6419 = vpack.c.b16 %v6337, %v6335
        %v6420 = vpack.c.b16 %v6340, %v6338
        %v6421 = vpack.c.b16 %v6341, %v6339
        %v6422 = vpack.c.b16 %v6344, %v6342
        %v6423 = vpack.c.b16 %v6345, %v6343
        %v6424 = vpack.c.b16 %v6348, %v6346
        %v6425 = vpack.c.b16 %v6349, %v6347
        %v6426 = vpack.c.b16 %v6352, %v6350
        %v6427 = vpack.c.b16 %v6353, %v6351
        %v6428 = vpack.c.b16 %v6356, %v6354
        %v6429 = vpack.c.b16 %v6357, %v6355
        %v6430 = vpack.c.b16 %v6360, %v6358
        %v6431 = vpack.c.b16 %v6361, %v6359
        %v6432 = vpack.c.b16 %v6364, %v6362
        %v6433 = vpack.c.b16 %v6365, %v6363
        %v6434 = vpack.c.b16 %v6368, %v6366
        %v6435 = vpack.c.b16 %v6369, %v6367
        %v6436 = vpack.c.b16 %v6372, %v6370
        %v6437 = vpack.c.b16 %v6373, %v6371
        %6502 = vmatprep.subr.bf16.mxu0 %v6389
        %6503 = vmatpush1.bf16.msra.mxu0 %v6388
        %6504 = vmatprep.subr.bf16.mxu0 %v6387
        %6505 = vmatpush1.bf16.msra.mxu0 %v6386
        %6506 = vmatprep.subr.bf16.mxu0 %v6385
        %6507 = vmatpush1.bf16.msra.mxu0 %v6384
        %6508 = vmatprep.subr.bf16.mxu0 %v6383
        %6509 = vmatpush1.bf16.msra.mxu0 %v6382
        %6510 = vmatprep.subr.bf16.mxu0 %v6381
        %6511 = vmatpush1.bf16.msra.mxu0 %v6380
        %6512 = vmatprep.subr.bf16.mxu0 %v6379
        %6513 = vmatpush1.bf16.msra.mxu0 %v6378
        %6514 = vmatprep.subr.bf16.mxu0 %v6377
        %6515 = vmatpush1.bf16.msra.mxu0 %v6376
        %6516 = vmatprep.subr.bf16.mxu0 %v6375
        %6517 = vmatpush1.bf16.msra.mxu0 %v6374
        %6518 = vmatprep.subr.bf16.mxu0 %v6405
        %6519 = vmatpush2.bf16.msra.mxu0 %v6404
        %6520 = vmatprep.subr.bf16.mxu0 %v6403
        %6521 = vmatpush2.bf16.msra.mxu0 %v6402
        %6522 = vmatprep.subr.bf16.mxu0 %v6401
        %6523 = vmatpush2.bf16.msra.mxu0 %v6400
        %6524 = vmatprep.subr.bf16.mxu0 %v6399
        %6525 = vmatpush2.bf16.msra.mxu0 %v6398
        %6526 = vmatprep.subr.bf16.mxu0 %v6397
        %6527 = vmatpush2.bf16.msra.mxu0 %v6396
        %6528 = vmatprep.subr.bf16.mxu0 %v6395
        %6529 = vmatpush2.bf16.msra.mxu0 %v6394
        %6530 = vmatprep.subr.bf16.mxu0 %v6393
        %6531 = vmatpush2.bf16.msra.mxu0 %v6392
        %6532 = vmatprep.subr.bf16.mxu0 %v6391
        %6533 = vmatpush2.bf16.msra.mxu0 %v6390
        %6534 = vmatprep.mubr.bf16.mxu0 %v6106
        %6535 = vmatmul.mubr.bf16.gmra.mxu0 %v6105
        %v6536 = vpop.f32.mrf.mxu0
        %v6537 = vadd.f32 %v6177, %v6536
        %v6538 = vpop.f32.mrf.mxu0
        %v6539 = vadd.f32 %v6181, %v6538
        %v6540 = vpop.f32.mrf.mxu0
        %v6541 = vpop.f32.mrf.mxu0
        %6542 = vdwg.mxu0
        %6543 = vmatprep.subr.bf16.mxu0 %v6421
        %6544 = vmatpush1.bf16.msra.mxu0 %v6420
        %6545 = vmatprep.subr.bf16.mxu0 %v6419
        %6546 = vmatpush1.bf16.msra.mxu0 %v6418
        %6547 = vmatprep.subr.bf16.mxu0 %v6417
        %6548 = vmatpush1.bf16.msra.mxu0 %v6416
        %6549 = vmatprep.subr.bf16.mxu0 %v6415
        %6550 = vmatpush1.bf16.msra.mxu0 %v6414
        %6551 = vmatprep.subr.bf16.mxu0 %v6413
        %6552 = vmatpush1.bf16.msra.mxu0 %v6412
        %6553 = vmatprep.subr.bf16.mxu0 %v6411
        %6554 = vmatpush1.bf16.msra.mxu0 %v6410
        %6555 = vmatprep.subr.bf16.mxu0 %v6409
        %6556 = vmatpush1.bf16.msra.mxu0 %v6408
        %6557 = vmatprep.subr.bf16.mxu0 %v6407
        %6558 = vmatpush1.bf16.msra.mxu0 %v6406
        %6559 = vmatprep.subr.bf16.mxu0 %v6437
        %6560 = vmatpush2.bf16.msra.mxu0 %v6436
        %6561 = vmatprep.subr.bf16.mxu0 %v6435
        %6562 = vmatpush2.bf16.msra.mxu0 %v6434
        %6563 = vmatprep.subr.bf16.mxu0 %v6433
        %6564 = vmatpush2.bf16.msra.mxu0 %v6432
        %6565 = vmatprep.subr.bf16.mxu0 %v6431
        %6566 = vmatpush2.bf16.msra.mxu0 %v6430
        %6567 = vmatprep.subr.bf16.mxu0 %v6429
        %6568 = vmatpush2.bf16.msra.mxu0 %v6428
        %6569 = vmatprep.subr.bf16.mxu0 %v6427
        %6570 = vmatpush2.bf16.msra.mxu0 %v6426
        %6571 = vmatprep.subr.bf16.mxu0 %v6425
        %6572 = vmatpush2.bf16.msra.mxu0 %v6424
        %6573 = vmatprep.subr.bf16.mxu0 %v6423
        %6574 = vmatpush2.bf16.msra.mxu0 %v6422
        %6575 = vmatprep.mubr.bf16.mxu0 %v6108
        %6576 = vmatmul.mubr.bf16.gmra.mxu0 %v6107
        %v6577 = vpop.f32.mrf.mxu0
        %v6578 = vadd.f32 %v6537, %v6577
        %v6579 = vpop.f32.mrf.mxu0
        %v6580 = vadd.f32 %v6539, %v6579
        %v6581 = vpop.f32.mrf.mxu0
        %v6582 = vpop.f32.mrf.mxu0
        %6583 = vdwg.mxu0
        %v6584 = vmax.f32 %v6578, 0.0
        %v6585 = vmax.f32 %v6580, 0.0
        %v6586 = vlaneseq
        %v6587 = vshrl.u32 %v6586, 7
        %v6588 = vsub.s32 1, %v6587
        %v6589 = vrot.slane %v388, %v6588
        %v6590 = vlaneseq
        %v6591 = vshrl.u32 %v6590, 7
        %v6592 = vsub.s32 1, %v6591
        %v6593 = vrot.slane %v389, %v6592
        %v6594 = vmul.f32 %v6584, %v6589
        %v6595 = vmul.f32 %v6585, %v6593
        %v6596 = vsel %vm3482, %v6594, 0.0
        %v6597 = vsel %vm3482, %v6595, 0.0
        %v6598 = vadd.f32 %v6596, %v6597
        %6599 = vadd.xlane.f32.xlu0 %v6598
        %v6600 = vpop.xlane.xlu0 %6599
        %v6601 = vlaneseq
        %v6602 = vshrl.u32 %v6601, 7
        %v6603 = vsub.s32 2, %v6602
        %v6604 = vrot.slane %v384, %v6603
        %v6605 = vadd.f32 %v6600, %v6604
        %v6606 = vsub.f32 0.0, %v6605
        %v6607 = vmul.f32 %v6606, 1.442695
        %v6608 = vpow.pop %v6607
        %v6609 = vadd.f32 %v6608, 1.0
        %v6610 = vrcp.pop %v6609
        %v6611 = vmul.f32 1.0, %v6610
        %6613 = vset.pattern.permute.xlu0 0
        %6614 = vperm.xlu0 %6613, %v6611
        %v6615 = vpop.permute.xlu0 %6614
        %s6617 = scalar_lea.vmem %s369, 2
        %6618 = vst [vmem:[%s6617] sm:$0x3] %v6615
        %s6619 = smul.u32 2, %s25
        %p6620 = scmp.lt.s32.totalorder %s6619, 3
        %s6621 = scalar_select %p6620, %s6619, 3
        %s6622 = smul.addr %s6621, 2
        %s6623 = scalar_lea.vmem %s5, %s6622
        // Predicated region
        $region57: #{nlp_model_forward.1} parent=39 // pred_check
          %p6624 = pneg %p168
        $region58: #{nlp_model_forward.1} parent=39 // pred_check_branch
          %6626 = sbr.rel (%p6624) target = $region60
        $region59: #{nlp_model_forward.1} parent=39 // pred_region
          %s6627 = smul.u32 2, %s25
        $region60: #{nlp_model_forward.1} parent=39 // pred_fallthru
          _
      $region40: #{nlp_model_forward.1} parent=5 // pred_fallthru
        _
      %p6628 = scmp.le.s32.totalorder 2, %s20
      // Predicated region
      $region61: #{nlp_model_forward.1} parent=5 // pred_check
        %p6629 = pneg %p6628
      $region62: #{nlp_model_forward.1} parent=5 // pred_check_branch
        %6631 = sbr.rel (%p6629) target = $region64
      $region63: #{nlp_model_forward.1} parent=5 // pred_region
        %s6632 = ssub.s32 %s20, 2
        // Predicated region
        $region65: #{nlp_model_forward.1} parent=63 // pred_check
          %p6633 = pneg %p174
        $region66: #{nlp_model_forward.1} parent=63 // pred_check_branch
          %6635 = sbr.rel (%p6633) target = $region68
        $region67: #{nlp_model_forward.1} parent=63 // pred_region
          %s6636 = smul.u32 2, %s26
          %p6637 = scmp.lt.s32.totalorder %s6636, 3
          %s6638 = scalar_select %p6637, %s6636, 3
          %s6639 = smul.addr %s6638, 2
          %s6640 = scalar_lea.vmem %s5, %s6639
        $region68: #{nlp_model_forward.1} parent=63 // pred_fallthru
          _
      $region64: #{nlp_model_forward.1} parent=5 // pred_fallthru
        _
    $region6: #{nlp_model_forward.1} parent=1 // loop_footer
      %s24 = sadd.s32 1, %s20
    $region7: #{nlp_model_forward.1} parent=1 // loop_footer_branch
      %19 = sbr.rel target = $region3
    $region8: #{nlp_model_forward.1} parent=1 // loop_exit
      _
    %6641 = vsyncpa [#allocation3], 1
    %s6642 = scalar_lea.sflag [#allocation3], 1
    %6643 = vsyncpa %s6642, 1
    %6644 = vsyncpa [#allocation5], 1
    %s6645 = scalar_lea.sflag [#allocation5], 1
    %6646 = vsyncpa %s6645, 1
    %6647 = vsyncpa [#allocation8], 1
    %s6648 = scalar_lea.sflag [#allocation8], 1
    %6649 = vsyncpa %s6648, 1

</llo_original>
